<compile_context>
chip_gen: v7x
topology: tpu7x:2x2x1
jax: 0.10.0
libtpu: 0.0.40
codegen_flags: <defaults>
</compile_context>

<pallas_src>
import jax
import jax.numpy as jnp
from jax.experimental import pallas as pl
from jax.experimental.pallas import tpu as pltpu

HIDDEN = 128
INPUT = 2
NUM_LAYERS = 2   # hard-coded as two stacked GRU cells below
OUTPUT = 2
FC_PAD = 128     # lane-dense padded width for the final FC output


def _gru_fc_kernel(gi0_ref,              # (T, B, 3H)  precomputed x @ Wih0 + bih0
                   whh0_ref, bhh0_ref,   # (H, 3H), (1, 3H)
                   w1cat_ref, b1sum_ref, # (2H, 3H) = [Wih1; Whh1], (1, 3H) = bih1 + bhh1
                   whh1n_ref, bhh1n_ref, # (H, H), (1, H)   layer-1 n-gate recurrent weights
                   wfc_ref, bfc_ref,     # (H, FC_PAD), (1, FC_PAD)  zero-padded
                   out_ref):             # (B, FC_PAD)
    T, B, _ = gi0_ref.shape
    H = HIDDEN

    # Tiny biases: load once, keep in registers across the unrolled loop.
    bhh0 = bhh0_ref[...]
    b1sum = b1sum_ref[...]
    bhh1n = bhh1n_ref[...]

    h0 = jnp.zeros((B, H), jnp.float32)
    h1 = jnp.zeros((B, H), jnp.float32)

    # Static (fully unrolled) time loop; h0/h1 live in vregs, never round-trip VMEM.
    # Weight matrices are read at their use sites (they feed the MXU from VMEM anyway).
    for t in range(T):
        # ---- layer 0 (input projection already hoisted out of the loop) ----
        gi0 = gi0_ref[t]                                            # (B, 3H)
        gh0 = jnp.dot(h0, whh0_ref[...],
                      preferred_element_type=jnp.float32) + bhh0    # (B, 3H)
        r0 = jax.nn.sigmoid(gi0[:, :H] + gh0[:, :H])
        z0 = jax.nn.sigmoid(gi0[:, H:2 * H] + gh0[:, H:2 * H])
        n0 = jnp.tanh(gi0[:, 2 * H:] + r0 * gh0[:, 2 * H:])
        h0 = (1.0 - z0) * n0 + z0 * h0

        # ---- layer 1: fused (B,2H)@(2H,3H) + one (B,H)@(H,H) for the n gate ----
        cat = jnp.concatenate([h0, h1], axis=-1)                    # (B, 2H)
        s1 = jnp.dot(cat, w1cat_ref[...],
                     preferred_element_type=jnp.float32) + b1sum    # gi1 + gh1 (+ both biases)
        gh1n = jnp.dot(h1, whh1n_ref[...],
                       preferred_element_type=jnp.float32) + bhh1n  # Whn h1 + bhn
        r1 = jax.nn.sigmoid(s1[:, :H])
        z1 = jax.nn.sigmoid(s1[:, H:2 * H])
        # s1_n - gh1n == Win h0 + bin   (exact up to fp rounding)
        n1 = jnp.tanh((s1[:, 2 * H:] - gh1n) + r1 * gh1n)
        h1 = (1.0 - z1) * n1 + z1 * h1

    # fc(gru_out[:, -1, :]) on the top layer's last hidden state; lane-dense padded output.
    out_ref[...] = (jnp.dot(h1, wfc_ref[...],
                            preferred_element_type=jnp.float32) + bfc_ref[...])


def gru_model_forward(x, params):
    """x: (B, T, INPUT) float32, returns (B, OUTPUT) float32."""
    B, T, I = x.shape
    assert I == INPUT
    H = HIDDEN

    # Time-parallel layer-0 input projection, hoisted off the serial recurrence.
    x_tbi = jnp.transpose(x, (1, 0, 2))                               # (T, B, I)
    gi0 = jnp.matmul(x_tbi, params["wih0"]) + params["bih0"]          # (T, B, 3H)

    # Layer-1 packed weights: stacked [Wih1; Whh1] and pre-summed r/z/n biases,
    # plus the n-gate recurrent piece kept separate for r * (Whn h + bhn).
    w1cat = jnp.concatenate([params["wih1"], params["whh1"]], axis=0)  # (2H, 3H)
    b1sum = params["bih1"] + params["bhh1"]                            # (1, 3H)
    whh1n = params["whh1"][:, 2 * H:]                                  # (H, H)
    bhh1n = params["bhh1"][:, 2 * H:]                                  # (1, H)

    # Zero-pad the FC to a 128-lane slab (unmasked lane-dense store), slice after.
    wfc_pad = jnp.zeros((H, FC_PAD), jnp.float32).at[:, :OUTPUT].set(params["wfc"])
    bfc_pad = jnp.zeros((1, FC_PAD), jnp.float32).at[:, :OUTPUT].set(params["bfc"])

    ins = (gi0,
           params["whh0"], params["bhh0"],
           w1cat, b1sum, whh1n, bhh1n,
           wfc_pad, bfc_pad)

    vmem_spec = pl.BlockSpec(memory_space=pltpu.MemorySpace.VMEM)

    out_pad = pl.pallas_call(
        _gru_fc_kernel,
        out_shape=jax.ShapeDtypeStruct((B, FC_PAD), jnp.float32),
        in_specs=[vmem_spec] * len(ins),
        out_specs=vmem_spec,
    )(*ins)
    return out_pad[:, :OUTPUT]


def reference_forward(x, params):
    """Pure-JAX reference matching PyTorch GRU + Linear semantics."""
    H = HIDDEN

    def cell(x_t, h, wih, whh, bih, bhh):
        gi = x_t @ wih + bih
        gh = h @ whh + bhh
        r = jax.nn.sigmoid(gi[:, :H] + gh[:, :H])
        z = jax.nn.sigmoid(gi[:, H:2 * H] + gh[:, H:2 * H])
        n = jnp.tanh(gi[:, 2 * H:] + r * gh[:, 2 * H:])
        return (1.0 - z) * n + z * h

    B, T, _ = x.shape
    h0 = jnp.zeros((B, H), jnp.float32)
    h1 = jnp.zeros((B, H), jnp.float32)
    for t in range(T):
        h0 = cell(x[:, t], h0, params["wih0"], params["whh0"],
                  params["bih0"], params["bhh0"])
        h1 = cell(h0, h1, params["wih1"], params["whh1"],
                  params["bih1"], params["bhh1"])
    return h1 @ params["wfc"] + params["bfc"]


def make_params(key):
    """Deterministic synthetic params, PyTorch-style U(-1/sqrt(H), 1/sqrt(H)) init."""
    k = 1.0 / jnp.sqrt(jnp.float32(HIDDEN))
    keys = jax.random.split(key, 10)

    def u(kk, shape):
        return jax.random.uniform(kk, shape, jnp.float32, -k, k)

    return dict(
        # layer 0: input_size -> hidden
        wih0=u(keys[0], (INPUT, 3 * HIDDEN)),
        whh0=u(keys[1], (HIDDEN, 3 * HIDDEN)),
        bih0=u(keys[2], (1, 3 * HIDDEN)),
        bhh0=u(keys[3], (1, 3 * HIDDEN)),
        # layer 1: hidden -> hidden
        wih1=u(keys[4], (HIDDEN, 3 * HIDDEN)),
        whh1=u(keys[5], (HIDDEN, 3 * HIDDEN)),
        bih1=u(keys[6], (1, 3 * HIDDEN)),
        bhh1=u(keys[7], (1, 3 * HIDDEN)),
        # fc: hidden -> output
        wfc=u(keys[8], (HIDDEN, OUTPUT)),
        bfc=u(keys[9], (1, OUTPUT)),
    )


if __name__ == "__main__":
    key = jax.random.PRNGKey(0)
    pkey, xkey = jax.random.split(key)

    B, T = 2, 8
    params = make_params(pkey)
    x = jax.random.normal(xkey, (B, T, INPUT), jnp.float32)

    out = gru_model_forward(x, params)
    out = jax.block_until_ready(out)

    ref = reference_forward(x, params)
    assert out.shape == (B, OUTPUT)
    # Slightly looser than 1e-5: the fused layer-1 matmul changes fp accumulation order.
    assert jnp.allclose(out, ref, atol=1e-4, rtol=1e-4), (out, ref)

    print("KERNEL_OK")
</pallas_src>

<mosaic_0001>
module attributes {stable_mosaic.version = 11 : i64} {
  func.func @_gru_fc_kernel(%arg0: memref<8x2x384xf32, #tpu.memory_space<vmem>>, %arg1: memref<128x384xf32, #tpu.memory_space<vmem>>, %arg2: memref<1x384xf32, #tpu.memory_space<vmem>>, %arg3: memref<256x384xf32, #tpu.memory_space<vmem>>, %arg4: memref<1x384xf32, #tpu.memory_space<vmem>>, %arg5: memref<128x128xf32, #tpu.memory_space<vmem>>, %arg6: memref<1x128xf32, #tpu.memory_space<vmem>>, %arg7: memref<128x128xf32, #tpu.memory_space<vmem>>, %arg8: memref<1x128xf32, #tpu.memory_space<vmem>>, %arg9: memref<2x128xf32, #tpu.memory_space<vmem>>) attributes {dimension_semantics = [], scalar_prefetch = 0 : i64, scratch_operands = 0 : i64, tpu.core_type = #tpu.core_type<tc>} {
    %c0 = arith.constant 0 : index
    %c0_0 = arith.constant 0 : index
    %0 = vector.load %arg2[%c0, %c0_0] : memref<1x384xf32, #tpu.memory_space<vmem>>, vector<1x384xf32>
    %c0_1 = arith.constant 0 : index
    %c0_2 = arith.constant 0 : index
    %1 = vector.load %arg4[%c0_1, %c0_2] : memref<1x384xf32, #tpu.memory_space<vmem>>, vector<1x384xf32>
    %c0_3 = arith.constant 0 : index
    %c0_4 = arith.constant 0 : index
    %2 = vector.load %arg6[%c0_3, %c0_4] : memref<1x128xf32, #tpu.memory_space<vmem>>, vector<1x128xf32>
    %cst = arith.constant 0.000000e+00 : f32
    %3 = vector.broadcast %cst : f32 to vector<2x128xf32>
    %cst_5 = arith.constant 0.000000e+00 : f32
    %4 = vector.broadcast %cst_5 : f32 to vector<2x128xf32>
    %c0_6 = arith.constant 0 : index
    %c0_7 = arith.constant 0 : index
    %c0_8 = arith.constant 0 : index
    %5 = vector.load %arg0[%c0_6, %c0_7, %c0_8] : memref<8x2x384xf32, #tpu.memory_space<vmem>>, vector<1x2x384xf32>
    %6 = vector.shape_cast %5 : vector<1x2x384xf32> to vector<2x384xf32>
    %c0_9 = arith.constant 0 : index
    %c0_10 = arith.constant 0 : index
    %7 = vector.load %arg1[%c0_9, %c0_10] : memref<128x384xf32, #tpu.memory_space<vmem>>, vector<128x384xf32>
    %cst_11 = arith.constant dense<0.000000e+00> : vector<2x384xf32>
    %8 = tpu.matmul %3, %7, %cst_11 {dimension_numbers = #tpu.dot_dimension_numbers<[1], [0], [0], [1], [0, 0, 1, 1], [], []>} : vector<2x128xf32>, vector<128x384xf32>, vector<2x384xf32> -> vector<2x384xf32>
    %9 = vector.broadcast %0 : vector<1x384xf32> to vector<2x384xf32>
    %10 = arith.addf %8, %9 : vector<2x384xf32>
    %11 = vector.extract_strided_slice %6 {offsets = [0, 0], sizes = [2, 128], strides = [1, 1]} : vector<2x384xf32> to vector<2x128xf32>
    %12 = vector.extract_strided_slice %10 {offsets = [0, 0], sizes = [2, 128], strides = [1, 1]} : vector<2x384xf32> to vector<2x128xf32>
    %13 = arith.addf %11, %12 : vector<2x128xf32>
    %14 = arith.negf %13 : vector<2x128xf32>
    %15 = math.exp %14 : vector<2x128xf32>
    %cst_12 = arith.constant 1.000000e+00 : f32
    %16 = vector.broadcast %cst_12 : f32 to vector<2x128xf32>
    %17 = arith.addf %16, %15 : vector<2x128xf32>
    %18 = arith.divf %16, %17 : vector<2x128xf32>
    %19 = vector.extract_strided_slice %6 {offsets = [0, 128], sizes = [2, 128], strides = [1, 1]} : vector<2x384xf32> to vector<2x128xf32>
    %20 = vector.extract_strided_slice %10 {offsets = [0, 128], sizes = [2, 128], strides = [1, 1]} : vector<2x384xf32> to vector<2x128xf32>
    %21 = arith.addf %19, %20 : vector<2x128xf32>
    %22 = arith.negf %21 : vector<2x128xf32>
    %23 = math.exp %22 : vector<2x128xf32>
    %cst_13 = arith.constant 1.000000e+00 : f32
    %24 = vector.broadcast %cst_13 : f32 to vector<2x128xf32>
    %25 = arith.addf %24, %23 : vector<2x128xf32>
    %26 = arith.divf %24, %25 : vector<2x128xf32>
    %27 = vector.extract_strided_slice %6 {offsets = [0, 256], sizes = [2, 128], strides = [1, 1]} : vector<2x384xf32> to vector<2x128xf32>
    %28 = vector.extract_strided_slice %10 {offsets = [0, 256], sizes = [2, 128], strides = [1, 1]} : vector<2x384xf32> to vector<2x128xf32>
    %29 = arith.mulf %18, %28 : vector<2x128xf32>
    %30 = arith.addf %27, %29 : vector<2x128xf32>
    %31 = math.tanh %30 : vector<2x128xf32>
    %cst_14 = arith.constant 1.000000e+00 : f32
    %32 = vector.broadcast %cst_14 : f32 to vector<2x128xf32>
    %33 = arith.subf %32, %26 : vector<2x128xf32>
    %34 = arith.mulf %33, %31 : vector<2x128xf32>
    %35 = arith.mulf %26, %3 : vector<2x128xf32>
    %36 = arith.addf %34, %35 : vector<2x128xf32>
    %37 = tpu.concatenate %36, %4 in 1 : vector<2x128xf32>, vector<2x128xf32> -> vector<2x256xf32>
    %c0_15 = arith.constant 0 : index
    %c0_16 = arith.constant 0 : index
    %38 = vector.load %arg3[%c0_15, %c0_16] : memref<256x384xf32, #tpu.memory_space<vmem>>, vector<256x384xf32>
    %cst_17 = arith.constant dense<0.000000e+00> : vector<2x384xf32>
    %39 = tpu.matmul %37, %38, %cst_17 {dimension_numbers = #tpu.dot_dimension_numbers<[1], [0], [0], [1], [0, 0, 1, 1], [], []>} : vector<2x256xf32>, vector<256x384xf32>, vector<2x384xf32> -> vector<2x384xf32>
    %40 = vector.broadcast %1 : vector<1x384xf32> to vector<2x384xf32>
    %41 = arith.addf %39, %40 : vector<2x384xf32>
    %c0_18 = arith.constant 0 : index
    %c0_19 = arith.constant 0 : index
    %42 = vector.load %arg5[%c0_18, %c0_19] : memref<128x128xf32, #tpu.memory_space<vmem>>, vector<128x128xf32>
    %cst_20 = arith.constant dense<0.000000e+00> : vector<2x128xf32>
    %43 = tpu.matmul %4, %42, %cst_20 {dimension_numbers = #tpu.dot_dimension_numbers<[1], [0], [0], [1], [0, 0, 1, 1], [], []>} : vector<2x128xf32>, vector<128x128xf32>, vector<2x128xf32> -> vector<2x128xf32>
    %44 = vector.broadcast %2 : vector<1x128xf32> to vector<2x128xf32>
    %45 = arith.addf %43, %44 : vector<2x128xf32>
    %46 = vector.extract_strided_slice %41 {offsets = [0, 0], sizes = [2, 128], strides = [1, 1]} : vector<2x384xf32> to vector<2x128xf32>
    %47 = arith.negf %46 : vector<2x128xf32>
    %48 = math.exp %47 : vector<2x128xf32>
    %cst_21 = arith.constant 1.000000e+00 : f32
    %49 = vector.broadcast %cst_21 : f32 to vector<2x128xf32>
    %50 = arith.addf %49, %48 : vector<2x128xf32>
    %51 = arith.divf %49, %50 : vector<2x128xf32>
    %52 = vector.extract_strided_slice %41 {offsets = [0, 128], sizes = [2, 128], strides = [1, 1]} : vector<2x384xf32> to vector<2x128xf32>
    %53 = arith.negf %52 : vector<2x128xf32>
    %54 = math.exp %53 : vector<2x128xf32>
    %cst_22 = arith.constant 1.000000e+00 : f32
    %55 = vector.broadcast %cst_22 : f32 to vector<2x128xf32>
    %56 = arith.addf %55, %54 : vector<2x128xf32>
    %57 = arith.divf %55, %56 : vector<2x128xf32>
    %58 = vector.extract_strided_slice %41 {offsets = [0, 256], sizes = [2, 128], strides = [1, 1]} : vector<2x384xf32> to vector<2x128xf32>
    %59 = arith.subf %58, %45 : vector<2x128xf32>
    %60 = arith.mulf %51, %45 : vector<2x128xf32>
    %61 = arith.addf %59, %60 : vector<2x128xf32>
    %62 = math.tanh %61 : vector<2x128xf32>
    %cst_23 = arith.constant 1.000000e+00 : f32
    %63 = vector.broadcast %cst_23 : f32 to vector<2x128xf32>
    %64 = arith.subf %63, %57 : vector<2x128xf32>
    %65 = arith.mulf %64, %62 : vector<2x128xf32>
    %66 = arith.mulf %57, %4 : vector<2x128xf32>
    %67 = arith.addf %65, %66 : vector<2x128xf32>
    %c1 = arith.constant 1 : index
    %c0_24 = arith.constant 0 : index
    %c0_25 = arith.constant 0 : index
    %68 = vector.load %arg0[%c1, %c0_24, %c0_25] : memref<8x2x384xf32, #tpu.memory_space<vmem>>, vector<1x2x384xf32>
    %69 = vector.shape_cast %68 : vector<1x2x384xf32> to vector<2x384xf32>
    %c0_26 = arith.constant 0 : index
    %c0_27 = arith.constant 0 : index
    %70 = vector.load %arg1[%c0_26, %c0_27] : memref<128x384xf32, #tpu.memory_space<vmem>>, vector<128x384xf32>
    %cst_28 = arith.constant dense<0.000000e+00> : vector<2x384xf32>
    %71 = tpu.matmul %36, %70, %cst_28 {dimension_numbers = #tpu.dot_dimension_numbers<[1], [0], [0], [1], [0, 0, 1, 1], [], []>} : vector<2x128xf32>, vector<128x384xf32>, vector<2x384xf32> -> vector<2x384xf32>
    %72 = vector.broadcast %0 : vector<1x384xf32> to vector<2x384xf32>
    %73 = arith.addf %71, %72 : vector<2x384xf32>
    %74 = vector.extract_strided_slice %69 {offsets = [0, 0], sizes = [2, 128], strides = [1, 1]} : vector<2x384xf32> to vector<2x128xf32>
    %75 = vector.extract_strided_slice %73 {offsets = [0, 0], sizes = [2, 128], strides = [1, 1]} : vector<2x384xf32> to vector<2x128xf32>
    %76 = arith.addf %74, %75 : vector<2x128xf32>
    %77 = arith.negf %76 : vector<2x128xf32>
    %78 = math.exp %77 : vector<2x128xf32>
    %cst_29 = arith.constant 1.000000e+00 : f32
    %79 = vector.broadcast %cst_29 : f32 to vector<2x128xf32>
    %80 = arith.addf %79, %78 : vector<2x128xf32>
    %81 = arith.divf %79, %80 : vector<2x128xf32>
    %82 = vector.extract_strided_slice %69 {offsets = [0, 128], sizes = [2, 128], strides = [1, 1]} : vector<2x384xf32> to vector<2x128xf32>
    %83 = vector.extract_strided_slice %73 {offsets = [0, 128], sizes = [2, 128], strides = [1, 1]} : vector<2x384xf32> to vector<2x128xf32>
    %84 = arith.addf %82, %83 : vector<2x128xf32>
    %85 = arith.negf %84 : vector<2x128xf32>
    %86 = math.exp %85 : vector<2x128xf32>
    %cst_30 = arith.constant 1.000000e+00 : f32
    %87 = vector.broadcast %cst_30 : f32 to vector<2x128xf32>
    %88 = arith.addf %87, %86 : vector<2x128xf32>
    %89 = arith.divf %87, %88 : vector<2x128xf32>
    %90 = vector.extract_strided_slice %69 {offsets = [0, 256], sizes = [2, 128], strides = [1, 1]} : vector<2x384xf32> to vector<2x128xf32>
    %91 = vector.extract_strided_slice %73 {offsets = [0, 256], sizes = [2, 128], strides = [1, 1]} : vector<2x384xf32> to vector<2x128xf32>
    %92 = arith.mulf %81, %91 : vector<2x128xf32>
    %93 = arith.addf %90, %92 : vector<2x128xf32>
    %94 = math.tanh %93 : vector<2x128xf32>
    %cst_31 = arith.constant 1.000000e+00 : f32
    %95 = vector.broadcast %cst_31 : f32 to vector<2x128xf32>
    %96 = arith.subf %95, %89 : vector<2x128xf32>
    %97 = arith.mulf %96, %94 : vector<2x128xf32>
    %98 = arith.mulf %89, %36 : vector<2x128xf32>
    %99 = arith.addf %97, %98 : vector<2x128xf32>
    %100 = tpu.concatenate %99, %67 in 1 : vector<2x128xf32>, vector<2x128xf32> -> vector<2x256xf32>
    %c0_32 = arith.constant 0 : index
    %c0_33 = arith.constant 0 : index
    %101 = vector.load %arg3[%c0_32, %c0_33] : memref<256x384xf32, #tpu.memory_space<vmem>>, vector<256x384xf32>
    %cst_34 = arith.constant dense<0.000000e+00> : vector<2x384xf32>
    %102 = tpu.matmul %100, %101, %cst_34 {dimension_numbers = #tpu.dot_dimension_numbers<[1], [0], [0], [1], [0, 0, 1, 1], [], []>} : vector<2x256xf32>, vector<256x384xf32>, vector<2x384xf32> -> vector<2x384xf32>
    %103 = vector.broadcast %1 : vector<1x384xf32> to vector<2x384xf32>
    %104 = arith.addf %102, %103 : vector<2x384xf32>
    %c0_35 = arith.constant 0 : index
    %c0_36 = arith.constant 0 : index
    %105 = vector.load %arg5[%c0_35, %c0_36] : memref<128x128xf32, #tpu.memory_space<vmem>>, vector<128x128xf32>
    %cst_37 = arith.constant dense<0.000000e+00> : vector<2x128xf32>
    %106 = tpu.matmul %67, %105, %cst_37 {dimension_numbers = #tpu.dot_dimension_numbers<[1], [0], [0], [1], [0, 0, 1, 1], [], []>} : vector<2x128xf32>, vector<128x128xf32>, vector<2x128xf32> -> vector<2x128xf32>
    %107 = vector.broadcast %2 : vector<1x128xf32> to vector<2x128xf32>
    %108 = arith.addf %106, %107 : vector<2x128xf32>
    %109 = vector.extract_strided_slice %104 {offsets = [0, 0], sizes = [2, 128], strides = [1, 1]} : vector<2x384xf32> to vector<2x128xf32>
    %110 = arith.negf %109 : vector<2x128xf32>
    %111 = math.exp %110 : vector<2x128xf32>
    %cst_38 = arith.constant 1.000000e+00 : f32
    %112 = vector.broadcast %cst_38 : f32 to vector<2x128xf32>
    %113 = arith.addf %112, %111 : vector<2x128xf32>
    %114 = arith.divf %112, %113 : vector<2x128xf32>
    %115 = vector.extract_strided_slice %104 {offsets = [0, 128], sizes = [2, 128], strides = [1, 1]} : vector<2x384xf32> to vector<2x128xf32>
    %116 = arith.negf %115 : vector<2x128xf32>
    %117 = math.exp %116 : vector<2x128xf32>
    %cst_39 = arith.constant 1.000000e+00 : f32
    %118 = vector.broadcast %cst_39 : f32 to vector<2x128xf32>
    %119 = arith.addf %118, %117 : vector<2x128xf32>
    %120 = arith.divf %118, %119 : vector<2x128xf32>
    %121 = vector.extract_strided_slice %104 {offsets = [0, 256], sizes = [2, 128], strides = [1, 1]} : vector<2x384xf32> to vector<2x128xf32>
    %122 = arith.subf %121, %108 : vector<2x128xf32>
    %123 = arith.mulf %114, %108 : vector<2x128xf32>
    %124 = arith.addf %122, %123 : vector<2x128xf32>
    %125 = math.tanh %124 : vector<2x128xf32>
    %cst_40 = arith.constant 1.000000e+00 : f32
    %126 = vector.broadcast %cst_40 : f32 to vector<2x128xf32>
    %127 = arith.subf %126, %120 : vector<2x128xf32>
    %128 = arith.mulf %127, %125 : vector<2x128xf32>
    %129 = arith.mulf %120, %67 : vector<2x128xf32>
    %130 = arith.addf %128, %129 : vector<2x128xf32>
    %c2 = arith.constant 2 : index
    %c0_41 = arith.constant 0 : index
    %c0_42 = arith.constant 0 : index
    %131 = vector.load %arg0[%c2, %c0_41, %c0_42] : memref<8x2x384xf32, #tpu.memory_space<vmem>>, vector<1x2x384xf32>
    %132 = vector.shape_cast %131 : vector<1x2x384xf32> to vector<2x384xf32>
    %c0_43 = arith.constant 0 : index
    %c0_44 = arith.constant 0 : index
    %133 = vector.load %arg1[%c0_43, %c0_44] : memref<128x384xf32, #tpu.memory_space<vmem>>, vector<128x384xf32>
    %cst_45 = arith.constant dense<0.000000e+00> : vector<2x384xf32>
    %134 = tpu.matmul %99, %133, %cst_45 {dimension_numbers = #tpu.dot_dimension_numbers<[1], [0], [0], [1], [0, 0, 1, 1], [], []>} : vector<2x128xf32>, vector<128x384xf32>, vector<2x384xf32> -> vector<2x384xf32>
    %135 = vector.broadcast %0 : vector<1x384xf32> to vector<2x384xf32>
    %136 = arith.addf %134, %135 : vector<2x384xf32>
    %137 = vector.extract_strided_slice %132 {offsets = [0, 0], sizes = [2, 128], strides = [1, 1]} : vector<2x384xf32> to vector<2x128xf32>
    %138 = vector.extract_strided_slice %136 {offsets = [0, 0], sizes = [2, 128], strides = [1, 1]} : vector<2x384xf32> to vector<2x128xf32>
    %139 = arith.addf %137, %138 : vector<2x128xf32>
    %140 = arith.negf %139 : vector<2x128xf32>
    %141 = math.exp %140 : vector<2x128xf32>
    %cst_46 = arith.constant 1.000000e+00 : f32
    %142 = vector.broadcast %cst_46 : f32 to vector<2x128xf32>
    %143 = arith.addf %142, %141 : vector<2x128xf32>
    %144 = arith.divf %142, %143 : vector<2x128xf32>
    %145 = vector.extract_strided_slice %132 {offsets = [0, 128], sizes = [2, 128], strides = [1, 1]} : vector<2x384xf32> to vector<2x128xf32>
    %146 = vector.extract_strided_slice %136 {offsets = [0, 128], sizes = [2, 128], strides = [1, 1]} : vector<2x384xf32> to vector<2x128xf32>
    %147 = arith.addf %145, %146 : vector<2x128xf32>
    %148 = arith.negf %147 : vector<2x128xf32>
    %149 = math.exp %148 : vector<2x128xf32>
    %cst_47 = arith.constant 1.000000e+00 : f32
    %150 = vector.broadcast %cst_47 : f32 to vector<2x128xf32>
    %151 = arith.addf %150, %149 : vector<2x128xf32>
    %152 = arith.divf %150, %151 : vector<2x128xf32>
    %153 = vector.extract_strided_slice %132 {offsets = [0, 256], sizes = [2, 128], strides = [1, 1]} : vector<2x384xf32> to vector<2x128xf32>
    %154 = vector.extract_strided_slice %136 {offsets = [0, 256], sizes = [2, 128], strides = [1, 1]} : vector<2x384xf32> to vector<2x128xf32>
    %155 = arith.mulf %144, %154 : vector<2x128xf32>
    %156 = arith.addf %153, %155 : vector<2x128xf32>
    %157 = math.tanh %156 : vector<2x128xf32>
    %cst_48 = arith.constant 1.000000e+00 : f32
    %158 = vector.broadcast %cst_48 : f32 to vector<2x128xf32>
    %159 = arith.subf %158, %152 : vector<2x128xf32>
    %160 = arith.mulf %159, %157 : vector<2x128xf32>
    %161 = arith.mulf %152, %99 : vector<2x128xf32>
    %162 = arith.addf %160, %161 : vector<2x128xf32>
    %163 = tpu.concatenate %162, %130 in 1 : vector<2x128xf32>, vector<2x128xf32> -> vector<2x256xf32>
    %c0_49 = arith.constant 0 : index
    %c0_50 = arith.constant 0 : index
    %164 = vector.load %arg3[%c0_49, %c0_50] : memref<256x384xf32, #tpu.memory_space<vmem>>, vector<256x384xf32>
    %cst_51 = arith.constant dense<0.000000e+00> : vector<2x384xf32>
    %165 = tpu.matmul %163, %164, %cst_51 {dimension_numbers = #tpu.dot_dimension_numbers<[1], [0], [0], [1], [0, 0, 1, 1], [], []>} : vector<2x256xf32>, vector<256x384xf32>, vector<2x384xf32> -> vector<2x384xf32>
    %166 = vector.broadcast %1 : vector<1x384xf32> to vector<2x384xf32>
    %167 = arith.addf %165, %166 : vector<2x384xf32>
    %c0_52 = arith.constant 0 : index
    %c0_53 = arith.constant 0 : index
    %168 = vector.load %arg5[%c0_52, %c0_53] : memref<128x128xf32, #tpu.memory_space<vmem>>, vector<128x128xf32>
    %cst_54 = arith.constant dense<0.000000e+00> : vector<2x128xf32>
    %169 = tpu.matmul %130, %168, %cst_54 {dimension_numbers = #tpu.dot_dimension_numbers<[1], [0], [0], [1], [0, 0, 1, 1], [], []>} : vector<2x128xf32>, vector<128x128xf32>, vector<2x128xf32> -> vector<2x128xf32>
    %170 = vector.broadcast %2 : vector<1x128xf32> to vector<2x128xf32>
    %171 = arith.addf %169, %170 : vector<2x128xf32>
    %172 = vector.extract_strided_slice %167 {offsets = [0, 0], sizes = [2, 128], strides = [1, 1]} : vector<2x384xf32> to vector<2x128xf32>
    %173 = arith.negf %172 : vector<2x128xf32>
    %174 = math.exp %173 : vector<2x128xf32>
    %cst_55 = arith.constant 1.000000e+00 : f32
    %175 = vector.broadcast %cst_55 : f32 to vector<2x128xf32>
    %176 = arith.addf %175, %174 : vector<2x128xf32>
    %177 = arith.divf %175, %176 : vector<2x128xf32>
    %178 = vector.extract_strided_slice %167 {offsets = [0, 128], sizes = [2, 128], strides = [1, 1]} : vector<2x384xf32> to vector<2x128xf32>
    %179 = arith.negf %178 : vector<2x128xf32>
    %180 = math.exp %179 : vector<2x128xf32>
    %cst_56 = arith.constant 1.000000e+00 : f32
    %181 = vector.broadcast %cst_56 : f32 to vector<2x128xf32>
    %182 = arith.addf %181, %180 : vector<2x128xf32>
    %183 = arith.divf %181, %182 : vector<2x128xf32>
    %184 = vector.extract_strided_slice %167 {offsets = [0, 256], sizes = [2, 128], strides = [1, 1]} : vector<2x384xf32> to vector<2x128xf32>
    %185 = arith.subf %184, %171 : vector<2x128xf32>
    %186 = arith.mulf %177, %171 : vector<2x128xf32>
    %187 = arith.addf %185, %186 : vector<2x128xf32>
    %188 = math.tanh %187 : vector<2x128xf32>
    %cst_57 = arith.constant 1.000000e+00 : f32
    %189 = vector.broadcast %cst_57 : f32 to vector<2x128xf32>
    %190 = arith.subf %189, %183 : vector<2x128xf32>
    %191 = arith.mulf %190, %188 : vector<2x128xf32>
    %192 = arith.mulf %183, %130 : vector<2x128xf32>
    %193 = arith.addf %191, %192 : vector<2x128xf32>
    %c3 = arith.constant 3 : index
    %c0_58 = arith.constant 0 : index
    %c0_59 = arith.constant 0 : index
    %194 = vector.load %arg0[%c3, %c0_58, %c0_59] : memref<8x2x384xf32, #tpu.memory_space<vmem>>, vector<1x2x384xf32>
    %195 = vector.shape_cast %194 : vector<1x2x384xf32> to vector<2x384xf32>
    %c0_60 = arith.constant 0 : index
    %c0_61 = arith.constant 0 : index
    %196 = vector.load %arg1[%c0_60, %c0_61] : memref<128x384xf32, #tpu.memory_space<vmem>>, vector<128x384xf32>
    %cst_62 = arith.constant dense<0.000000e+00> : vector<2x384xf32>
    %197 = tpu.matmul %162, %196, %cst_62 {dimension_numbers = #tpu.dot_dimension_numbers<[1], [0], [0], [1], [0, 0, 1, 1], [], []>} : vector<2x128xf32>, vector<128x384xf32>, vector<2x384xf32> -> vector<2x384xf32>
    %198 = vector.broadcast %0 : vector<1x384xf32> to vector<2x384xf32>
    %199 = arith.addf %197, %198 : vector<2x384xf32>
    %200 = vector.extract_strided_slice %195 {offsets = [0, 0], sizes = [2, 128], strides = [1, 1]} : vector<2x384xf32> to vector<2x128xf32>
    %201 = vector.extract_strided_slice %199 {offsets = [0, 0], sizes = [2, 128], strides = [1, 1]} : vector<2x384xf32> to vector<2x128xf32>
    %202 = arith.addf %200, %201 : vector<2x128xf32>
    %203 = arith.negf %202 : vector<2x128xf32>
    %204 = math.exp %203 : vector<2x128xf32>
    %cst_63 = arith.constant 1.000000e+00 : f32
    %205 = vector.broadcast %cst_63 : f32 to vector<2x128xf32>
    %206 = arith.addf %205, %204 : vector<2x128xf32>
    %207 = arith.divf %205, %206 : vector<2x128xf32>
    %208 = vector.extract_strided_slice %195 {offsets = [0, 128], sizes = [2, 128], strides = [1, 1]} : vector<2x384xf32> to vector<2x128xf32>
    %209 = vector.extract_strided_slice %199 {offsets = [0, 128], sizes = [2, 128], strides = [1, 1]} : vector<2x384xf32> to vector<2x128xf32>
    %210 = arith.addf %208, %209 : vector<2x128xf32>
    %211 = arith.negf %210 : vector<2x128xf32>
    %212 = math.exp %211 : vector<2x128xf32>
    %cst_64 = arith.constant 1.000000e+00 : f32
    %213 = vector.broadcast %cst_64 : f32 to vector<2x128xf32>
    %214 = arith.addf %213, %212 : vector<2x128xf32>
    %215 = arith.divf %213, %214 : vector<2x128xf32>
    %216 = vector.extract_strided_slice %195 {offsets = [0, 256], sizes = [2, 128], strides = [1, 1]} : vector<2x384xf32> to vector<2x128xf32>
    %217 = vector.extract_strided_slice %199 {offsets = [0, 256], sizes = [2, 128], strides = [1, 1]} : vector<2x384xf32> to vector<2x128xf32>
    %218 = arith.mulf %207, %217 : vector<2x128xf32>
    %219 = arith.addf %216, %218 : vector<2x128xf32>
    %220 = math.tanh %219 : vector<2x128xf32>
    %cst_65 = arith.constant 1.000000e+00 : f32
    %221 = vector.broadcast %cst_65 : f32 to vector<2x128xf32>
    %222 = arith.subf %221, %215 : vector<2x128xf32>
    %223 = arith.mulf %222, %220 : vector<2x128xf32>
    %224 = arith.mulf %215, %162 : vector<2x128xf32>
    %225 = arith.addf %223, %224 : vector<2x128xf32>
    %226 = tpu.concatenate %225, %193 in 1 : vector<2x128xf32>, vector<2x128xf32> -> vector<2x256xf32>
    %c0_66 = arith.constant 0 : index
    %c0_67 = arith.constant 0 : index
    %227 = vector.load %arg3[%c0_66, %c0_67] : memref<256x384xf32, #tpu.memory_space<vmem>>, vector<256x384xf32>
    %cst_68 = arith.constant dense<0.000000e+00> : vector<2x384xf32>
    %228 = tpu.matmul %226, %227, %cst_68 {dimension_numbers = #tpu.dot_dimension_numbers<[1], [0], [0], [1], [0, 0, 1, 1], [], []>} : vector<2x256xf32>, vector<256x384xf32>, vector<2x384xf32> -> vector<2x384xf32>
    %229 = vector.broadcast %1 : vector<1x384xf32> to vector<2x384xf32>
    %230 = arith.addf %228, %229 : vector<2x384xf32>
    %c0_69 = arith.constant 0 : index
    %c0_70 = arith.constant 0 : index
    %231 = vector.load %arg5[%c0_69, %c0_70] : memref<128x128xf32, #tpu.memory_space<vmem>>, vector<128x128xf32>
    %cst_71 = arith.constant dense<0.000000e+00> : vector<2x128xf32>
    %232 = tpu.matmul %193, %231, %cst_71 {dimension_numbers = #tpu.dot_dimension_numbers<[1], [0], [0], [1], [0, 0, 1, 1], [], []>} : vector<2x128xf32>, vector<128x128xf32>, vector<2x128xf32> -> vector<2x128xf32>
    %233 = vector.broadcast %2 : vector<1x128xf32> to vector<2x128xf32>
    %234 = arith.addf %232, %233 : vector<2x128xf32>
    %235 = vector.extract_strided_slice %230 {offsets = [0, 0], sizes = [2, 128], strides = [1, 1]} : vector<2x384xf32> to vector<2x128xf32>
    %236 = arith.negf %235 : vector<2x128xf32>
    %237 = math.exp %236 : vector<2x128xf32>
    %cst_72 = arith.constant 1.000000e+00 : f32
    %238 = vector.broadcast %cst_72 : f32 to vector<2x128xf32>
    %239 = arith.addf %238, %237 : vector<2x128xf32>
    %240 = arith.divf %238, %239 : vector<2x128xf32>
    %241 = vector.extract_strided_slice %230 {offsets = [0, 128], sizes = [2, 128], strides = [1, 1]} : vector<2x384xf32> to vector<2x128xf32>
    %242 = arith.negf %241 : vector<2x128xf32>
    %243 = math.exp %242 : vector<2x128xf32>
    %cst_73 = arith.constant 1.000000e+00 : f32
    %244 = vector.broadcast %cst_73 : f32 to vector<2x128xf32>
    %245 = arith.addf %244, %243 : vector<2x128xf32>
    %246 = arith.divf %244, %245 : vector<2x128xf32>
    %247 = vector.extract_strided_slice %230 {offsets = [0, 256], sizes = [2, 128], strides = [1, 1]} : vector<2x384xf32> to vector<2x128xf32>
    %248 = arith.subf %247, %234 : vector<2x128xf32>
    %249 = arith.mulf %240, %234 : vector<2x128xf32>
    %250 = arith.addf %248, %249 : vector<2x128xf32>
    %251 = math.tanh %250 : vector<2x128xf32>
    %cst_74 = arith.constant 1.000000e+00 : f32
    %252 = vector.broadcast %cst_74 : f32 to vector<2x128xf32>
    %253 = arith.subf %252, %246 : vector<2x128xf32>
    %254 = arith.mulf %253, %251 : vector<2x128xf32>
    %255 = arith.mulf %246, %193 : vector<2x128xf32>
    %256 = arith.addf %254, %255 : vector<2x128xf32>
    %c4 = arith.constant 4 : index
    %c0_75 = arith.constant 0 : index
    %c0_76 = arith.constant 0 : index
    %257 = vector.load %arg0[%c4, %c0_75, %c0_76] : memref<8x2x384xf32, #tpu.memory_space<vmem>>, vector<1x2x384xf32>
    %258 = vector.shape_cast %257 : vector<1x2x384xf32> to vector<2x384xf32>
    %c0_77 = arith.constant 0 : index
    %c0_78 = arith.constant 0 : index
    %259 = vector.load %arg1[%c0_77, %c0_78] : memref<128x384xf32, #tpu.memory_space<vmem>>, vector<128x384xf32>
    %cst_79 = arith.constant dense<0.000000e+00> : vector<2x384xf32>
    %260 = tpu.matmul %225, %259, %cst_79 {dimension_numbers = #tpu.dot_dimension_numbers<[1], [0], [0], [1], [0, 0, 1, 1], [], []>} : vector<2x128xf32>, vector<128x384xf32>, vector<2x384xf32> -> vector<2x384xf32>
    %261 = vector.broadcast %0 : vector<1x384xf32> to vector<2x384xf32>
    %262 = arith.addf %260, %261 : vector<2x384xf32>
    %263 = vector.extract_strided_slice %258 {offsets = [0, 0], sizes = [2, 128], strides = [1, 1]} : vector<2x384xf32> to vector<2x128xf32>
    %264 = vector.extract_strided_slice %262 {offsets = [0, 0], sizes = [2, 128], strides = [1, 1]} : vector<2x384xf32> to vector<2x128xf32>
    %265 = arith.addf %263, %264 : vector<2x128xf32>
    %266 = arith.negf %265 : vector<2x128xf32>
    %267 = math.exp %266 : vector<2x128xf32>
    %cst_80 = arith.constant 1.000000e+00 : f32
    %268 = vector.broadcast %cst_80 : f32 to vector<2x128xf32>
    %269 = arith.addf %268, %267 : vector<2x128xf32>
    %270 = arith.divf %268, %269 : vector<2x128xf32>
    %271 = vector.extract_strided_slice %258 {offsets = [0, 128], sizes = [2, 128], strides = [1, 1]} : vector<2x384xf32> to vector<2x128xf32>
    %272 = vector.extract_strided_slice %262 {offsets = [0, 128], sizes = [2, 128], strides = [1, 1]} : vector<2x384xf32> to vector<2x128xf32>
    %273 = arith.addf %271, %272 : vector<2x128xf32>
    %274 = arith.negf %273 : vector<2x128xf32>
    %275 = math.exp %274 : vector<2x128xf32>
    %cst_81 = arith.constant 1.000000e+00 : f32
    %276 = vector.broadcast %cst_81 : f32 to vector<2x128xf32>
    %277 = arith.addf %276, %275 : vector<2x128xf32>
    %278 = arith.divf %276, %277 : vector<2x128xf32>
    %279 = vector.extract_strided_slice %258 {offsets = [0, 256], sizes = [2, 128], strides = [1, 1]} : vector<2x384xf32> to vector<2x128xf32>
    %280 = vector.extract_strided_slice %262 {offsets = [0, 256], sizes = [2, 128], strides = [1, 1]} : vector<2x384xf32> to vector<2x128xf32>
    %281 = arith.mulf %270, %280 : vector<2x128xf32>
    %282 = arith.addf %279, %281 : vector<2x128xf32>
    %283 = math.tanh %282 : vector<2x128xf32>
    %cst_82 = arith.constant 1.000000e+00 : f32
    %284 = vector.broadcast %cst_82 : f32 to vector<2x128xf32>
    %285 = arith.subf %284, %278 : vector<2x128xf32>
    %286 = arith.mulf %285, %283 : vector<2x128xf32>
    %287 = arith.mulf %278, %225 : vector<2x128xf32>
    %288 = arith.addf %286, %287 : vector<2x128xf32>
    %289 = tpu.concatenate %288, %256 in 1 : vector<2x128xf32>, vector<2x128xf32> -> vector<2x256xf32>
    %c0_83 = arith.constant 0 : index
    %c0_84 = arith.constant 0 : index
    %290 = vector.load %arg3[%c0_83, %c0_84] : memref<256x384xf32, #tpu.memory_space<vmem>>, vector<256x384xf32>
    %cst_85 = arith.constant dense<0.000000e+00> : vector<2x384xf32>
    %291 = tpu.matmul %289, %290, %cst_85 {dimension_numbers = #tpu.dot_dimension_numbers<[1], [0], [0], [1], [0, 0, 1, 1], [], []>} : vector<2x256xf32>, vector<256x384xf32>, vector<2x384xf32> -> vector<2x384xf32>
    %292 = vector.broadcast %1 : vector<1x384xf32> to vector<2x384xf32>
    %293 = arith.addf %291, %292 : vector<2x384xf32>
    %c0_86 = arith.constant 0 : index
    %c0_87 = arith.constant 0 : index
    %294 = vector.load %arg5[%c0_86, %c0_87] : memref<128x128xf32, #tpu.memory_space<vmem>>, vector<128x128xf32>
    %cst_88 = arith.constant dense<0.000000e+00> : vector<2x128xf32>
    %295 = tpu.matmul %256, %294, %cst_88 {dimension_numbers = #tpu.dot_dimension_numbers<[1], [0], [0], [1], [0, 0, 1, 1], [], []>} : vector<2x128xf32>, vector<128x128xf32>, vector<2x128xf32> -> vector<2x128xf32>
    %296 = vector.broadcast %2 : vector<1x128xf32> to vector<2x128xf32>
    %297 = arith.addf %295, %296 : vector<2x128xf32>
    %298 = vector.extract_strided_slice %293 {offsets = [0, 0], sizes = [2, 128], strides = [1, 1]} : vector<2x384xf32> to vector<2x128xf32>
    %299 = arith.negf %298 : vector<2x128xf32>
    %300 = math.exp %299 : vector<2x128xf32>
    %cst_89 = arith.constant 1.000000e+00 : f32
    %301 = vector.broadcast %cst_89 : f32 to vector<2x128xf32>
    %302 = arith.addf %301, %300 : vector<2x128xf32>
    %303 = arith.divf %301, %302 : vector<2x128xf32>
    %304 = vector.extract_strided_slice %293 {offsets = [0, 128], sizes = [2, 128], strides = [1, 1]} : vector<2x384xf32> to vector<2x128xf32>
    %305 = arith.negf %304 : vector<2x128xf32>
    %306 = math.exp %305 : vector<2x128xf32>
    %cst_90 = arith.constant 1.000000e+00 : f32
    %307 = vector.broadcast %cst_90 : f32 to vector<2x128xf32>
    %308 = arith.addf %307, %306 : vector<2x128xf32>
    %309 = arith.divf %307, %308 : vector<2x128xf32>
    %310 = vector.extract_strided_slice %293 {offsets = [0, 256], sizes = [2, 128], strides = [1, 1]} : vector<2x384xf32> to vector<2x128xf32>
    %311 = arith.subf %310, %297 : vector<2x128xf32>
    %312 = arith.mulf %303, %297 : vector<2x128xf32>
    %313 = arith.addf %311, %312 : vector<2x128xf32>
    %314 = math.tanh %313 : vector<2x128xf32>
    %cst_91 = arith.constant 1.000000e+00 : f32
    %315 = vector.broadcast %cst_91 : f32 to vector<2x128xf32>
    %316 = arith.subf %315, %309 : vector<2x128xf32>
    %317 = arith.mulf %316, %314 : vector<2x128xf32>
    %318 = arith.mulf %309, %256 : vector<2x128xf32>
    %319 = arith.addf %317, %318 : vector<2x128xf32>
    %c5 = arith.constant 5 : index
    %c0_92 = arith.constant 0 : index
    %c0_93 = arith.constant 0 : index
    %320 = vector.load %arg0[%c5, %c0_92, %c0_93] : memref<8x2x384xf32, #tpu.memory_space<vmem>>, vector<1x2x384xf32>
    %321 = vector.shape_cast %320 : vector<1x2x384xf32> to vector<2x384xf32>
    %c0_94 = arith.constant 0 : index
    %c0_95 = arith.constant 0 : index
    %322 = vector.load %arg1[%c0_94, %c0_95] : memref<128x384xf32, #tpu.memory_space<vmem>>, vector<128x384xf32>
    %cst_96 = arith.constant dense<0.000000e+00> : vector<2x384xf32>
    %323 = tpu.matmul %288, %322, %cst_96 {dimension_numbers = #tpu.dot_dimension_numbers<[1], [0], [0], [1], [0, 0, 1, 1], [], []>} : vector<2x128xf32>, vector<128x384xf32>, vector<2x384xf32> -> vector<2x384xf32>
    %324 = vector.broadcast %0 : vector<1x384xf32> to vector<2x384xf32>
    %325 = arith.addf %323, %324 : vector<2x384xf32>
    %326 = vector.extract_strided_slice %321 {offsets = [0, 0], sizes = [2, 128], strides = [1, 1]} : vector<2x384xf32> to vector<2x128xf32>
    %327 = vector.extract_strided_slice %325 {offsets = [0, 0], sizes = [2, 128], strides = [1, 1]} : vector<2x384xf32> to vector<2x128xf32>
    %328 = arith.addf %326, %327 : vector<2x128xf32>
    %329 = arith.negf %328 : vector<2x128xf32>
    %330 = math.exp %329 : vector<2x128xf32>
    %cst_97 = arith.constant 1.000000e+00 : f32
    %331 = vector.broadcast %cst_97 : f32 to vector<2x128xf32>
    %332 = arith.addf %331, %330 : vector<2x128xf32>
    %333 = arith.divf %331, %332 : vector<2x128xf32>
    %334 = vector.extract_strided_slice %321 {offsets = [0, 128], sizes = [2, 128], strides = [1, 1]} : vector<2x384xf32> to vector<2x128xf32>
    %335 = vector.extract_strided_slice %325 {offsets = [0, 128], sizes = [2, 128], strides = [1, 1]} : vector<2x384xf32> to vector<2x128xf32>
    %336 = arith.addf %334, %335 : vector<2x128xf32>
    %337 = arith.negf %336 : vector<2x128xf32>
    %338 = math.exp %337 : vector<2x128xf32>
    %cst_98 = arith.constant 1.000000e+00 : f32
    %339 = vector.broadcast %cst_98 : f32 to vector<2x128xf32>
    %340 = arith.addf %339, %338 : vector<2x128xf32>
    %341 = arith.divf %339, %340 : vector<2x128xf32>
    %342 = vector.extract_strided_slice %321 {offsets = [0, 256], sizes = [2, 128], strides = [1, 1]} : vector<2x384xf32> to vector<2x128xf32>
    %343 = vector.extract_strided_slice %325 {offsets = [0, 256], sizes = [2, 128], strides = [1, 1]} : vector<2x384xf32> to vector<2x128xf32>
    %344 = arith.mulf %333, %343 : vector<2x128xf32>
    %345 = arith.addf %342, %344 : vector<2x128xf32>
    %346 = math.tanh %345 : vector<2x128xf32>
    %cst_99 = arith.constant 1.000000e+00 : f32
    %347 = vector.broadcast %cst_99 : f32 to vector<2x128xf32>
    %348 = arith.subf %347, %341 : vector<2x128xf32>
    %349 = arith.mulf %348, %346 : vector<2x128xf32>
    %350 = arith.mulf %341, %288 : vector<2x128xf32>
    %351 = arith.addf %349, %350 : vector<2x128xf32>
    %352 = tpu.concatenate %351, %319 in 1 : vector<2x128xf32>, vector<2x128xf32> -> vector<2x256xf32>
    %c0_100 = arith.constant 0 : index
    %c0_101 = arith.constant 0 : index
    %353 = vector.load %arg3[%c0_100, %c0_101] : memref<256x384xf32, #tpu.memory_space<vmem>>, vector<256x384xf32>
    %cst_102 = arith.constant dense<0.000000e+00> : vector<2x384xf32>
    %354 = tpu.matmul %352, %353, %cst_102 {dimension_numbers = #tpu.dot_dimension_numbers<[1], [0], [0], [1], [0, 0, 1, 1], [], []>} : vector<2x256xf32>, vector<256x384xf32>, vector<2x384xf32> -> vector<2x384xf32>
    %355 = vector.broadcast %1 : vector<1x384xf32> to vector<2x384xf32>
    %356 = arith.addf %354, %355 : vector<2x384xf32>
    %c0_103 = arith.constant 0 : index
    %c0_104 = arith.constant 0 : index
    %357 = vector.load %arg5[%c0_103, %c0_104] : memref<128x128xf32, #tpu.memory_space<vmem>>, vector<128x128xf32>
    %cst_105 = arith.constant dense<0.000000e+00> : vector<2x128xf32>
    %358 = tpu.matmul %319, %357, %cst_105 {dimension_numbers = #tpu.dot_dimension_numbers<[1], [0], [0], [1], [0, 0, 1, 1], [], []>} : vector<2x128xf32>, vector<128x128xf32>, vector<2x128xf32> -> vector<2x128xf32>
    %359 = vector.broadcast %2 : vector<1x128xf32> to vector<2x128xf32>
    %360 = arith.addf %358, %359 : vector<2x128xf32>
    %361 = vector.extract_strided_slice %356 {offsets = [0, 0], sizes = [2, 128], strides = [1, 1]} : vector<2x384xf32> to vector<2x128xf32>
    %362 = arith.negf %361 : vector<2x128xf32>
    %363 = math.exp %362 : vector<2x128xf32>
    %cst_106 = arith.constant 1.000000e+00 : f32
    %364 = vector.broadcast %cst_106 : f32 to vector<2x128xf32>
    %365 = arith.addf %364, %363 : vector<2x128xf32>
    %366 = arith.divf %364, %365 : vector<2x128xf32>
    %367 = vector.extract_strided_slice %356 {offsets = [0, 128], sizes = [2, 128], strides = [1, 1]} : vector<2x384xf32> to vector<2x128xf32>
    %368 = arith.negf %367 : vector<2x128xf32>
    %369 = math.exp %368 : vector<2x128xf32>
    %cst_107 = arith.constant 1.000000e+00 : f32
    %370 = vector.broadcast %cst_107 : f32 to vector<2x128xf32>
    %371 = arith.addf %370, %369 : vector<2x128xf32>
    %372 = arith.divf %370, %371 : vector<2x128xf32>
    %373 = vector.extract_strided_slice %356 {offsets = [0, 256], sizes = [2, 128], strides = [1, 1]} : vector<2x384xf32> to vector<2x128xf32>
    %374 = arith.subf %373, %360 : vector<2x128xf32>
    %375 = arith.mulf %366, %360 : vector<2x128xf32>
    %376 = arith.addf %374, %375 : vector<2x128xf32>
    %377 = math.tanh %376 : vector<2x128xf32>
    %cst_108 = arith.constant 1.000000e+00 : f32
    %378 = vector.broadcast %cst_108 : f32 to vector<2x128xf32>
    %379 = arith.subf %378, %372 : vector<2x128xf32>
    %380 = arith.mulf %379, %377 : vector<2x128xf32>
    %381 = arith.mulf %372, %319 : vector<2x128xf32>
    %382 = arith.addf %380, %381 : vector<2x128xf32>
    %c6 = arith.constant 6 : index
    %c0_109 = arith.constant 0 : index
    %c0_110 = arith.constant 0 : index
    %383 = vector.load %arg0[%c6, %c0_109, %c0_110] : memref<8x2x384xf32, #tpu.memory_space<vmem>>, vector<1x2x384xf32>
    %384 = vector.shape_cast %383 : vector<1x2x384xf32> to vector<2x384xf32>
    %c0_111 = arith.constant 0 : index
    %c0_112 = arith.constant 0 : index
    %385 = vector.load %arg1[%c0_111, %c0_112] : memref<128x384xf32, #tpu.memory_space<vmem>>, vector<128x384xf32>
    %cst_113 = arith.constant dense<0.000000e+00> : vector<2x384xf32>
    %386 = tpu.matmul %351, %385, %cst_113 {dimension_numbers = #tpu.dot_dimension_numbers<[1], [0], [0], [1], [0, 0, 1, 1], [], []>} : vector<2x128xf32>, vector<128x384xf32>, vector<2x384xf32> -> vector<2x384xf32>
    %387 = vector.broadcast %0 : vector<1x384xf32> to vector<2x384xf32>
    %388 = arith.addf %386, %387 : vector<2x384xf32>
    %389 = vector.extract_strided_slice %384 {offsets = [0, 0], sizes = [2, 128], strides = [1, 1]} : vector<2x384xf32> to vector<2x128xf32>
    %390 = vector.extract_strided_slice %388 {offsets = [0, 0], sizes = [2, 128], strides = [1, 1]} : vector<2x384xf32> to vector<2x128xf32>
    %391 = arith.addf %389, %390 : vector<2x128xf32>
    %392 = arith.negf %391 : vector<2x128xf32>
    %393 = math.exp %392 : vector<2x128xf32>
    %cst_114 = arith.constant 1.000000e+00 : f32
    %394 = vector.broadcast %cst_114 : f32 to vector<2x128xf32>
    %395 = arith.addf %394, %393 : vector<2x128xf32>
    %396 = arith.divf %394, %395 : vector<2x128xf32>
    %397 = vector.extract_strided_slice %384 {offsets = [0, 128], sizes = [2, 128], strides = [1, 1]} : vector<2x384xf32> to vector<2x128xf32>
    %398 = vector.extract_strided_slice %388 {offsets = [0, 128], sizes = [2, 128], strides = [1, 1]} : vector<2x384xf32> to vector<2x128xf32>
    %399 = arith.addf %397, %398 : vector<2x128xf32>
    %400 = arith.negf %399 : vector<2x128xf32>
    %401 = math.exp %400 : vector<2x128xf32>
    %cst_115 = arith.constant 1.000000e+00 : f32
    %402 = vector.broadcast %cst_115 : f32 to vector<2x128xf32>
    %403 = arith.addf %402, %401 : vector<2x128xf32>
    %404 = arith.divf %402, %403 : vector<2x128xf32>
    %405 = vector.extract_strided_slice %384 {offsets = [0, 256], sizes = [2, 128], strides = [1, 1]} : vector<2x384xf32> to vector<2x128xf32>
    %406 = vector.extract_strided_slice %388 {offsets = [0, 256], sizes = [2, 128], strides = [1, 1]} : vector<2x384xf32> to vector<2x128xf32>
    %407 = arith.mulf %396, %406 : vector<2x128xf32>
    %408 = arith.addf %405, %407 : vector<2x128xf32>
    %409 = math.tanh %408 : vector<2x128xf32>
    %cst_116 = arith.constant 1.000000e+00 : f32
    %410 = vector.broadcast %cst_116 : f32 to vector<2x128xf32>
    %411 = arith.subf %410, %404 : vector<2x128xf32>
    %412 = arith.mulf %411, %409 : vector<2x128xf32>
    %413 = arith.mulf %404, %351 : vector<2x128xf32>
    %414 = arith.addf %412, %413 : vector<2x128xf32>
    %415 = tpu.concatenate %414, %382 in 1 : vector<2x128xf32>, vector<2x128xf32> -> vector<2x256xf32>
    %c0_117 = arith.constant 0 : index
    %c0_118 = arith.constant 0 : index
    %416 = vector.load %arg3[%c0_117, %c0_118] : memref<256x384xf32, #tpu.memory_space<vmem>>, vector<256x384xf32>
    %cst_119 = arith.constant dense<0.000000e+00> : vector<2x384xf32>
    %417 = tpu.matmul %415, %416, %cst_119 {dimension_numbers = #tpu.dot_dimension_numbers<[1], [0], [0], [1], [0, 0, 1, 1], [], []>} : vector<2x256xf32>, vector<256x384xf32>, vector<2x384xf32> -> vector<2x384xf32>
    %418 = vector.broadcast %1 : vector<1x384xf32> to vector<2x384xf32>
    %419 = arith.addf %417, %418 : vector<2x384xf32>
    %c0_120 = arith.constant 0 : index
    %c0_121 = arith.constant 0 : index
    %420 = vector.load %arg5[%c0_120, %c0_121] : memref<128x128xf32, #tpu.memory_space<vmem>>, vector<128x128xf32>
    %cst_122 = arith.constant dense<0.000000e+00> : vector<2x128xf32>
    %421 = tpu.matmul %382, %420, %cst_122 {dimension_numbers = #tpu.dot_dimension_numbers<[1], [0], [0], [1], [0, 0, 1, 1], [], []>} : vector<2x128xf32>, vector<128x128xf32>, vector<2x128xf32> -> vector<2x128xf32>
    %422 = vector.broadcast %2 : vector<1x128xf32> to vector<2x128xf32>
    %423 = arith.addf %421, %422 : vector<2x128xf32>
    %424 = vector.extract_strided_slice %419 {offsets = [0, 0], sizes = [2, 128], strides = [1, 1]} : vector<2x384xf32> to vector<2x128xf32>
    %425 = arith.negf %424 : vector<2x128xf32>
    %426 = math.exp %425 : vector<2x128xf32>
    %cst_123 = arith.constant 1.000000e+00 : f32
    %427 = vector.broadcast %cst_123 : f32 to vector<2x128xf32>
    %428 = arith.addf %427, %426 : vector<2x128xf32>
    %429 = arith.divf %427, %428 : vector<2x128xf32>
    %430 = vector.extract_strided_slice %419 {offsets = [0, 128], sizes = [2, 128], strides = [1, 1]} : vector<2x384xf32> to vector<2x128xf32>
    %431 = arith.negf %430 : vector<2x128xf32>
    %432 = math.exp %431 : vector<2x128xf32>
    %cst_124 = arith.constant 1.000000e+00 : f32
    %433 = vector.broadcast %cst_124 : f32 to vector<2x128xf32>
    %434 = arith.addf %433, %432 : vector<2x128xf32>
    %435 = arith.divf %433, %434 : vector<2x128xf32>
    %436 = vector.extract_strided_slice %419 {offsets = [0, 256], sizes = [2, 128], strides = [1, 1]} : vector<2x384xf32> to vector<2x128xf32>
    %437 = arith.subf %436, %423 : vector<2x128xf32>
    %438 = arith.mulf %429, %423 : vector<2x128xf32>
    %439 = arith.addf %437, %438 : vector<2x128xf32>
    %440 = math.tanh %439 : vector<2x128xf32>
    %cst_125 = arith.constant 1.000000e+00 : f32
    %441 = vector.broadcast %cst_125 : f32 to vector<2x128xf32>
    %442 = arith.subf %441, %435 : vector<2x128xf32>
    %443 = arith.mulf %442, %440 : vector<2x128xf32>
    %444 = arith.mulf %435, %382 : vector<2x128xf32>
    %445 = arith.addf %443, %444 : vector<2x128xf32>
    %c7 = arith.constant 7 : index
    %c0_126 = arith.constant 0 : index
    %c0_127 = arith.constant 0 : index
    %446 = vector.load %arg0[%c7, %c0_126, %c0_127] : memref<8x2x384xf32, #tpu.memory_space<vmem>>, vector<1x2x384xf32>
    %447 = vector.shape_cast %446 : vector<1x2x384xf32> to vector<2x384xf32>
    %c0_128 = arith.constant 0 : index
    %c0_129 = arith.constant 0 : index
    %448 = vector.load %arg1[%c0_128, %c0_129] : memref<128x384xf32, #tpu.memory_space<vmem>>, vector<128x384xf32>
    %cst_130 = arith.constant dense<0.000000e+00> : vector<2x384xf32>
    %449 = tpu.matmul %414, %448, %cst_130 {dimension_numbers = #tpu.dot_dimension_numbers<[1], [0], [0], [1], [0, 0, 1, 1], [], []>} : vector<2x128xf32>, vector<128x384xf32>, vector<2x384xf32> -> vector<2x384xf32>
    %450 = vector.broadcast %0 : vector<1x384xf32> to vector<2x384xf32>
    %451 = arith.addf %449, %450 : vector<2x384xf32>
    %452 = vector.extract_strided_slice %447 {offsets = [0, 0], sizes = [2, 128], strides = [1, 1]} : vector<2x384xf32> to vector<2x128xf32>
    %453 = vector.extract_strided_slice %451 {offsets = [0, 0], sizes = [2, 128], strides = [1, 1]} : vector<2x384xf32> to vector<2x128xf32>
    %454 = arith.addf %452, %453 : vector<2x128xf32>
    %455 = arith.negf %454 : vector<2x128xf32>
    %456 = math.exp %455 : vector<2x128xf32>
    %cst_131 = arith.constant 1.000000e+00 : f32
    %457 = vector.broadcast %cst_131 : f32 to vector<2x128xf32>
    %458 = arith.addf %457, %456 : vector<2x128xf32>
    %459 = arith.divf %457, %458 : vector<2x128xf32>
    %460 = vector.extract_strided_slice %447 {offsets = [0, 128], sizes = [2, 128], strides = [1, 1]} : vector<2x384xf32> to vector<2x128xf32>
    %461 = vector.extract_strided_slice %451 {offsets = [0, 128], sizes = [2, 128], strides = [1, 1]} : vector<2x384xf32> to vector<2x128xf32>
    %462 = arith.addf %460, %461 : vector<2x128xf32>
    %463 = arith.negf %462 : vector<2x128xf32>
    %464 = math.exp %463 : vector<2x128xf32>
    %cst_132 = arith.constant 1.000000e+00 : f32
    %465 = vector.broadcast %cst_132 : f32 to vector<2x128xf32>
    %466 = arith.addf %465, %464 : vector<2x128xf32>
    %467 = arith.divf %465, %466 : vector<2x128xf32>
    %468 = vector.extract_strided_slice %447 {offsets = [0, 256], sizes = [2, 128], strides = [1, 1]} : vector<2x384xf32> to vector<2x128xf32>
    %469 = vector.extract_strided_slice %451 {offsets = [0, 256], sizes = [2, 128], strides = [1, 1]} : vector<2x384xf32> to vector<2x128xf32>
    %470 = arith.mulf %459, %469 : vector<2x128xf32>
    %471 = arith.addf %468, %470 : vector<2x128xf32>
    %472 = math.tanh %471 : vector<2x128xf32>
    %cst_133 = arith.constant 1.000000e+00 : f32
    %473 = vector.broadcast %cst_133 : f32 to vector<2x128xf32>
    %474 = arith.subf %473, %467 : vector<2x128xf32>
    %475 = arith.mulf %474, %472 : vector<2x128xf32>
    %476 = arith.mulf %467, %414 : vector<2x128xf32>
    %477 = arith.addf %475, %476 : vector<2x128xf32>
    %478 = tpu.concatenate %477, %445 in 1 : vector<2x128xf32>, vector<2x128xf32> -> vector<2x256xf32>
    %c0_134 = arith.constant 0 : index
    %c0_135 = arith.constant 0 : index
    %479 = vector.load %arg3[%c0_134, %c0_135] : memref<256x384xf32, #tpu.memory_space<vmem>>, vector<256x384xf32>
    %cst_136 = arith.constant dense<0.000000e+00> : vector<2x384xf32>
    %480 = tpu.matmul %478, %479, %cst_136 {dimension_numbers = #tpu.dot_dimension_numbers<[1], [0], [0], [1], [0, 0, 1, 1], [], []>} : vector<2x256xf32>, vector<256x384xf32>, vector<2x384xf32> -> vector<2x384xf32>
    %481 = vector.broadcast %1 : vector<1x384xf32> to vector<2x384xf32>
    %482 = arith.addf %480, %481 : vector<2x384xf32>
    %c0_137 = arith.constant 0 : index
    %c0_138 = arith.constant 0 : index
    %483 = vector.load %arg5[%c0_137, %c0_138] : memref<128x128xf32, #tpu.memory_space<vmem>>, vector<128x128xf32>
    %cst_139 = arith.constant dense<0.000000e+00> : vector<2x128xf32>
    %484 = tpu.matmul %445, %483, %cst_139 {dimension_numbers = #tpu.dot_dimension_numbers<[1], [0], [0], [1], [0, 0, 1, 1], [], []>} : vector<2x128xf32>, vector<128x128xf32>, vector<2x128xf32> -> vector<2x128xf32>
    %485 = vector.broadcast %2 : vector<1x128xf32> to vector<2x128xf32>
    %486 = arith.addf %484, %485 : vector<2x128xf32>
    %487 = vector.extract_strided_slice %482 {offsets = [0, 0], sizes = [2, 128], strides = [1, 1]} : vector<2x384xf32> to vector<2x128xf32>
    %488 = arith.negf %487 : vector<2x128xf32>
    %489 = math.exp %488 : vector<2x128xf32>
    %cst_140 = arith.constant 1.000000e+00 : f32
    %490 = vector.broadcast %cst_140 : f32 to vector<2x128xf32>
    %491 = arith.addf %490, %489 : vector<2x128xf32>
    %492 = arith.divf %490, %491 : vector<2x128xf32>
    %493 = vector.extract_strided_slice %482 {offsets = [0, 128], sizes = [2, 128], strides = [1, 1]} : vector<2x384xf32> to vector<2x128xf32>
    %494 = arith.negf %493 : vector<2x128xf32>
    %495 = math.exp %494 : vector<2x128xf32>
    %cst_141 = arith.constant 1.000000e+00 : f32
    %496 = vector.broadcast %cst_141 : f32 to vector<2x128xf32>
    %497 = arith.addf %496, %495 : vector<2x128xf32>
    %498 = arith.divf %496, %497 : vector<2x128xf32>
    %499 = vector.extract_strided_slice %482 {offsets = [0, 256], sizes = [2, 128], strides = [1, 1]} : vector<2x384xf32> to vector<2x128xf32>
    %500 = arith.subf %499, %486 : vector<2x128xf32>
    %501 = arith.mulf %492, %486 : vector<2x128xf32>
    %502 = arith.addf %500, %501 : vector<2x128xf32>
    %503 = math.tanh %502 : vector<2x128xf32>
    %cst_142 = arith.constant 1.000000e+00 : f32
    %504 = vector.broadcast %cst_142 : f32 to vector<2x128xf32>
    %505 = arith.subf %504, %498 : vector<2x128xf32>
    %506 = arith.mulf %505, %503 : vector<2x128xf32>
    %507 = arith.mulf %498, %445 : vector<2x128xf32>
    %508 = arith.addf %506, %507 : vector<2x128xf32>
    %c0_143 = arith.constant 0 : index
    %c0_144 = arith.constant 0 : index
    %509 = vector.load %arg7[%c0_143, %c0_144] : memref<128x128xf32, #tpu.memory_space<vmem>>, vector<128x128xf32>
    %cst_145 = arith.constant dense<0.000000e+00> : vector<2x128xf32>
    %510 = tpu.matmul %508, %509, %cst_145 {dimension_numbers = #tpu.dot_dimension_numbers<[1], [0], [0], [1], [0, 0, 1, 1], [], []>} : vector<2x128xf32>, vector<128x128xf32>, vector<2x128xf32> -> vector<2x128xf32>
    %c0_146 = arith.constant 0 : index
    %c0_147 = arith.constant 0 : index
    %511 = vector.load %arg8[%c0_146, %c0_147] : memref<1x128xf32, #tpu.memory_space<vmem>>, vector<1x128xf32>
    %512 = vector.broadcast %511 : vector<1x128xf32> to vector<2x128xf32>
    %513 = arith.addf %510, %512 : vector<2x128xf32>
    %c0_148 = arith.constant 0 : index
    %c0_149 = arith.constant 0 : index
    %514 = vector.load %arg9[%c0_148, %c0_149] : memref<2x128xf32, #tpu.memory_space<vmem>>, vector<2x128xf32>
    tpu.vector_store %arg9[%c0_148, %c0_149], %513 {strides = array<i32>} : memref<2x128xf32, #tpu.memory_space<vmem>>, vector<2x128xf32>,
    return
  }
}

</mosaic_0001>

<llo_original>
// kernel: tpu_custom_call.1
$region0: #{tpu_custom_call.1}
  #allocation0 [shape = 'u32[]', space=smem, size = 0x4, offset = 0x4, fixed_abs, tag = 'smem constant byte address 0x4 - core index']
  #allocation1 [shape = 'u32[144,128]{1,0:T(1,128)}', space=vmem, size = 0x12000, scoped, tag = 'internal scratch']
  %s0 = inlined_call_operand.hbm [shape: f32[8,2,384], index: 0, kind: input, shape index: {}]
  %s1 = inlined_call_operand.hbm [shape: f32[128,384], index: 1, kind: input, shape index: {}]
  %s2 = inlined_call_operand.vmem [shape: f32[1,384], index: 2, kind: input, shape index: {}]
  %s3 = inlined_call_operand.hbm [shape: f32[256,384], index: 3, kind: input, shape index: {}]
  %s4 = inlined_call_operand.vmem [shape: f32[1,384], index: 4, kind: input, shape index: {}]
  %s5 = inlined_call_operand.hbm [shape: f32[128,128], index: 5, kind: input, shape index: {}]
  %s6 = inlined_call_operand.vmem [shape: f32[1,128], index: 6, kind: input, shape index: {}]
  %s7 = inlined_call_operand.hbm [shape: f32[128,128], index: 7, kind: input, shape index: {}]
  %s8 = inlined_call_operand.vmem [shape: f32[1,128], index: 8, kind: input, shape index: {}]
  %s9 = inlined_call_operand.hbm [shape: f32[2,128], index: 9, kind: output, shape index: {}]
  %s10 = sld [smem:[#allocation0]]
  $region66: #{tpu_custom_call.1} parent=0
    _
  %s12 = ssub.s32 1, %s10
  %s13 = scalar_select 0, %s12, %s10
  $region1: #{tpu_custom_call.1} parent=0
    #allocation2 [shape = 'u8[24576]{0}', space=vmem, size = 0x6000, scoped, tag = 'input window, operand 0, single buffered']
    #allocation3 [shape = 's32[1]{0}', space=sflag, size = 0x4, scoped, tag = 'scoped memory for tpu_custom_call.1']
    #allocation4 [shape = 's32[1]{0}', space=sflag, size = 0x4, scoped, tag = 'scoped memory for tpu_custom_call.1']
    #allocation5 [shape = 'u8[196608]{0}', space=vmem, size = 0x30000, scoped, tag = 'input window, operand 1, single buffered']
    #allocation6 [shape = 's32[1]{0}', space=sflag, size = 0x4, scoped, tag = 'scoped memory for tpu_custom_call.1']
    #allocation7 [shape = 'u8[393216]{0}', space=vmem, size = 0x60000, scoped, tag = 'input window, operand 3, single buffered']
    #allocation8 [shape = 'u8[65536]{0}', space=vmem, size = 0x10000, scoped, tag = 'input window, operand 5, single buffered']
    #allocation9 [shape = 's32[1]{0}', space=sflag, size = 0x4, scoped, tag = 'scoped memory for tpu_custom_call.1']
    #allocation10 [shape = 'u8[65536]{0}', space=vmem, size = 0x10000, scoped, tag = 'input window, operand 7, single buffered']
    #allocation11 [shape = 'u8[1024]{0}', space=vmem, size = 0x400, scoped, tag = 'output window, operand 0, single buffered']
    %14 = vsyncpa [#allocation3], 0
    %15 = vsyncpa [#allocation6], 0
    %16 = vsyncpa [#allocation9], 0
    %17 = vsyncpa [#allocation4], 0
    // Predicated region
    $region2: #{tpu_custom_call.1} parent=1 // pred_check
      _
    $region3: #{tpu_custom_call.1} parent=1 // pred_check_branch
      %19 = sbr.rel (0) target = $region5
    $region4: #{tpu_custom_call.1} parent=1 // pred_region
      %s21 = ssub.s32 768, 768
      %22 = vsyncadd [#allocation3], %s21
      %s23 = sshll.u32 [#allocation2], 4
      %s24 = int_to_ptr.vmem [resolvable:$true] %s23
      %29 = dma.hbm_to_vmem [thread:$0]  %s0, 768, %s24, [#allocation3], 96, 96, 6
    $region5: #{tpu_custom_call.1} parent=1 // pred_fallthru
      _
    // Predicated region
    $region6: #{tpu_custom_call.1} parent=1 // pred_check
      _
    $region7: #{tpu_custom_call.1} parent=1 // pred_check_branch
      %31 = sbr.rel (0) target = $region9
    $region8: #{tpu_custom_call.1} parent=1 // pred_region
      %s33 = ssub.s32 6144, 6144
      %34 = vsyncadd [#allocation6], %s33
      %s35 = sshll.u32 [#allocation5], 4
      %s36 = int_to_ptr.vmem [resolvable:$true] %s35
      %41 = dma.hbm_to_vmem [thread:$0]  %s1, 6144, %s36, [#allocation6], 384, 384, 24
    $region9: #{tpu_custom_call.1} parent=1 // pred_fallthru
      _
    // Predicated region
    $region10: #{tpu_custom_call.1} parent=1 // pred_check
      _
    $region11: #{tpu_custom_call.1} parent=1 // pred_check_branch
      %43 = sbr.rel (0) target = $region13
    $region12: #{tpu_custom_call.1} parent=1 // pred_region
      _
    $region13: #{tpu_custom_call.1} parent=1 // pred_fallthru
      _
    // Predicated region
    $region14: #{tpu_custom_call.1} parent=1 // pred_check
      _
    $region15: #{tpu_custom_call.1} parent=1 // pred_check_branch
      %45 = sbr.rel (0) target = $region17
    $region16: #{tpu_custom_call.1} parent=1 // pred_region
      %s47 = ssub.s32 12288, 12288
      %48 = vsyncadd [#allocation6], %s47
      %s49 = sshll.u32 [#allocation7], 4
      %s50 = int_to_ptr.vmem [resolvable:$true] %s49
      %55 = dma.hbm_to_vmem [thread:$0]  %s3, 12288, %s50, [#allocation6], 384, 384, 24
    $region17: #{tpu_custom_call.1} parent=1 // pred_fallthru
      _
    // Predicated region
    $region18: #{tpu_custom_call.1} parent=1 // pred_check
      _
    $region19: #{tpu_custom_call.1} parent=1 // pred_check_branch
      %57 = sbr.rel (0) target = $region21
    $region20: #{tpu_custom_call.1} parent=1 // pred_region
      _
    $region21: #{tpu_custom_call.1} parent=1 // pred_fallthru
      _
    // Predicated region
    $region22: #{tpu_custom_call.1} parent=1 // pred_check
      _
    $region23: #{tpu_custom_call.1} parent=1 // pred_check_branch
      %59 = sbr.rel (0) target = $region25
    $region24: #{tpu_custom_call.1} parent=1 // pred_region
      %s61 = ssub.s32 2048, 2048
      %62 = vsyncadd [#allocation9], %s61
      %s63 = sshll.u32 [#allocation8], 4
      %s64 = int_to_ptr.vmem [resolvable:$true] %s63
      %69 = dma.hbm_to_vmem [thread:$0]  %s5, 2048, %s64, [#allocation9], 128, 128, 8
    $region25: #{tpu_custom_call.1} parent=1 // pred_fallthru
      _
    // Predicated region
    $region26: #{tpu_custom_call.1} parent=1 // pred_check
      _
    $region27: #{tpu_custom_call.1} parent=1 // pred_check_branch
      %71 = sbr.rel (0) target = $region29
    $region28: #{tpu_custom_call.1} parent=1 // pred_region
      _
    $region29: #{tpu_custom_call.1} parent=1 // pred_fallthru
      _
    // Predicated region
    $region30: #{tpu_custom_call.1} parent=1 // pred_check
      _
    $region31: #{tpu_custom_call.1} parent=1 // pred_check_branch
      %73 = sbr.rel (0) target = $region33
    $region32: #{tpu_custom_call.1} parent=1 // pred_region
      %s75 = ssub.s32 2048, 2048
      %76 = vsyncadd [#allocation9], %s75
      %s77 = sshll.u32 [#allocation10], 4
      %s78 = int_to_ptr.vmem [resolvable:$true] %s77
      %83 = dma.hbm_to_vmem [thread:$0]  %s7, 2048, %s78, [#allocation9], 128, 128, 8
    $region33: #{tpu_custom_call.1} parent=1 // pred_fallthru
      _
    // Predicated region
    $region34: #{tpu_custom_call.1} parent=1 // pred_check
      _
    $region35: #{tpu_custom_call.1} parent=1 // pred_check_branch
      %85 = sbr.rel (0) target = $region37
    $region36: #{tpu_custom_call.1} parent=1 // pred_region
      _
    $region37: #{tpu_custom_call.1} parent=1 // pred_fallthru
      _
    // Predicated region
    $region38: #{tpu_custom_call.1} parent=1 // pred_check
      _
    $region39: #{tpu_custom_call.1} parent=1 // pred_check_branch
      %87 = sbr.rel (0) target = $region41
    $region40: #{tpu_custom_call.1} parent=1 // pred_region
      %88 = dma.done [#allocation3], 768
    $region41: #{tpu_custom_call.1} parent=1 // pred_fallthru
      _
    // Predicated region
    $region42: #{tpu_custom_call.1} parent=1 // pred_check
      _
    $region43: #{tpu_custom_call.1} parent=1 // pred_check_branch
      %90 = sbr.rel (0) target = $region45
    $region44: #{tpu_custom_call.1} parent=1 // pred_region
      %91 = dma.done [#allocation6], 6144
    $region45: #{tpu_custom_call.1} parent=1 // pred_fallthru
      _
    // Predicated region
    $region46: #{tpu_custom_call.1} parent=1 // pred_check
      _
    $region47: #{tpu_custom_call.1} parent=1 // pred_check_branch
      %93 = sbr.rel (0) target = $region49
    $region48: #{tpu_custom_call.1} parent=1 // pred_region
      %94 = dma.done [#allocation6], 12288
    $region49: #{tpu_custom_call.1} parent=1 // pred_fallthru
      _
    // Predicated region
    $region50: #{tpu_custom_call.1} parent=1 // pred_check
      _
    $region51: #{tpu_custom_call.1} parent=1 // pred_check_branch
      %96 = sbr.rel (0) target = $region53
    $region52: #{tpu_custom_call.1} parent=1 // pred_region
      %97 = dma.done [#allocation9], 2048
    $region53: #{tpu_custom_call.1} parent=1 // pred_fallthru
      _
    // Predicated region
    $region54: #{tpu_custom_call.1} parent=1 // pred_check
      _
    $region55: #{tpu_custom_call.1} parent=1 // pred_check_branch
      %99 = sbr.rel (0) target = $region57
    $region56: #{tpu_custom_call.1} parent=1 // pred_region
      %100 = dma.done [#allocation9], 2048
    $region57: #{tpu_custom_call.1} parent=1 // pred_fallthru
      _
    %v101 = vld [vmem:[%s2] sm:$0x7]
    %v102 = vld [vmem:[%s4] sm:$0x7]
    %v103 = vld [vmem:[%s6] sm:$0x1]
    %v104 = vld [vmem:[#allocation2] sm:$0x3f]
    %v105 = vld [vmem:[#allocation5] sm:$0xff]
    %v106 = vld [vmem:[#allocation5 + $0x8] sm:$0xff]
    %v107 = vld [vmem:[#allocation5 + $0x10] sm:$0xff]
    %v108 = vld [vmem:[#allocation5 + $0x18] sm:$0xff]
    %v109 = vld [vmem:[#allocation5 + $0x20] sm:$0xff]
    %v110 = vld [vmem:[#allocation5 + $0x28] sm:$0xff]
    %v111 = vld [vmem:[#allocation5 + $0x30] sm:$0xff]
    %v112 = vld [vmem:[#allocation5 + $0x38] sm:$0xff]
    %v113 = vld [vmem:[#allocation5 + $0x40] sm:$0xff]
    %v114 = vld [vmem:[#allocation5 + $0x48] sm:$0xff]
    %v115 = vld [vmem:[#allocation5 + $0x50] sm:$0xff]
    %v116 = vld [vmem:[#allocation5 + $0x58] sm:$0xff]
    %v117 = vld [vmem:[#allocation5 + $0x60] sm:$0xff]
    %v118 = vld [vmem:[#allocation5 + $0x68] sm:$0xff]
    %v119 = vld [vmem:[#allocation5 + $0x70] sm:$0xff]
    %v120 = vld [vmem:[#allocation5 + $0x78] sm:$0xff]
    %v121 = vld [vmem:[#allocation5 + $0x80] sm:$0xff]
    %v122 = vld [vmem:[#allocation5 + $0x88] sm:$0xff]
    %v123 = vld [vmem:[#allocation5 + $0x90] sm:$0xff]
    %v124 = vld [vmem:[#allocation5 + $0x98] sm:$0xff]
    %v125 = vld [vmem:[#allocation5 + $0xa0] sm:$0xff]
    %v126 = vld [vmem:[#allocation5 + $0xa8] sm:$0xff]
    %v127 = vld [vmem:[#allocation5 + $0xb0] sm:$0xff]
    %v128 = vld [vmem:[#allocation5 + $0xb8] sm:$0xff]
    %v129 = vld [vmem:[#allocation5 + $0xc0] sm:$0xff]
    %v130 = vld [vmem:[#allocation5 + $0xc8] sm:$0xff]
    %v131 = vld [vmem:[#allocation5 + $0xd0] sm:$0xff]
    %v132 = vld [vmem:[#allocation5 + $0xd8] sm:$0xff]
    %v133 = vld [vmem:[#allocation5 + $0xe0] sm:$0xff]
    %v134 = vld [vmem:[#allocation5 + $0xe8] sm:$0xff]
    %v135 = vld [vmem:[#allocation5 + $0xf0] sm:$0xff]
    %v136 = vld [vmem:[#allocation5 + $0xf8] sm:$0xff]
    %v137 = vld [vmem:[#allocation5 + $0x100] sm:$0xff]
    %v138 = vld [vmem:[#allocation5 + $0x108] sm:$0xff]
    %v139 = vld [vmem:[#allocation5 + $0x110] sm:$0xff]
    %v140 = vld [vmem:[#allocation5 + $0x118] sm:$0xff]
    %v141 = vld [vmem:[#allocation5 + $0x120] sm:$0xff]
    %v142 = vld [vmem:[#allocation5 + $0x128] sm:$0xff]
    %v143 = vld [vmem:[#allocation5 + $0x130] sm:$0xff]
    %v144 = vld [vmem:[#allocation5 + $0x138] sm:$0xff]
    %v145 = vld [vmem:[#allocation5 + $0x140] sm:$0xff]
    %v146 = vld [vmem:[#allocation5 + $0x148] sm:$0xff]
    %v147 = vld [vmem:[#allocation5 + $0x150] sm:$0xff]
    %v148 = vld [vmem:[#allocation5 + $0x158] sm:$0xff]
    %v149 = vld [vmem:[#allocation5 + $0x160] sm:$0xff]
    %v150 = vld [vmem:[#allocation5 + $0x168] sm:$0xff]
    %v151 = vld [vmem:[#allocation5 + $0x170] sm:$0xff]
    %v152 = vld [vmem:[#allocation5 + $0x178] sm:$0xff]
    %v154 = vlaneseq
    %v155 = vshrl.u32 %v154, 7
    %v156 = vsub.s32 0, %v155
    %v157 = vrot.slane %v101, %v156
    %v158 = vlaneseq
    %v159 = vshrl.u32 %v158, 7
    %v160 = vsub.s32 1, %v159
    %v161 = vrot.slane %v101, %v160
    %v162 = vlaneseq
    %v163 = vshrl.u32 %v162, 7
    %v164 = vsub.s32 2, %v163
    %v165 = vrot.slane %v101, %v164
    %169 = vmatprep.subr.mxu0 %v106
    %170 = vmatpush1.msra.mxu0 %v105
    %171 = vmatprep.subr.mxu0 %v109
    %172 = vmatpush1.msra.mxu0 %v108
    %173 = vmatprep.subr.mxu0 %v112
    %174 = vmatpush1.msra.mxu0 %v111
    %175 = vmatprep.subr.mxu0 %v115
    %176 = vmatpush1.msra.mxu0 %v114
    %177 = vmatprep.subr.mxu0 %v118
    %178 = vmatpush1.msra.mxu0 %v117
    %179 = vmatprep.subr.mxu0 %v121
    %180 = vmatpush1.msra.mxu0 %v120
    %181 = vmatprep.subr.mxu0 %v124
    %182 = vmatpush1.msra.mxu0 %v123
    %183 = vmatprep.subr.mxu0 %v127
    %184 = vmatpush1.msra.mxu0 %v126
    %185 = vmatprep.subr.mxu0 %v130
    %186 = vmatpush1.msra.mxu0 %v129
    %187 = vmatprep.subr.mxu0 %v133
    %188 = vmatpush1.msra.mxu0 %v132
    %189 = vmatprep.subr.mxu0 %v136
    %190 = vmatpush1.msra.mxu0 %v135
    %191 = vmatprep.subr.mxu0 %v139
    %192 = vmatpush1.msra.mxu0 %v138
    %193 = vmatprep.subr.mxu0 %v142
    %194 = vmatpush1.msra.mxu0 %v141
    %195 = vmatprep.subr.mxu0 %v145
    %196 = vmatpush1.msra.mxu0 %v144
    %197 = vmatprep.subr.mxu0 %v148
    %198 = vmatpush1.msra.mxu0 %v147
    %199 = vmatprep.subr.mxu0 %v151
    %200 = vmatpush1.msra.mxu0 %v150
    %201 = vmatprep.subr.mxu0 0.0
    %202 = vmatpush1.msra.mxu0 0.0
    %203 = vmatprep.subr.mxu0 0.0
    %204 = vmatpush1.msra.mxu0 0.0
    %205 = vmatprep.subr.mxu0 0.0
    %206 = vmatpush1.msra.mxu0 0.0
    %207 = vmatprep.subr.mxu0 0.0
    %208 = vmatpush1.msra.mxu0 0.0
    %209 = vmatprep.subr.mxu0 0.0
    %210 = vmatpush1.msra.mxu0 0.0
    %211 = vmatprep.subr.mxu0 0.0
    %212 = vmatpush1.msra.mxu0 0.0
    %213 = vmatprep.subr.mxu0 0.0
    %214 = vmatpush1.msra.mxu0 0.0
    %215 = vmatprep.subr.mxu0 0.0
    %216 = vmatpush1.msra.mxu0 0.0
    %217 = vmatprep.subr.mxu0 0.0
    %218 = vmatpush1.msra.mxu0 0.0
    %219 = vmatprep.subr.mxu0 0.0
    %220 = vmatpush1.msra.mxu0 0.0
    %221 = vmatprep.subr.mxu0 0.0
    %222 = vmatpush1.msra.mxu0 0.0
    %223 = vmatprep.subr.mxu0 0.0
    %224 = vmatpush1.msra.mxu0 0.0
    %225 = vmatprep.subr.mxu0 0.0
    %226 = vmatpush1.msra.mxu0 0.0
    %227 = vmatprep.subr.mxu0 0.0
    %228 = vmatpush1.msra.mxu0 0.0
    %229 = vmatprep.subr.mxu0 0.0
    %230 = vmatpush1.msra.mxu0 0.0
    %231 = vmatprep.subr.mxu0 0.0
    %232 = vmatpush1.msra.mxu0 0.0
    %233 = vmatprep.mubr.f32.mxu0 0.0
    %234 = vmatmul.mubr.f32.gmra.mrb[0].mxu0 0.0
    %v235 = vpop.f32.mrb[0].mxu0
    %v236 = vadd.f32 %v157, %v235
    %v237 = vpop.f32.mrb[0].mxu0
    %v238 = vadd.f32 %v161, %v237
    %239 = vdwg.mxu0
    %240 = vmatprep.subr.mxu0 0.0
    %241 = vmatpush1.msra.mxu0 %v107
    %242 = vmatprep.subr.mxu0 0.0
    %243 = vmatpush1.msra.mxu0 %v110
    %244 = vmatprep.subr.mxu0 0.0
    %245 = vmatpush1.msra.mxu0 %v113
    %246 = vmatprep.subr.mxu0 0.0
    %247 = vmatpush1.msra.mxu0 %v116
    %248 = vmatprep.subr.mxu0 0.0
    %249 = vmatpush1.msra.mxu0 %v119
    %250 = vmatprep.subr.mxu0 0.0
    %251 = vmatpush1.msra.mxu0 %v122
    %252 = vmatprep.subr.mxu0 0.0
    %253 = vmatpush1.msra.mxu0 %v125
    %254 = vmatprep.subr.mxu0 0.0
    %255 = vmatpush1.msra.mxu0 %v128
    %256 = vmatprep.subr.mxu0 0.0
    %257 = vmatpush1.msra.mxu0 %v131
    %258 = vmatprep.subr.mxu0 0.0
    %259 = vmatpush1.msra.mxu0 %v134
    %260 = vmatprep.subr.mxu0 0.0
    %261 = vmatpush1.msra.mxu0 %v137
    %262 = vmatprep.subr.mxu0 0.0
    %263 = vmatpush1.msra.mxu0 %v140
    %264 = vmatprep.subr.mxu0 0.0
    %265 = vmatpush1.msra.mxu0 %v143
    %266 = vmatprep.subr.mxu0 0.0
    %267 = vmatpush1.msra.mxu0 %v146
    %268 = vmatprep.subr.mxu0 0.0
    %269 = vmatpush1.msra.mxu0 %v149
    %270 = vmatprep.subr.mxu0 0.0
    %271 = vmatpush1.msra.mxu0 %v152
    %272 = vmatprep.subr.mxu0 0.0
    %273 = vmatpush1.msra.mxu0 0.0
    %274 = vmatprep.subr.mxu0 0.0
    %275 = vmatpush1.msra.mxu0 0.0
    %276 = vmatprep.subr.mxu0 0.0
    %277 = vmatpush1.msra.mxu0 0.0
    %278 = vmatprep.subr.mxu0 0.0
    %279 = vmatpush1.msra.mxu0 0.0
    %280 = vmatprep.subr.mxu0 0.0
    %281 = vmatpush1.msra.mxu0 0.0
    %282 = vmatprep.subr.mxu0 0.0
    %283 = vmatpush1.msra.mxu0 0.0
    %284 = vmatprep.subr.mxu0 0.0
    %285 = vmatpush1.msra.mxu0 0.0
    %286 = vmatprep.subr.mxu0 0.0
    %287 = vmatpush1.msra.mxu0 0.0
    %288 = vmatprep.subr.mxu0 0.0
    %289 = vmatpush1.msra.mxu0 0.0
    %290 = vmatprep.subr.mxu0 0.0
    %291 = vmatpush1.msra.mxu0 0.0
    %292 = vmatprep.subr.mxu0 0.0
    %293 = vmatpush1.msra.mxu0 0.0
    %294 = vmatprep.subr.mxu0 0.0
    %295 = vmatpush1.msra.mxu0 0.0
    %296 = vmatprep.subr.mxu0 0.0
    %297 = vmatpush1.msra.mxu0 0.0
    %298 = vmatprep.subr.mxu0 0.0
    %299 = vmatpush1.msra.mxu0 0.0
    %300 = vmatprep.subr.mxu0 0.0
    %301 = vmatpush1.msra.mxu0 0.0
    %302 = vmatprep.subr.mxu0 0.0
    %303 = vmatpush1.msra.mxu0 0.0
    %304 = vmatprep.mubr.f32.mxu0 0.0
    %305 = vmatmul.mubr.f32.gmra.mrb[0].mxu0 0.0
    %v306 = vpop.f32.mrb[0].mxu0
    %v307 = vadd.f32 %v165, %v306
    %v308 = vpop.f32.mrb[0].mxu0
    %309 = vdwg.mxu0
    %v310 = vadd.f32 %v104, %v236
    %v311 = vxor.u32 %v310, 2147483648
    %v312 = vmul.f32 %v311, 1.442695
    %v313 = vpow.pop %v312
    %v314 = vadd.f32 %v313, 1.0
    %v315 = vrcp.pop %v314
    %v316 = vmul.f32 1.0, %v315
    %v318 = vrot.slane %v104, 2
    %v320 = vadd.f32 %v318, %v238
    %v321 = vxor.u32 %v320, 2147483648
    %v322 = vmul.f32 %v321, 1.442695
    %v323 = vpow.pop %v322
    %v324 = vadd.f32 %v323, 1.0
    %v325 = vrcp.pop %v324
    %v326 = vmul.f32 1.0, %v325
    %v327 = vmul.f32 %v316, %v307
    %v328 = vrot.slane %v104, 4
    %v330 = vadd.f32 %v328, %v327
    %v331 = vtanh.pop %v330
    %v332 = vsub.f32 1.0, %v326
    %v333 = vmul.f32 %v332, %v331
    %v334 = vmul.f32 %v326, 0.0
    %v335 = vadd.f32 %v333, %v334
    %v336 = vld [vmem:[#allocation7] sm:$0xff]
    %v337 = vld [vmem:[#allocation7 + $0x8] sm:$0xff]
    %v338 = vld [vmem:[#allocation7 + $0x10] sm:$0xff]
    %v339 = vld [vmem:[#allocation7 + $0x18] sm:$0xff]
    %v340 = vld [vmem:[#allocation7 + $0x20] sm:$0xff]
    %v341 = vld [vmem:[#allocation7 + $0x28] sm:$0xff]
    %v342 = vld [vmem:[#allocation7 + $0x30] sm:$0xff]
    %v343 = vld [vmem:[#allocation7 + $0x38] sm:$0xff]
    %v344 = vld [vmem:[#allocation7 + $0x40] sm:$0xff]
    %v345 = vld [vmem:[#allocation7 + $0x48] sm:$0xff]
    %v346 = vld [vmem:[#allocation7 + $0x50] sm:$0xff]
    %v347 = vld [vmem:[#allocation7 + $0x58] sm:$0xff]
    %v348 = vld [vmem:[#allocation7 + $0x60] sm:$0xff]
    %v349 = vld [vmem:[#allocation7 + $0x68] sm:$0xff]
    %v350 = vld [vmem:[#allocation7 + $0x70] sm:$0xff]
    %v351 = vld [vmem:[#allocation7 + $0x78] sm:$0xff]
    %v352 = vld [vmem:[#allocation7 + $0x80] sm:$0xff]
    %v353 = vld [vmem:[#allocation7 + $0x88] sm:$0xff]
    %v354 = vld [vmem:[#allocation7 + $0x90] sm:$0xff]
    %v355 = vld [vmem:[#allocation7 + $0x98] sm:$0xff]
    %v356 = vld [vmem:[#allocation7 + $0xa0] sm:$0xff]
    %v357 = vld [vmem:[#allocation7 + $0xa8] sm:$0xff]
    %v358 = vld [vmem:[#allocation7 + $0xb0] sm:$0xff]
    %v359 = vld [vmem:[#allocation7 + $0xb8] sm:$0xff]
    %v360 = vld [vmem:[#allocation7 + $0xc0] sm:$0xff]
    %v361 = vld [vmem:[#allocation7 + $0xc8] sm:$0xff]
    %v362 = vld [vmem:[#allocation7 + $0xd0] sm:$0xff]
    %v363 = vld [vmem:[#allocation7 + $0xd8] sm:$0xff]
    %v364 = vld [vmem:[#allocation7 + $0xe0] sm:$0xff]
    %v365 = vld [vmem:[#allocation7 + $0xe8] sm:$0xff]
    %v366 = vld [vmem:[#allocation7 + $0xf0] sm:$0xff]
    %v367 = vld [vmem:[#allocation7 + $0xf8] sm:$0xff]
    %v368 = vld [vmem:[#allocation7 + $0x100] sm:$0xff]
    %v369 = vld [vmem:[#allocation7 + $0x108] sm:$0xff]
    %v370 = vld [vmem:[#allocation7 + $0x110] sm:$0xff]
    %v371 = vld [vmem:[#allocation7 + $0x118] sm:$0xff]
    %v372 = vld [vmem:[#allocation7 + $0x120] sm:$0xff]
    %v373 = vld [vmem:[#allocation7 + $0x128] sm:$0xff]
    %v374 = vld [vmem:[#allocation7 + $0x130] sm:$0xff]
    %v375 = vld [vmem:[#allocation7 + $0x138] sm:$0xff]
    %v376 = vld [vmem:[#allocation7 + $0x140] sm:$0xff]
    %v377 = vld [vmem:[#allocation7 + $0x148] sm:$0xff]
    %v378 = vld [vmem:[#allocation7 + $0x150] sm:$0xff]
    %v379 = vld [vmem:[#allocation7 + $0x158] sm:$0xff]
    %v380 = vld [vmem:[#allocation7 + $0x160] sm:$0xff]
    %v381 = vld [vmem:[#allocation7 + $0x168] sm:$0xff]
    %v382 = vld [vmem:[#allocation7 + $0x170] sm:$0xff]
    %v383 = vld [vmem:[#allocation7 + $0x178] sm:$0xff]
    %v384 = vld [vmem:[#allocation7 + $0x180] sm:$0xff]
    %v385 = vld [vmem:[#allocation7 + $0x188] sm:$0xff]
    %v386 = vld [vmem:[#allocation7 + $0x190] sm:$0xff]
    %v387 = vld [vmem:[#allocation7 + $0x198] sm:$0xff]
    %v388 = vld [vmem:[#allocation7 + $0x1a0] sm:$0xff]
    %v389 = vld [vmem:[#allocation7 + $0x1a8] sm:$0xff]
    %v390 = vld [vmem:[#allocation7 + $0x1b0] sm:$0xff]
    %v391 = vld [vmem:[#allocation7 + $0x1b8] sm:$0xff]
    %v392 = vld [vmem:[#allocation7 + $0x1c0] sm:$0xff]
    %v393 = vld [vmem:[#allocation7 + $0x1c8] sm:$0xff]
    %v394 = vld [vmem:[#allocation7 + $0x1d0] sm:$0xff]
    %v395 = vld [vmem:[#allocation7 + $0x1d8] sm:$0xff]
    %v396 = vld [vmem:[#allocation7 + $0x1e0] sm:$0xff]
    %v397 = vld [vmem:[#allocation7 + $0x1e8] sm:$0xff]
    %v398 = vld [vmem:[#allocation7 + $0x1f0] sm:$0xff]
    %v399 = vld [vmem:[#allocation7 + $0x1f8] sm:$0xff]
    %v400 = vld [vmem:[#allocation7 + $0x200] sm:$0xff]
    %v401 = vld [vmem:[#allocation7 + $0x208] sm:$0xff]
    %v402 = vld [vmem:[#allocation7 + $0x210] sm:$0xff]
    %v403 = vld [vmem:[#allocation7 + $0x218] sm:$0xff]
    %v404 = vld [vmem:[#allocation7 + $0x220] sm:$0xff]
    %v405 = vld [vmem:[#allocation7 + $0x228] sm:$0xff]
    %v406 = vld [vmem:[#allocation7 + $0x230] sm:$0xff]
    %v407 = vld [vmem:[#allocation7 + $0x238] sm:$0xff]
    %v408 = vld [vmem:[#allocation7 + $0x240] sm:$0xff]
    %v409 = vld [vmem:[#allocation7 + $0x248] sm:$0xff]
    %v410 = vld [vmem:[#allocation7 + $0x250] sm:$0xff]
    %v411 = vld [vmem:[#allocation7 + $0x258] sm:$0xff]
    %v412 = vld [vmem:[#allocation7 + $0x260] sm:$0xff]
    %v413 = vld [vmem:[#allocation7 + $0x268] sm:$0xff]
    %v414 = vld [vmem:[#allocation7 + $0x270] sm:$0xff]
    %v415 = vld [vmem:[#allocation7 + $0x278] sm:$0xff]
    %v416 = vld [vmem:[#allocation7 + $0x280] sm:$0xff]
    %v417 = vld [vmem:[#allocation7 + $0x288] sm:$0xff]
    %v418 = vld [vmem:[#allocation7 + $0x290] sm:$0xff]
    %v419 = vld [vmem:[#allocation7 + $0x298] sm:$0xff]
    %v420 = vld [vmem:[#allocation7 + $0x2a0] sm:$0xff]
    %v421 = vld [vmem:[#allocation7 + $0x2a8] sm:$0xff]
    %v422 = vld [vmem:[#allocation7 + $0x2b0] sm:$0xff]
    %v423 = vld [vmem:[#allocation7 + $0x2b8] sm:$0xff]
    %v424 = vld [vmem:[#allocation7 + $0x2c0] sm:$0xff]
    %v425 = vld [vmem:[#allocation7 + $0x2c8] sm:$0xff]
    %v426 = vld [vmem:[#allocation7 + $0x2d0] sm:$0xff]
    %v427 = vld [vmem:[#allocation7 + $0x2d8] sm:$0xff]
    %v428 = vld [vmem:[#allocation7 + $0x2e0] sm:$0xff]
    %v429 = vld [vmem:[#allocation7 + $0x2e8] sm:$0xff]
    %v430 = vld [vmem:[#allocation7 + $0x2f0] sm:$0xff]
    %v431 = vld [vmem:[#allocation7 + $0x2f8] sm:$0xff]
    %v433 = vlaneseq
    %v434 = vshrl.u32 %v433, 7
    %v435 = vsub.s32 0, %v434
    %v436 = vrot.slane %v102, %v435
    %v437 = vlaneseq
    %v438 = vshrl.u32 %v437, 7
    %v439 = vsub.s32 1, %v438
    %v440 = vrot.slane %v102, %v439
    %v441 = vlaneseq
    %v442 = vshrl.u32 %v441, 7
    %v443 = vsub.s32 2, %v442
    %v444 = vrot.slane %v102, %v443
    %448 = vmatprep.subr.mxu0 %v337
    %449 = vmatpush1.msra.mxu0 %v336
    %450 = vmatprep.subr.mxu0 %v340
    %451 = vmatpush1.msra.mxu0 %v339
    %452 = vmatprep.subr.mxu0 %v343
    %453 = vmatpush1.msra.mxu0 %v342
    %454 = vmatprep.subr.mxu0 %v346
    %455 = vmatpush1.msra.mxu0 %v345
    %456 = vmatprep.subr.mxu0 %v349
    %457 = vmatpush1.msra.mxu0 %v348
    %458 = vmatprep.subr.mxu0 %v352
    %459 = vmatpush1.msra.mxu0 %v351
    %460 = vmatprep.subr.mxu0 %v355
    %461 = vmatpush1.msra.mxu0 %v354
    %462 = vmatprep.subr.mxu0 %v358
    %463 = vmatpush1.msra.mxu0 %v357
    %464 = vmatprep.subr.mxu0 %v361
    %465 = vmatpush1.msra.mxu0 %v360
    %466 = vmatprep.subr.mxu0 %v364
    %467 = vmatpush1.msra.mxu0 %v363
    %468 = vmatprep.subr.mxu0 %v367
    %469 = vmatpush1.msra.mxu0 %v366
    %470 = vmatprep.subr.mxu0 %v370
    %471 = vmatpush1.msra.mxu0 %v369
    %472 = vmatprep.subr.mxu0 %v373
    %473 = vmatpush1.msra.mxu0 %v372
    %474 = vmatprep.subr.mxu0 %v376
    %475 = vmatpush1.msra.mxu0 %v375
    %476 = vmatprep.subr.mxu0 %v379
    %477 = vmatpush1.msra.mxu0 %v378
    %478 = vmatprep.subr.mxu0 %v382
    %479 = vmatpush1.msra.mxu0 %v381
    %480 = vmatprep.subr.mxu0 %v385
    %481 = vmatpush1.msra.mxu0 %v384
    %482 = vmatprep.subr.mxu0 %v388
    %483 = vmatpush1.msra.mxu0 %v387
    %484 = vmatprep.subr.mxu0 %v391
    %485 = vmatpush1.msra.mxu0 %v390
    %486 = vmatprep.subr.mxu0 %v394
    %487 = vmatpush1.msra.mxu0 %v393
    %488 = vmatprep.subr.mxu0 %v397
    %489 = vmatpush1.msra.mxu0 %v396
    %490 = vmatprep.subr.mxu0 %v400
    %491 = vmatpush1.msra.mxu0 %v399
    %492 = vmatprep.subr.mxu0 %v403
    %493 = vmatpush1.msra.mxu0 %v402
    %494 = vmatprep.subr.mxu0 %v406
    %495 = vmatpush1.msra.mxu0 %v405
    %496 = vmatprep.subr.mxu0 %v409
    %497 = vmatpush1.msra.mxu0 %v408
    %498 = vmatprep.subr.mxu0 %v412
    %499 = vmatpush1.msra.mxu0 %v411
    %500 = vmatprep.subr.mxu0 %v415
    %501 = vmatpush1.msra.mxu0 %v414
    %502 = vmatprep.subr.mxu0 %v418
    %503 = vmatpush1.msra.mxu0 %v417
    %504 = vmatprep.subr.mxu0 %v421
    %505 = vmatpush1.msra.mxu0 %v420
    %506 = vmatprep.subr.mxu0 %v424
    %507 = vmatpush1.msra.mxu0 %v423
    %508 = vmatprep.subr.mxu0 %v427
    %509 = vmatpush1.msra.mxu0 %v426
    %510 = vmatprep.subr.mxu0 %v430
    %511 = vmatpush1.msra.mxu0 %v429
    %512 = vmatprep.mubr.f32.mxu0 0.0
    %513 = vmatmul.mubr.f32.gmra.mrb[0].mxu0 %v335
    %v514 = vpop.f32.mrb[0].mxu0
    %v515 = vadd.f32 %v436, %v514
    %v516 = vpop.f32.mrb[0].mxu0
    %v517 = vadd.f32 %v440, %v516
    %518 = vdwg.mxu0
    %519 = vmatprep.subr.mxu0 0.0
    %520 = vmatpush1.msra.mxu0 %v338
    %521 = vmatprep.subr.mxu0 0.0
    %522 = vmatpush1.msra.mxu0 %v341
    %523 = vmatprep.subr.mxu0 0.0
    %524 = vmatpush1.msra.mxu0 %v344
    %525 = vmatprep.subr.mxu0 0.0
    %526 = vmatpush1.msra.mxu0 %v347
    %527 = vmatprep.subr.mxu0 0.0
    %528 = vmatpush1.msra.mxu0 %v350
    %529 = vmatprep.subr.mxu0 0.0
    %530 = vmatpush1.msra.mxu0 %v353
    %531 = vmatprep.subr.mxu0 0.0
    %532 = vmatpush1.msra.mxu0 %v356
    %533 = vmatprep.subr.mxu0 0.0
    %534 = vmatpush1.msra.mxu0 %v359
    %535 = vmatprep.subr.mxu0 0.0
    %536 = vmatpush1.msra.mxu0 %v362
    %537 = vmatprep.subr.mxu0 0.0
    %538 = vmatpush1.msra.mxu0 %v365
    %539 = vmatprep.subr.mxu0 0.0
    %540 = vmatpush1.msra.mxu0 %v368
    %541 = vmatprep.subr.mxu0 0.0
    %542 = vmatpush1.msra.mxu0 %v371
    %543 = vmatprep.subr.mxu0 0.0
    %544 = vmatpush1.msra.mxu0 %v374
    %545 = vmatprep.subr.mxu0 0.0
    %546 = vmatpush1.msra.mxu0 %v377
    %547 = vmatprep.subr.mxu0 0.0
    %548 = vmatpush1.msra.mxu0 %v380
    %549 = vmatprep.subr.mxu0 0.0
    %550 = vmatpush1.msra.mxu0 %v383
    %551 = vmatprep.subr.mxu0 0.0
    %552 = vmatpush1.msra.mxu0 %v386
    %553 = vmatprep.subr.mxu0 0.0
    %554 = vmatpush1.msra.mxu0 %v389
    %555 = vmatprep.subr.mxu0 0.0
    %556 = vmatpush1.msra.mxu0 %v392
    %557 = vmatprep.subr.mxu0 0.0
    %558 = vmatpush1.msra.mxu0 %v395
    %559 = vmatprep.subr.mxu0 0.0
    %560 = vmatpush1.msra.mxu0 %v398
    %561 = vmatprep.subr.mxu0 0.0
    %562 = vmatpush1.msra.mxu0 %v401
    %563 = vmatprep.subr.mxu0 0.0
    %564 = vmatpush1.msra.mxu0 %v404
    %565 = vmatprep.subr.mxu0 0.0
    %566 = vmatpush1.msra.mxu0 %v407
    %567 = vmatprep.subr.mxu0 0.0
    %568 = vmatpush1.msra.mxu0 %v410
    %569 = vmatprep.subr.mxu0 0.0
    %570 = vmatpush1.msra.mxu0 %v413
    %571 = vmatprep.subr.mxu0 0.0
    %572 = vmatpush1.msra.mxu0 %v416
    %573 = vmatprep.subr.mxu0 0.0
    %574 = vmatpush1.msra.mxu0 %v419
    %575 = vmatprep.subr.mxu0 0.0
    %576 = vmatpush1.msra.mxu0 %v422
    %577 = vmatprep.subr.mxu0 0.0
    %578 = vmatpush1.msra.mxu0 %v425
    %579 = vmatprep.subr.mxu0 0.0
    %580 = vmatpush1.msra.mxu0 %v428
    %581 = vmatprep.subr.mxu0 0.0
    %582 = vmatpush1.msra.mxu0 %v431
    %583 = vmatprep.mubr.f32.mxu0 0.0
    %584 = vmatmul.mubr.f32.gmra.mrb[0].mxu0 %v335
    %v585 = vpop.f32.mrb[0].mxu0
    %v586 = vadd.f32 %v444, %v585
    %v587 = vpop.f32.mrb[0].mxu0
    %588 = vdwg.mxu0
    %v589 = vld [vmem:[#allocation8] sm:$0xff]
    %v590 = vld [vmem:[#allocation8 + $0x8] sm:$0xff]
    %v591 = vld [vmem:[#allocation8 + $0x10] sm:$0xff]
    %v592 = vld [vmem:[#allocation8 + $0x18] sm:$0xff]
    %v593 = vld [vmem:[#allocation8 + $0x20] sm:$0xff]
    %v594 = vld [vmem:[#allocation8 + $0x28] sm:$0xff]
    %v595 = vld [vmem:[#allocation8 + $0x30] sm:$0xff]
    %v596 = vld [vmem:[#allocation8 + $0x38] sm:$0xff]
    %v597 = vld [vmem:[#allocation8 + $0x40] sm:$0xff]
    %v598 = vld [vmem:[#allocation8 + $0x48] sm:$0xff]
    %v599 = vld [vmem:[#allocation8 + $0x50] sm:$0xff]
    %v600 = vld [vmem:[#allocation8 + $0x58] sm:$0xff]
    %v601 = vld [vmem:[#allocation8 + $0x60] sm:$0xff]
    %v602 = vld [vmem:[#allocation8 + $0x68] sm:$0xff]
    %v603 = vld [vmem:[#allocation8 + $0x70] sm:$0xff]
    %v604 = vld [vmem:[#allocation8 + $0x78] sm:$0xff]
    %v606 = vlaneseq
    %v607 = vshrl.u32 %v606, 7
    %v608 = vsub.s32 0, %v607
    %v609 = vrot.slane %v103, %v608
    %611 = vmatprep.subr.mxu0 0.0
    %612 = vmatpush1.msra.mxu0 %v589
    %613 = vmatprep.subr.mxu0 0.0
    %614 = vmatpush1.msra.mxu0 %v590
    %615 = vmatprep.subr.mxu0 0.0
    %616 = vmatpush1.msra.mxu0 %v591
    %617 = vmatprep.subr.mxu0 0.0
    %618 = vmatpush1.msra.mxu0 %v592
    %619 = vmatprep.subr.mxu0 0.0
    %620 = vmatpush1.msra.mxu0 %v593
    %621 = vmatprep.subr.mxu0 0.0
    %622 = vmatpush1.msra.mxu0 %v594
    %623 = vmatprep.subr.mxu0 0.0
    %624 = vmatpush1.msra.mxu0 %v595
    %625 = vmatprep.subr.mxu0 0.0
    %626 = vmatpush1.msra.mxu0 %v596
    %627 = vmatprep.subr.mxu0 0.0
    %628 = vmatpush1.msra.mxu0 %v597
    %629 = vmatprep.subr.mxu0 0.0
    %630 = vmatpush1.msra.mxu0 %v598
    %631 = vmatprep.subr.mxu0 0.0
    %632 = vmatpush1.msra.mxu0 %v599
    %633 = vmatprep.subr.mxu0 0.0
    %634 = vmatpush1.msra.mxu0 %v600
    %635 = vmatprep.subr.mxu0 0.0
    %636 = vmatpush1.msra.mxu0 %v601
    %637 = vmatprep.subr.mxu0 0.0
    %638 = vmatpush1.msra.mxu0 %v602
    %639 = vmatprep.subr.mxu0 0.0
    %640 = vmatpush1.msra.mxu0 %v603
    %641 = vmatprep.subr.mxu0 0.0
    %642 = vmatpush1.msra.mxu0 %v604
    %643 = vmatprep.subr.mxu0 0.0
    %644 = vmatpush1.msra.mxu0 0.0
    %645 = vmatprep.subr.mxu0 0.0
    %646 = vmatpush1.msra.mxu0 0.0
    %647 = vmatprep.subr.mxu0 0.0
    %648 = vmatpush1.msra.mxu0 0.0
    %649 = vmatprep.subr.mxu0 0.0
    %650 = vmatpush1.msra.mxu0 0.0
    %651 = vmatprep.subr.mxu0 0.0
    %652 = vmatpush1.msra.mxu0 0.0
    %653 = vmatprep.subr.mxu0 0.0
    %654 = vmatpush1.msra.mxu0 0.0
    %655 = vmatprep.subr.mxu0 0.0
    %656 = vmatpush1.msra.mxu0 0.0
    %657 = vmatprep.subr.mxu0 0.0
    %658 = vmatpush1.msra.mxu0 0.0
    %659 = vmatprep.subr.mxu0 0.0
    %660 = vmatpush1.msra.mxu0 0.0
    %661 = vmatprep.subr.mxu0 0.0
    %662 = vmatpush1.msra.mxu0 0.0
    %663 = vmatprep.subr.mxu0 0.0
    %664 = vmatpush1.msra.mxu0 0.0
    %665 = vmatprep.subr.mxu0 0.0
    %666 = vmatpush1.msra.mxu0 0.0
    %667 = vmatprep.subr.mxu0 0.0
    %668 = vmatpush1.msra.mxu0 0.0
    %669 = vmatprep.subr.mxu0 0.0
    %670 = vmatpush1.msra.mxu0 0.0
    %671 = vmatprep.subr.mxu0 0.0
    %672 = vmatpush1.msra.mxu0 0.0
    %673 = vmatprep.subr.mxu0 0.0
    %674 = vmatpush1.msra.mxu0 0.0
    %675 = vmatprep.mubr.f32.mxu0 0.0
    %676 = vmatmul.mubr.f32.gmra.mrb[0].mxu0 0.0
    %v677 = vpop.f32.mrb[0].mxu0
    %v678 = vadd.f32 %v609, %v677
    %v679 = vpop.f32.mrb[0].mxu0
    %680 = vdwg.mxu0
    %v681 = vxor.u32 %v515, 2147483648
    %v682 = vmul.f32 %v681, 1.442695
    %v683 = vpow.pop %v682
    %v684 = vadd.f32 %v683, 1.0
    %v685 = vrcp.pop %v684
    %v686 = vmul.f32 1.0, %v685
    %v687 = vxor.u32 %v517, 2147483648
    %v688 = vmul.f32 %v687, 1.442695
    %v689 = vpow.pop %v688
    %v690 = vadd.f32 %v689, 1.0
    %v691 = vrcp.pop %v690
    %v692 = vmul.f32 1.0, %v691
    %v693 = vsub.f32 %v586, %v678
    %v694 = vmul.f32 %v686, %v678
    %v695 = vadd.f32 %v693, %v694
    %v696 = vtanh.pop %v695
    %v697 = vsub.f32 1.0, %v692
    %v698 = vmul.f32 %v697, %v696
    %v699 = vmul.f32 %v692, 0.0
    %v700 = vadd.f32 %v698, %v699
    %s701 = scalar_lea.vmem [#allocation2], 6
    %v702 = vld [vmem:[%s701] sm:$0x3f]
    %703 = vmatprep.subr.mxu0 %v106
    %704 = vmatpush1.msra.mxu0 %v105
    %705 = vmatprep.subr.mxu0 %v109
    %706 = vmatpush1.msra.mxu0 %v108
    %707 = vmatprep.subr.mxu0 %v112
    %708 = vmatpush1.msra.mxu0 %v111
    %709 = vmatprep.subr.mxu0 %v115
    %710 = vmatpush1.msra.mxu0 %v114
    %711 = vmatprep.subr.mxu0 %v118
    %712 = vmatpush1.msra.mxu0 %v117
    %713 = vmatprep.subr.mxu0 %v121
    %714 = vmatpush1.msra.mxu0 %v120
    %715 = vmatprep.subr.mxu0 %v124
    %716 = vmatpush1.msra.mxu0 %v123
    %717 = vmatprep.subr.mxu0 %v127
    %718 = vmatpush1.msra.mxu0 %v126
    %719 = vmatprep.subr.mxu0 %v130
    %720 = vmatpush1.msra.mxu0 %v129
    %721 = vmatprep.subr.mxu0 %v133
    %722 = vmatpush1.msra.mxu0 %v132
    %723 = vmatprep.subr.mxu0 %v136
    %724 = vmatpush1.msra.mxu0 %v135
    %725 = vmatprep.subr.mxu0 %v139
    %726 = vmatpush1.msra.mxu0 %v138
    %727 = vmatprep.subr.mxu0 %v142
    %728 = vmatpush1.msra.mxu0 %v141
    %729 = vmatprep.subr.mxu0 %v145
    %730 = vmatpush1.msra.mxu0 %v144
    %731 = vmatprep.subr.mxu0 %v148
    %732 = vmatpush1.msra.mxu0 %v147
    %733 = vmatprep.subr.mxu0 %v151
    %734 = vmatpush1.msra.mxu0 %v150
    %735 = vmatprep.subr.mxu0 0.0
    %736 = vmatpush1.msra.mxu0 0.0
    %737 = vmatprep.subr.mxu0 0.0
    %738 = vmatpush1.msra.mxu0 0.0
    %739 = vmatprep.subr.mxu0 0.0
    %740 = vmatpush1.msra.mxu0 0.0
    %741 = vmatprep.subr.mxu0 0.0
    %742 = vmatpush1.msra.mxu0 0.0
    %743 = vmatprep.subr.mxu0 0.0
    %744 = vmatpush1.msra.mxu0 0.0
    %745 = vmatprep.subr.mxu0 0.0
    %746 = vmatpush1.msra.mxu0 0.0
    %747 = vmatprep.subr.mxu0 0.0
    %748 = vmatpush1.msra.mxu0 0.0
    %749 = vmatprep.subr.mxu0 0.0
    %750 = vmatpush1.msra.mxu0 0.0
    %751 = vmatprep.subr.mxu0 0.0
    %752 = vmatpush1.msra.mxu0 0.0
    %753 = vmatprep.subr.mxu0 0.0
    %754 = vmatpush1.msra.mxu0 0.0
    %755 = vmatprep.subr.mxu0 0.0
    %756 = vmatpush1.msra.mxu0 0.0
    %757 = vmatprep.subr.mxu0 0.0
    %758 = vmatpush1.msra.mxu0 0.0
    %759 = vmatprep.subr.mxu0 0.0
    %760 = vmatpush1.msra.mxu0 0.0
    %761 = vmatprep.subr.mxu0 0.0
    %762 = vmatpush1.msra.mxu0 0.0
    %763 = vmatprep.subr.mxu0 0.0
    %764 = vmatpush1.msra.mxu0 0.0
    %765 = vmatprep.subr.mxu0 0.0
    %766 = vmatpush1.msra.mxu0 0.0
    %767 = vmatprep.mubr.f32.mxu0 0.0
    %768 = vmatmul.mubr.f32.gmra.mrb[0].mxu0 %v335
    %v769 = vpop.f32.mrb[0].mxu0
    %v770 = vadd.f32 %v157, %v769
    %v771 = vpop.f32.mrb[0].mxu0
    %v772 = vadd.f32 %v161, %v771
    %773 = vdwg.mxu0
    %774 = vmatprep.subr.mxu0 0.0
    %775 = vmatpush1.msra.mxu0 %v107
    %776 = vmatprep.subr.mxu0 0.0
    %777 = vmatpush1.msra.mxu0 %v110
    %778 = vmatprep.subr.mxu0 0.0
    %779 = vmatpush1.msra.mxu0 %v113
    %780 = vmatprep.subr.mxu0 0.0
    %781 = vmatpush1.msra.mxu0 %v116
    %782 = vmatprep.subr.mxu0 0.0
    %783 = vmatpush1.msra.mxu0 %v119
    %784 = vmatprep.subr.mxu0 0.0
    %785 = vmatpush1.msra.mxu0 %v122
    %786 = vmatprep.subr.mxu0 0.0
    %787 = vmatpush1.msra.mxu0 %v125
    %788 = vmatprep.subr.mxu0 0.0
    %789 = vmatpush1.msra.mxu0 %v128
    %790 = vmatprep.subr.mxu0 0.0
    %791 = vmatpush1.msra.mxu0 %v131
    %792 = vmatprep.subr.mxu0 0.0
    %793 = vmatpush1.msra.mxu0 %v134
    %794 = vmatprep.subr.mxu0 0.0
    %795 = vmatpush1.msra.mxu0 %v137
    %796 = vmatprep.subr.mxu0 0.0
    %797 = vmatpush1.msra.mxu0 %v140
    %798 = vmatprep.subr.mxu0 0.0
    %799 = vmatpush1.msra.mxu0 %v143
    %800 = vmatprep.subr.mxu0 0.0
    %801 = vmatpush1.msra.mxu0 %v146
    %802 = vmatprep.subr.mxu0 0.0
    %803 = vmatpush1.msra.mxu0 %v149
    %804 = vmatprep.subr.mxu0 0.0
    %805 = vmatpush1.msra.mxu0 %v152
    %806 = vmatprep.subr.mxu0 0.0
    %807 = vmatpush1.msra.mxu0 0.0
    %808 = vmatprep.subr.mxu0 0.0
    %809 = vmatpush1.msra.mxu0 0.0
    %810 = vmatprep.subr.mxu0 0.0
    %811 = vmatpush1.msra.mxu0 0.0
    %812 = vmatprep.subr.mxu0 0.0
    %813 = vmatpush1.msra.mxu0 0.0
    %814 = vmatprep.subr.mxu0 0.0
    %815 = vmatpush1.msra.mxu0 0.0
    %816 = vmatprep.subr.mxu0 0.0
    %817 = vmatpush1.msra.mxu0 0.0
    %818 = vmatprep.subr.mxu0 0.0
    %819 = vmatpush1.msra.mxu0 0.0
    %820 = vmatprep.subr.mxu0 0.0
    %821 = vmatpush1.msra.mxu0 0.0
    %822 = vmatprep.subr.mxu0 0.0
    %823 = vmatpush1.msra.mxu0 0.0
    %824 = vmatprep.subr.mxu0 0.0
    %825 = vmatpush1.msra.mxu0 0.0
    %826 = vmatprep.subr.mxu0 0.0
    %827 = vmatpush1.msra.mxu0 0.0
    %828 = vmatprep.subr.mxu0 0.0
    %829 = vmatpush1.msra.mxu0 0.0
    %830 = vmatprep.subr.mxu0 0.0
    %831 = vmatpush1.msra.mxu0 0.0
    %832 = vmatprep.subr.mxu0 0.0
    %833 = vmatpush1.msra.mxu0 0.0
    %834 = vmatprep.subr.mxu0 0.0
    %835 = vmatpush1.msra.mxu0 0.0
    %836 = vmatprep.subr.mxu0 0.0
    %837 = vmatpush1.msra.mxu0 0.0
    %838 = vmatprep.mubr.f32.mxu0 0.0
    %839 = vmatmul.mubr.f32.gmra.mrb[0].mxu0 %v335
    %v840 = vpop.f32.mrb[0].mxu0
    %v841 = vadd.f32 %v165, %v840
    %v842 = vpop.f32.mrb[0].mxu0
    %843 = vdwg.mxu0
    %v844 = vadd.f32 %v702, %v770
    %v845 = vxor.u32 %v844, 2147483648
    %v846 = vmul.f32 %v845, 1.442695
    %v847 = vpow.pop %v846
    %v848 = vadd.f32 %v847, 1.0
    %v849 = vrcp.pop %v848
    %v850 = vmul.f32 1.0, %v849
    %v852 = vrot.slane %v702, 2
    %v854 = vadd.f32 %v852, %v772
    %v855 = vxor.u32 %v854, 2147483648
    %v856 = vmul.f32 %v855, 1.442695
    %v857 = vpow.pop %v856
    %v858 = vadd.f32 %v857, 1.0
    %v859 = vrcp.pop %v858
    %v860 = vmul.f32 1.0, %v859
    %v861 = vmul.f32 %v850, %v841
    %v862 = vrot.slane %v702, 4
    %v864 = vadd.f32 %v862, %v861
    %v865 = vtanh.pop %v864
    %v866 = vsub.f32 1.0, %v860
    %v867 = vmul.f32 %v866, %v865
    %v868 = vmul.f32 %v860, %v335
    %v869 = vadd.f32 %v867, %v868
    %870 = vmatprep.subr.mxu0 %v337
    %871 = vmatpush1.msra.mxu0 %v336
    %872 = vmatprep.subr.mxu0 %v340
    %873 = vmatpush1.msra.mxu0 %v339
    %874 = vmatprep.subr.mxu0 %v343
    %875 = vmatpush1.msra.mxu0 %v342
    %876 = vmatprep.subr.mxu0 %v346
    %877 = vmatpush1.msra.mxu0 %v345
    %878 = vmatprep.subr.mxu0 %v349
    %879 = vmatpush1.msra.mxu0 %v348
    %880 = vmatprep.subr.mxu0 %v352
    %881 = vmatpush1.msra.mxu0 %v351
    %882 = vmatprep.subr.mxu0 %v355
    %883 = vmatpush1.msra.mxu0 %v354
    %884 = vmatprep.subr.mxu0 %v358
    %885 = vmatpush1.msra.mxu0 %v357
    %886 = vmatprep.subr.mxu0 %v361
    %887 = vmatpush1.msra.mxu0 %v360
    %888 = vmatprep.subr.mxu0 %v364
    %889 = vmatpush1.msra.mxu0 %v363
    %890 = vmatprep.subr.mxu0 %v367
    %891 = vmatpush1.msra.mxu0 %v366
    %892 = vmatprep.subr.mxu0 %v370
    %893 = vmatpush1.msra.mxu0 %v369
    %894 = vmatprep.subr.mxu0 %v373
    %895 = vmatpush1.msra.mxu0 %v372
    %896 = vmatprep.subr.mxu0 %v376
    %897 = vmatpush1.msra.mxu0 %v375
    %898 = vmatprep.subr.mxu0 %v379
    %899 = vmatpush1.msra.mxu0 %v378
    %900 = vmatprep.subr.mxu0 %v382
    %901 = vmatpush1.msra.mxu0 %v381
    %902 = vmatprep.subr.mxu0 %v385
    %903 = vmatpush1.msra.mxu0 %v384
    %904 = vmatprep.subr.mxu0 %v388
    %905 = vmatpush1.msra.mxu0 %v387
    %906 = vmatprep.subr.mxu0 %v391
    %907 = vmatpush1.msra.mxu0 %v390
    %908 = vmatprep.subr.mxu0 %v394
    %909 = vmatpush1.msra.mxu0 %v393
    %910 = vmatprep.subr.mxu0 %v397
    %911 = vmatpush1.msra.mxu0 %v396
    %912 = vmatprep.subr.mxu0 %v400
    %913 = vmatpush1.msra.mxu0 %v399
    %914 = vmatprep.subr.mxu0 %v403
    %915 = vmatpush1.msra.mxu0 %v402
    %916 = vmatprep.subr.mxu0 %v406
    %917 = vmatpush1.msra.mxu0 %v405
    %918 = vmatprep.subr.mxu0 %v409
    %919 = vmatpush1.msra.mxu0 %v408
    %920 = vmatprep.subr.mxu0 %v412
    %921 = vmatpush1.msra.mxu0 %v411
    %922 = vmatprep.subr.mxu0 %v415
    %923 = vmatpush1.msra.mxu0 %v414
    %924 = vmatprep.subr.mxu0 %v418
    %925 = vmatpush1.msra.mxu0 %v417
    %926 = vmatprep.subr.mxu0 %v421
    %927 = vmatpush1.msra.mxu0 %v420
    %928 = vmatprep.subr.mxu0 %v424
    %929 = vmatpush1.msra.mxu0 %v423
    %930 = vmatprep.subr.mxu0 %v427
    %931 = vmatpush1.msra.mxu0 %v426
    %932 = vmatprep.subr.mxu0 %v430
    %933 = vmatpush1.msra.mxu0 %v429
    %934 = vmatprep.mubr.f32.mxu0 %v700
    %935 = vmatmul.mubr.f32.gmra.mrb[0].mxu0 %v869
    %v936 = vpop.f32.mrb[0].mxu0
    %v937 = vadd.f32 %v436, %v936
    %v938 = vpop.f32.mrb[0].mxu0
    %v939 = vadd.f32 %v440, %v938
    %940 = vdwg.mxu0
    %941 = vmatprep.subr.mxu0 0.0
    %942 = vmatpush1.msra.mxu0 %v338
    %943 = vmatprep.subr.mxu0 0.0
    %944 = vmatpush1.msra.mxu0 %v341
    %945 = vmatprep.subr.mxu0 0.0
    %946 = vmatpush1.msra.mxu0 %v344
    %947 = vmatprep.subr.mxu0 0.0
    %948 = vmatpush1.msra.mxu0 %v347
    %949 = vmatprep.subr.mxu0 0.0
    %950 = vmatpush1.msra.mxu0 %v350
    %951 = vmatprep.subr.mxu0 0.0
    %952 = vmatpush1.msra.mxu0 %v353
    %953 = vmatprep.subr.mxu0 0.0
    %954 = vmatpush1.msra.mxu0 %v356
    %955 = vmatprep.subr.mxu0 0.0
    %956 = vmatpush1.msra.mxu0 %v359
    %957 = vmatprep.subr.mxu0 0.0
    %958 = vmatpush1.msra.mxu0 %v362
    %959 = vmatprep.subr.mxu0 0.0
    %960 = vmatpush1.msra.mxu0 %v365
    %961 = vmatprep.subr.mxu0 0.0
    %962 = vmatpush1.msra.mxu0 %v368
    %963 = vmatprep.subr.mxu0 0.0
    %964 = vmatpush1.msra.mxu0 %v371
    %965 = vmatprep.subr.mxu0 0.0
    %966 = vmatpush1.msra.mxu0 %v374
    %967 = vmatprep.subr.mxu0 0.0
    %968 = vmatpush1.msra.mxu0 %v377
    %969 = vmatprep.subr.mxu0 0.0
    %970 = vmatpush1.msra.mxu0 %v380
    %971 = vmatprep.subr.mxu0 0.0
    %972 = vmatpush1.msra.mxu0 %v383
    %973 = vmatprep.subr.mxu0 0.0
    %974 = vmatpush1.msra.mxu0 %v386
    %975 = vmatprep.subr.mxu0 0.0
    %976 = vmatpush1.msra.mxu0 %v389
    %977 = vmatprep.subr.mxu0 0.0
    %978 = vmatpush1.msra.mxu0 %v392
    %979 = vmatprep.subr.mxu0 0.0
    %980 = vmatpush1.msra.mxu0 %v395
    %981 = vmatprep.subr.mxu0 0.0
    %982 = vmatpush1.msra.mxu0 %v398
    %983 = vmatprep.subr.mxu0 0.0
    %984 = vmatpush1.msra.mxu0 %v401
    %985 = vmatprep.subr.mxu0 0.0
    %986 = vmatpush1.msra.mxu0 %v404
    %987 = vmatprep.subr.mxu0 0.0
    %988 = vmatpush1.msra.mxu0 %v407
    %989 = vmatprep.subr.mxu0 0.0
    %990 = vmatpush1.msra.mxu0 %v410
    %991 = vmatprep.subr.mxu0 0.0
    %992 = vmatpush1.msra.mxu0 %v413
    %993 = vmatprep.subr.mxu0 0.0
    %994 = vmatpush1.msra.mxu0 %v416
    %995 = vmatprep.subr.mxu0 0.0
    %996 = vmatpush1.msra.mxu0 %v419
    %997 = vmatprep.subr.mxu0 0.0
    %998 = vmatpush1.msra.mxu0 %v422
    %999 = vmatprep.subr.mxu0 0.0
    %1000 = vmatpush1.msra.mxu0 %v425
    %1001 = vmatprep.subr.mxu0 0.0
    %1002 = vmatpush1.msra.mxu0 %v428
    %1003 = vmatprep.subr.mxu0 0.0
    %1004 = vmatpush1.msra.mxu0 %v431
    %1005 = vmatprep.mubr.f32.mxu0 %v700
    %1006 = vmatmul.mubr.f32.gmra.mrb[0].mxu0 %v869
    %v1007 = vpop.f32.mrb[0].mxu0
    %v1008 = vadd.f32 %v444, %v1007
    %v1009 = vpop.f32.mrb[0].mxu0
    %1010 = vdwg.mxu0
    %1011 = vmatprep.subr.mxu0 0.0
    %1012 = vmatpush1.msra.mxu0 %v589
    %1013 = vmatprep.subr.mxu0 0.0
    %1014 = vmatpush1.msra.mxu0 %v590
    %1015 = vmatprep.subr.mxu0 0.0
    %1016 = vmatpush1.msra.mxu0 %v591
    %1017 = vmatprep.subr.mxu0 0.0
    %1018 = vmatpush1.msra.mxu0 %v592
    %1019 = vmatprep.subr.mxu0 0.0
    %1020 = vmatpush1.msra.mxu0 %v593
    %1021 = vmatprep.subr.mxu0 0.0
    %1022 = vmatpush1.msra.mxu0 %v594
    %1023 = vmatprep.subr.mxu0 0.0
    %1024 = vmatpush1.msra.mxu0 %v595
    %1025 = vmatprep.subr.mxu0 0.0
    %1026 = vmatpush1.msra.mxu0 %v596
    %1027 = vmatprep.subr.mxu0 0.0
    %1028 = vmatpush1.msra.mxu0 %v597
    %1029 = vmatprep.subr.mxu0 0.0
    %1030 = vmatpush1.msra.mxu0 %v598
    %1031 = vmatprep.subr.mxu0 0.0
    %1032 = vmatpush1.msra.mxu0 %v599
    %1033 = vmatprep.subr.mxu0 0.0
    %1034 = vmatpush1.msra.mxu0 %v600
    %1035 = vmatprep.subr.mxu0 0.0
    %1036 = vmatpush1.msra.mxu0 %v601
    %1037 = vmatprep.subr.mxu0 0.0
    %1038 = vmatpush1.msra.mxu0 %v602
    %1039 = vmatprep.subr.mxu0 0.0
    %1040 = vmatpush1.msra.mxu0 %v603
    %1041 = vmatprep.subr.mxu0 0.0
    %1042 = vmatpush1.msra.mxu0 %v604
    %1043 = vmatprep.subr.mxu0 0.0
    %1044 = vmatpush1.msra.mxu0 0.0
    %1045 = vmatprep.subr.mxu0 0.0
    %1046 = vmatpush1.msra.mxu0 0.0
    %1047 = vmatprep.subr.mxu0 0.0
    %1048 = vmatpush1.msra.mxu0 0.0
    %1049 = vmatprep.subr.mxu0 0.0
    %1050 = vmatpush1.msra.mxu0 0.0
    %1051 = vmatprep.subr.mxu0 0.0
    %1052 = vmatpush1.msra.mxu0 0.0
    %1053 = vmatprep.subr.mxu0 0.0
    %1054 = vmatpush1.msra.mxu0 0.0
    %1055 = vmatprep.subr.mxu0 0.0
    %1056 = vmatpush1.msra.mxu0 0.0
    %1057 = vmatprep.subr.mxu0 0.0
    %1058 = vmatpush1.msra.mxu0 0.0
    %1059 = vmatprep.subr.mxu0 0.0
    %1060 = vmatpush1.msra.mxu0 0.0
    %1061 = vmatprep.subr.mxu0 0.0
    %1062 = vmatpush1.msra.mxu0 0.0
    %1063 = vmatprep.subr.mxu0 0.0
    %1064 = vmatpush1.msra.mxu0 0.0
    %1065 = vmatprep.subr.mxu0 0.0
    %1066 = vmatpush1.msra.mxu0 0.0
    %1067 = vmatprep.subr.mxu0 0.0
    %1068 = vmatpush1.msra.mxu0 0.0
    %1069 = vmatprep.subr.mxu0 0.0
    %1070 = vmatpush1.msra.mxu0 0.0
    %1071 = vmatprep.subr.mxu0 0.0
    %1072 = vmatpush1.msra.mxu0 0.0
    %1073 = vmatprep.subr.mxu0 0.0
    %1074 = vmatpush1.msra.mxu0 0.0
    %1075 = vmatprep.mubr.f32.mxu0 0.0
    %1076 = vmatmul.mubr.f32.gmra.mrb[0].mxu0 %v700
    %v1077 = vpop.f32.mrb[0].mxu0
    %v1078 = vadd.f32 %v609, %v1077
    %v1079 = vpop.f32.mrb[0].mxu0
    %1080 = vdwg.mxu0
    %v1081 = vxor.u32 %v937, 2147483648
    %v1082 = vmul.f32 %v1081, 1.442695
    %v1083 = vpow.pop %v1082
    %v1084 = vadd.f32 %v1083, 1.0
    %v1085 = vrcp.pop %v1084
    %v1086 = vmul.f32 1.0, %v1085
    %v1087 = vxor.u32 %v939, 2147483648
    %v1088 = vmul.f32 %v1087, 1.442695
    %v1089 = vpow.pop %v1088
    %v1090 = vadd.f32 %v1089, 1.0
    %v1091 = vrcp.pop %v1090
    %v1092 = vmul.f32 1.0, %v1091
    %v1093 = vsub.f32 %v1008, %v1078
    %v1094 = vmul.f32 %v1086, %v1078
    %v1095 = vadd.f32 %v1093, %v1094
    %v1096 = vtanh.pop %v1095
    %v1097 = vsub.f32 1.0, %v1092
    %v1098 = vmul.f32 %v1097, %v1096
    %v1099 = vmul.f32 %v1092, %v700
    %v1100 = vadd.f32 %v1098, %v1099
    %s1101 = scalar_lea.vmem [#allocation2], 12
    %v1102 = vld [vmem:[%s1101] sm:$0x3f]
    %1103 = vmatprep.subr.mxu0 %v106
    %1104 = vmatpush1.msra.mxu0 %v105
    %1105 = vmatprep.subr.mxu0 %v109
    %1106 = vmatpush1.msra.mxu0 %v108
    %1107 = vmatprep.subr.mxu0 %v112
    %1108 = vmatpush1.msra.mxu0 %v111
    %1109 = vmatprep.subr.mxu0 %v115
    %1110 = vmatpush1.msra.mxu0 %v114
    %1111 = vmatprep.subr.mxu0 %v118
    %1112 = vmatpush1.msra.mxu0 %v117
    %1113 = vmatprep.subr.mxu0 %v121
    %1114 = vmatpush1.msra.mxu0 %v120
    %1115 = vmatprep.subr.mxu0 %v124
    %1116 = vmatpush1.msra.mxu0 %v123
    %1117 = vmatprep.subr.mxu0 %v127
    %1118 = vmatpush1.msra.mxu0 %v126
    %1119 = vmatprep.subr.mxu0 %v130
    %1120 = vmatpush1.msra.mxu0 %v129
    %1121 = vmatprep.subr.mxu0 %v133
    %1122 = vmatpush1.msra.mxu0 %v132
    %1123 = vmatprep.subr.mxu0 %v136
    %1124 = vmatpush1.msra.mxu0 %v135
    %1125 = vmatprep.subr.mxu0 %v139
    %1126 = vmatpush1.msra.mxu0 %v138
    %1127 = vmatprep.subr.mxu0 %v142
    %1128 = vmatpush1.msra.mxu0 %v141
    %1129 = vmatprep.subr.mxu0 %v145
    %1130 = vmatpush1.msra.mxu0 %v144
    %1131 = vmatprep.subr.mxu0 %v148
    %1132 = vmatpush1.msra.mxu0 %v147
    %1133 = vmatprep.subr.mxu0 %v151
    %1134 = vmatpush1.msra.mxu0 %v150
    %1135 = vmatprep.subr.mxu0 0.0
    %1136 = vmatpush1.msra.mxu0 0.0
    %1137 = vmatprep.subr.mxu0 0.0
    %1138 = vmatpush1.msra.mxu0 0.0
    %1139 = vmatprep.subr.mxu0 0.0
    %1140 = vmatpush1.msra.mxu0 0.0
    %1141 = vmatprep.subr.mxu0 0.0
    %1142 = vmatpush1.msra.mxu0 0.0
    %1143 = vmatprep.subr.mxu0 0.0
    %1144 = vmatpush1.msra.mxu0 0.0
    %1145 = vmatprep.subr.mxu0 0.0
    %1146 = vmatpush1.msra.mxu0 0.0
    %1147 = vmatprep.subr.mxu0 0.0
    %1148 = vmatpush1.msra.mxu0 0.0
    %1149 = vmatprep.subr.mxu0 0.0
    %1150 = vmatpush1.msra.mxu0 0.0
    %1151 = vmatprep.subr.mxu0 0.0
    %1152 = vmatpush1.msra.mxu0 0.0
    %1153 = vmatprep.subr.mxu0 0.0
    %1154 = vmatpush1.msra.mxu0 0.0
    %1155 = vmatprep.subr.mxu0 0.0
    %1156 = vmatpush1.msra.mxu0 0.0
    %1157 = vmatprep.subr.mxu0 0.0
    %1158 = vmatpush1.msra.mxu0 0.0
    %1159 = vmatprep.subr.mxu0 0.0
    %1160 = vmatpush1.msra.mxu0 0.0
    %1161 = vmatprep.subr.mxu0 0.0
    %1162 = vmatpush1.msra.mxu0 0.0
    %1163 = vmatprep.subr.mxu0 0.0
    %1164 = vmatpush1.msra.mxu0 0.0
    %1165 = vmatprep.subr.mxu0 0.0
    %1166 = vmatpush1.msra.mxu0 0.0
    %1167 = vmatprep.mubr.f32.mxu0 0.0
    %1168 = vmatmul.mubr.f32.gmra.mrb[0].mxu0 %v869
    %v1169 = vpop.f32.mrb[0].mxu0
    %v1170 = vadd.f32 %v157, %v1169
    %v1171 = vpop.f32.mrb[0].mxu0
    %v1172 = vadd.f32 %v161, %v1171
    %1173 = vdwg.mxu0
    %1174 = vmatprep.subr.mxu0 0.0
    %1175 = vmatpush1.msra.mxu0 %v107
    %1176 = vmatprep.subr.mxu0 0.0
    %1177 = vmatpush1.msra.mxu0 %v110
    %1178 = vmatprep.subr.mxu0 0.0
    %1179 = vmatpush1.msra.mxu0 %v113
    %1180 = vmatprep.subr.mxu0 0.0
    %1181 = vmatpush1.msra.mxu0 %v116
    %1182 = vmatprep.subr.mxu0 0.0
    %1183 = vmatpush1.msra.mxu0 %v119
    %1184 = vmatprep.subr.mxu0 0.0
    %1185 = vmatpush1.msra.mxu0 %v122
    %1186 = vmatprep.subr.mxu0 0.0
    %1187 = vmatpush1.msra.mxu0 %v125
    %1188 = vmatprep.subr.mxu0 0.0
    %1189 = vmatpush1.msra.mxu0 %v128
    %1190 = vmatprep.subr.mxu0 0.0
    %1191 = vmatpush1.msra.mxu0 %v131
    %1192 = vmatprep.subr.mxu0 0.0
    %1193 = vmatpush1.msra.mxu0 %v134
    %1194 = vmatprep.subr.mxu0 0.0
    %1195 = vmatpush1.msra.mxu0 %v137
    %1196 = vmatprep.subr.mxu0 0.0
    %1197 = vmatpush1.msra.mxu0 %v140
    %1198 = vmatprep.subr.mxu0 0.0
    %1199 = vmatpush1.msra.mxu0 %v143
    %1200 = vmatprep.subr.mxu0 0.0
    %1201 = vmatpush1.msra.mxu0 %v146
    %1202 = vmatprep.subr.mxu0 0.0
    %1203 = vmatpush1.msra.mxu0 %v149
    %1204 = vmatprep.subr.mxu0 0.0
    %1205 = vmatpush1.msra.mxu0 %v152
    %1206 = vmatprep.subr.mxu0 0.0
    %1207 = vmatpush1.msra.mxu0 0.0
    %1208 = vmatprep.subr.mxu0 0.0
    %1209 = vmatpush1.msra.mxu0 0.0
    %1210 = vmatprep.subr.mxu0 0.0
    %1211 = vmatpush1.msra.mxu0 0.0
    %1212 = vmatprep.subr.mxu0 0.0
    %1213 = vmatpush1.msra.mxu0 0.0
    %1214 = vmatprep.subr.mxu0 0.0
    %1215 = vmatpush1.msra.mxu0 0.0
    %1216 = vmatprep.subr.mxu0 0.0
    %1217 = vmatpush1.msra.mxu0 0.0
    %1218 = vmatprep.subr.mxu0 0.0
    %1219 = vmatpush1.msra.mxu0 0.0
    %1220 = vmatprep.subr.mxu0 0.0
    %1221 = vmatpush1.msra.mxu0 0.0
    %1222 = vmatprep.subr.mxu0 0.0
    %1223 = vmatpush1.msra.mxu0 0.0
    %1224 = vmatprep.subr.mxu0 0.0
    %1225 = vmatpush1.msra.mxu0 0.0
    %1226 = vmatprep.subr.mxu0 0.0
    %1227 = vmatpush1.msra.mxu0 0.0
    %1228 = vmatprep.subr.mxu0 0.0
    %1229 = vmatpush1.msra.mxu0 0.0
    %1230 = vmatprep.subr.mxu0 0.0
    %1231 = vmatpush1.msra.mxu0 0.0
    %1232 = vmatprep.subr.mxu0 0.0
    %1233 = vmatpush1.msra.mxu0 0.0
    %1234 = vmatprep.subr.mxu0 0.0
    %1235 = vmatpush1.msra.mxu0 0.0
    %1236 = vmatprep.subr.mxu0 0.0
    %1237 = vmatpush1.msra.mxu0 0.0
    %1238 = vmatprep.mubr.f32.mxu0 0.0
    %1239 = vmatmul.mubr.f32.gmra.mrb[0].mxu0 %v869
    %v1240 = vpop.f32.mrb[0].mxu0
    %v1241 = vadd.f32 %v165, %v1240
    %v1242 = vpop.f32.mrb[0].mxu0
    %1243 = vdwg.mxu0
    %v1244 = vadd.f32 %v1102, %v1170
    %v1245 = vxor.u32 %v1244, 2147483648
    %v1246 = vmul.f32 %v1245, 1.442695
    %v1247 = vpow.pop %v1246
    %v1248 = vadd.f32 %v1247, 1.0
    %v1249 = vrcp.pop %v1248
    %v1250 = vmul.f32 1.0, %v1249
    %v1252 = vrot.slane %v1102, 2
    %v1254 = vadd.f32 %v1252, %v1172
    %v1255 = vxor.u32 %v1254, 2147483648
    %v1256 = vmul.f32 %v1255, 1.442695
    %v1257 = vpow.pop %v1256
    %v1258 = vadd.f32 %v1257, 1.0
    %v1259 = vrcp.pop %v1258
    %v1260 = vmul.f32 1.0, %v1259
    %v1261 = vmul.f32 %v1250, %v1241
    %v1262 = vrot.slane %v1102, 4
    %v1264 = vadd.f32 %v1262, %v1261
    %v1265 = vtanh.pop %v1264
    %v1266 = vsub.f32 1.0, %v1260
    %v1267 = vmul.f32 %v1266, %v1265
    %v1268 = vmul.f32 %v1260, %v869
    %v1269 = vadd.f32 %v1267, %v1268
    %1270 = vmatprep.subr.mxu0 %v337
    %1271 = vmatpush1.msra.mxu0 %v336
    %1272 = vmatprep.subr.mxu0 %v340
    %1273 = vmatpush1.msra.mxu0 %v339
    %1274 = vmatprep.subr.mxu0 %v343
    %1275 = vmatpush1.msra.mxu0 %v342
    %1276 = vmatprep.subr.mxu0 %v346
    %1277 = vmatpush1.msra.mxu0 %v345
    %1278 = vmatprep.subr.mxu0 %v349
    %1279 = vmatpush1.msra.mxu0 %v348
    %1280 = vmatprep.subr.mxu0 %v352
    %1281 = vmatpush1.msra.mxu0 %v351
    %1282 = vmatprep.subr.mxu0 %v355
    %1283 = vmatpush1.msra.mxu0 %v354
    %1284 = vmatprep.subr.mxu0 %v358
    %1285 = vmatpush1.msra.mxu0 %v357
    %1286 = vmatprep.subr.mxu0 %v361
    %1287 = vmatpush1.msra.mxu0 %v360
    %1288 = vmatprep.subr.mxu0 %v364
    %1289 = vmatpush1.msra.mxu0 %v363
    %1290 = vmatprep.subr.mxu0 %v367
    %1291 = vmatpush1.msra.mxu0 %v366
    %1292 = vmatprep.subr.mxu0 %v370
    %1293 = vmatpush1.msra.mxu0 %v369
    %1294 = vmatprep.subr.mxu0 %v373
    %1295 = vmatpush1.msra.mxu0 %v372
    %1296 = vmatprep.subr.mxu0 %v376
    %1297 = vmatpush1.msra.mxu0 %v375
    %1298 = vmatprep.subr.mxu0 %v379
    %1299 = vmatpush1.msra.mxu0 %v378
    %1300 = vmatprep.subr.mxu0 %v382
    %1301 = vmatpush1.msra.mxu0 %v381
    %1302 = vmatprep.subr.mxu0 %v385
    %1303 = vmatpush1.msra.mxu0 %v384
    %1304 = vmatprep.subr.mxu0 %v388
    %1305 = vmatpush1.msra.mxu0 %v387
    %1306 = vmatprep.subr.mxu0 %v391
    %1307 = vmatpush1.msra.mxu0 %v390
    %1308 = vmatprep.subr.mxu0 %v394
    %1309 = vmatpush1.msra.mxu0 %v393
    %1310 = vmatprep.subr.mxu0 %v397
    %1311 = vmatpush1.msra.mxu0 %v396
    %1312 = vmatprep.subr.mxu0 %v400
    %1313 = vmatpush1.msra.mxu0 %v399
    %1314 = vmatprep.subr.mxu0 %v403
    %1315 = vmatpush1.msra.mxu0 %v402
    %1316 = vmatprep.subr.mxu0 %v406
    %1317 = vmatpush1.msra.mxu0 %v405
    %1318 = vmatprep.subr.mxu0 %v409
    %1319 = vmatpush1.msra.mxu0 %v408
    %1320 = vmatprep.subr.mxu0 %v412
    %1321 = vmatpush1.msra.mxu0 %v411
    %1322 = vmatprep.subr.mxu0 %v415
    %1323 = vmatpush1.msra.mxu0 %v414
    %1324 = vmatprep.subr.mxu0 %v418
    %1325 = vmatpush1.msra.mxu0 %v417
    %1326 = vmatprep.subr.mxu0 %v421
    %1327 = vmatpush1.msra.mxu0 %v420
    %1328 = vmatprep.subr.mxu0 %v424
    %1329 = vmatpush1.msra.mxu0 %v423
    %1330 = vmatprep.subr.mxu0 %v427
    %1331 = vmatpush1.msra.mxu0 %v426
    %1332 = vmatprep.subr.mxu0 %v430
    %1333 = vmatpush1.msra.mxu0 %v429
    %1334 = vmatprep.mubr.f32.mxu0 %v1100
    %1335 = vmatmul.mubr.f32.gmra.mrb[0].mxu0 %v1269
    %v1336 = vpop.f32.mrb[0].mxu0
    %v1337 = vadd.f32 %v436, %v1336
    %v1338 = vpop.f32.mrb[0].mxu0
    %v1339 = vadd.f32 %v440, %v1338
    %1340 = vdwg.mxu0
    %1341 = vmatprep.subr.mxu0 0.0
    %1342 = vmatpush1.msra.mxu0 %v338
    %1343 = vmatprep.subr.mxu0 0.0
    %1344 = vmatpush1.msra.mxu0 %v341
    %1345 = vmatprep.subr.mxu0 0.0
    %1346 = vmatpush1.msra.mxu0 %v344
    %1347 = vmatprep.subr.mxu0 0.0
    %1348 = vmatpush1.msra.mxu0 %v347
    %1349 = vmatprep.subr.mxu0 0.0
    %1350 = vmatpush1.msra.mxu0 %v350
    %1351 = vmatprep.subr.mxu0 0.0
    %1352 = vmatpush1.msra.mxu0 %v353
    %1353 = vmatprep.subr.mxu0 0.0
    %1354 = vmatpush1.msra.mxu0 %v356
    %1355 = vmatprep.subr.mxu0 0.0
    %1356 = vmatpush1.msra.mxu0 %v359
    %1357 = vmatprep.subr.mxu0 0.0
    %1358 = vmatpush1.msra.mxu0 %v362
    %1359 = vmatprep.subr.mxu0 0.0
    %1360 = vmatpush1.msra.mxu0 %v365
    %1361 = vmatprep.subr.mxu0 0.0
    %1362 = vmatpush1.msra.mxu0 %v368
    %1363 = vmatprep.subr.mxu0 0.0
    %1364 = vmatpush1.msra.mxu0 %v371
    %1365 = vmatprep.subr.mxu0 0.0
    %1366 = vmatpush1.msra.mxu0 %v374
    %1367 = vmatprep.subr.mxu0 0.0
    %1368 = vmatpush1.msra.mxu0 %v377
    %1369 = vmatprep.subr.mxu0 0.0
    %1370 = vmatpush1.msra.mxu0 %v380
    %1371 = vmatprep.subr.mxu0 0.0
    %1372 = vmatpush1.msra.mxu0 %v383
    %1373 = vmatprep.subr.mxu0 0.0
    %1374 = vmatpush1.msra.mxu0 %v386
    %1375 = vmatprep.subr.mxu0 0.0
    %1376 = vmatpush1.msra.mxu0 %v389
    %1377 = vmatprep.subr.mxu0 0.0
    %1378 = vmatpush1.msra.mxu0 %v392
    %1379 = vmatprep.subr.mxu0 0.0
    %1380 = vmatpush1.msra.mxu0 %v395
    %1381 = vmatprep.subr.mxu0 0.0
    %1382 = vmatpush1.msra.mxu0 %v398
    %1383 = vmatprep.subr.mxu0 0.0
    %1384 = vmatpush1.msra.mxu0 %v401
    %1385 = vmatprep.subr.mxu0 0.0
    %1386 = vmatpush1.msra.mxu0 %v404
    %1387 = vmatprep.subr.mxu0 0.0
    %1388 = vmatpush1.msra.mxu0 %v407
    %1389 = vmatprep.subr.mxu0 0.0
    %1390 = vmatpush1.msra.mxu0 %v410
    %1391 = vmatprep.subr.mxu0 0.0
    %1392 = vmatpush1.msra.mxu0 %v413
    %1393 = vmatprep.subr.mxu0 0.0
    %1394 = vmatpush1.msra.mxu0 %v416
    %1395 = vmatprep.subr.mxu0 0.0
    %1396 = vmatpush1.msra.mxu0 %v419
    %1397 = vmatprep.subr.mxu0 0.0
    %1398 = vmatpush1.msra.mxu0 %v422
    %1399 = vmatprep.subr.mxu0 0.0
    %1400 = vmatpush1.msra.mxu0 %v425
    %1401 = vmatprep.subr.mxu0 0.0
    %1402 = vmatpush1.msra.mxu0 %v428
    %1403 = vmatprep.subr.mxu0 0.0
    %1404 = vmatpush1.msra.mxu0 %v431
    %1405 = vmatprep.mubr.f32.mxu0 %v1100
    %1406 = vmatmul.mubr.f32.gmra.mrb[0].mxu0 %v1269
    %v1407 = vpop.f32.mrb[0].mxu0
    %v1408 = vadd.f32 %v444, %v1407
    %v1409 = vpop.f32.mrb[0].mxu0
    %1410 = vdwg.mxu0
    %1411 = vmatprep.subr.mxu0 0.0
    %1412 = vmatpush1.msra.mxu0 %v589
    %1413 = vmatprep.subr.mxu0 0.0
    %1414 = vmatpush1.msra.mxu0 %v590
    %1415 = vmatprep.subr.mxu0 0.0
    %1416 = vmatpush1.msra.mxu0 %v591
    %1417 = vmatprep.subr.mxu0 0.0
    %1418 = vmatpush1.msra.mxu0 %v592
    %1419 = vmatprep.subr.mxu0 0.0
    %1420 = vmatpush1.msra.mxu0 %v593
    %1421 = vmatprep.subr.mxu0 0.0
    %1422 = vmatpush1.msra.mxu0 %v594
    %1423 = vmatprep.subr.mxu0 0.0
    %1424 = vmatpush1.msra.mxu0 %v595
    %1425 = vmatprep.subr.mxu0 0.0
    %1426 = vmatpush1.msra.mxu0 %v596
    %1427 = vmatprep.subr.mxu0 0.0
    %1428 = vmatpush1.msra.mxu0 %v597
    %1429 = vmatprep.subr.mxu0 0.0
    %1430 = vmatpush1.msra.mxu0 %v598
    %1431 = vmatprep.subr.mxu0 0.0
    %1432 = vmatpush1.msra.mxu0 %v599
    %1433 = vmatprep.subr.mxu0 0.0
    %1434 = vmatpush1.msra.mxu0 %v600
    %1435 = vmatprep.subr.mxu0 0.0
    %1436 = vmatpush1.msra.mxu0 %v601
    %1437 = vmatprep.subr.mxu0 0.0
    %1438 = vmatpush1.msra.mxu0 %v602
    %1439 = vmatprep.subr.mxu0 0.0
    %1440 = vmatpush1.msra.mxu0 %v603
    %1441 = vmatprep.subr.mxu0 0.0
    %1442 = vmatpush1.msra.mxu0 %v604
    %1443 = vmatprep.subr.mxu0 0.0
    %1444 = vmatpush1.msra.mxu0 0.0
    %1445 = vmatprep.subr.mxu0 0.0
    %1446 = vmatpush1.msra.mxu0 0.0
    %1447 = vmatprep.subr.mxu0 0.0
    %1448 = vmatpush1.msra.mxu0 0.0
    %1449 = vmatprep.subr.mxu0 0.0
    %1450 = vmatpush1.msra.mxu0 0.0
    %1451 = vmatprep.subr.mxu0 0.0
    %1452 = vmatpush1.msra.mxu0 0.0
    %1453 = vmatprep.subr.mxu0 0.0
    %1454 = vmatpush1.msra.mxu0 0.0
    %1455 = vmatprep.subr.mxu0 0.0
    %1456 = vmatpush1.msra.mxu0 0.0
    %1457 = vmatprep.subr.mxu0 0.0
    %1458 = vmatpush1.msra.mxu0 0.0
    %1459 = vmatprep.subr.mxu0 0.0
    %1460 = vmatpush1.msra.mxu0 0.0
    %1461 = vmatprep.subr.mxu0 0.0
    %1462 = vmatpush1.msra.mxu0 0.0
    %1463 = vmatprep.subr.mxu0 0.0
    %1464 = vmatpush1.msra.mxu0 0.0
    %1465 = vmatprep.subr.mxu0 0.0
    %1466 = vmatpush1.msra.mxu0 0.0
    %1467 = vmatprep.subr.mxu0 0.0
    %1468 = vmatpush1.msra.mxu0 0.0
    %1469 = vmatprep.subr.mxu0 0.0
    %1470 = vmatpush1.msra.mxu0 0.0
    %1471 = vmatprep.subr.mxu0 0.0
    %1472 = vmatpush1.msra.mxu0 0.0
    %1473 = vmatprep.subr.mxu0 0.0
    %1474 = vmatpush1.msra.mxu0 0.0
    %1475 = vmatprep.mubr.f32.mxu0 0.0
    %1476 = vmatmul.mubr.f32.gmra.mrb[0].mxu0 %v1100
    %v1477 = vpop.f32.mrb[0].mxu0
    %v1478 = vadd.f32 %v609, %v1477
    %v1479 = vpop.f32.mrb[0].mxu0
    %1480 = vdwg.mxu0
    %v1481 = vxor.u32 %v1337, 2147483648
    %v1482 = vmul.f32 %v1481, 1.442695
    %v1483 = vpow.pop %v1482
    %v1484 = vadd.f32 %v1483, 1.0
    %v1485 = vrcp.pop %v1484
    %v1486 = vmul.f32 1.0, %v1485
    %v1487 = vxor.u32 %v1339, 2147483648
    %v1488 = vmul.f32 %v1487, 1.442695
    %v1489 = vpow.pop %v1488
    %v1490 = vadd.f32 %v1489, 1.0
    %v1491 = vrcp.pop %v1490
    %v1492 = vmul.f32 1.0, %v1491
    %v1493 = vsub.f32 %v1408, %v1478
    %v1494 = vmul.f32 %v1486, %v1478
    %v1495 = vadd.f32 %v1493, %v1494
    %v1496 = vtanh.pop %v1495
    %v1497 = vsub.f32 1.0, %v1492
    %v1498 = vmul.f32 %v1497, %v1496
    %v1499 = vmul.f32 %v1492, %v1100
    %v1500 = vadd.f32 %v1498, %v1499
    %s1501 = scalar_lea.vmem [#allocation2], 18
    %v1502 = vld [vmem:[%s1501] sm:$0x3f]
    %1503 = vmatprep.subr.mxu0 %v106
    %1504 = vmatpush1.msra.mxu0 %v105
    %1505 = vmatprep.subr.mxu0 %v109
    %1506 = vmatpush1.msra.mxu0 %v108
    %1507 = vmatprep.subr.mxu0 %v112
    %1508 = vmatpush1.msra.mxu0 %v111
    %1509 = vmatprep.subr.mxu0 %v115
    %1510 = vmatpush1.msra.mxu0 %v114
    %1511 = vmatprep.subr.mxu0 %v118
    %1512 = vmatpush1.msra.mxu0 %v117
    %1513 = vmatprep.subr.mxu0 %v121
    %1514 = vmatpush1.msra.mxu0 %v120
    %1515 = vmatprep.subr.mxu0 %v124
    %1516 = vmatpush1.msra.mxu0 %v123
    %1517 = vmatprep.subr.mxu0 %v127
    %1518 = vmatpush1.msra.mxu0 %v126
    %1519 = vmatprep.subr.mxu0 %v130
    %1520 = vmatpush1.msra.mxu0 %v129
    %1521 = vmatprep.subr.mxu0 %v133
    %1522 = vmatpush1.msra.mxu0 %v132
    %1523 = vmatprep.subr.mxu0 %v136
    %1524 = vmatpush1.msra.mxu0 %v135
    %1525 = vmatprep.subr.mxu0 %v139
    %1526 = vmatpush1.msra.mxu0 %v138
    %1527 = vmatprep.subr.mxu0 %v142
    %1528 = vmatpush1.msra.mxu0 %v141
    %1529 = vmatprep.subr.mxu0 %v145
    %1530 = vmatpush1.msra.mxu0 %v144
    %1531 = vmatprep.subr.mxu0 %v148
    %1532 = vmatpush1.msra.mxu0 %v147
    %1533 = vmatprep.subr.mxu0 %v151
    %1534 = vmatpush1.msra.mxu0 %v150
    %1535 = vmatprep.subr.mxu0 0.0
    %1536 = vmatpush1.msra.mxu0 0.0
    %1537 = vmatprep.subr.mxu0 0.0
    %1538 = vmatpush1.msra.mxu0 0.0
    %1539 = vmatprep.subr.mxu0 0.0
    %1540 = vmatpush1.msra.mxu0 0.0
    %1541 = vmatprep.subr.mxu0 0.0
    %1542 = vmatpush1.msra.mxu0 0.0
    %1543 = vmatprep.subr.mxu0 0.0
    %1544 = vmatpush1.msra.mxu0 0.0
    %1545 = vmatprep.subr.mxu0 0.0
    %1546 = vmatpush1.msra.mxu0 0.0
    %1547 = vmatprep.subr.mxu0 0.0
    %1548 = vmatpush1.msra.mxu0 0.0
    %1549 = vmatprep.subr.mxu0 0.0
    %1550 = vmatpush1.msra.mxu0 0.0
    %1551 = vmatprep.subr.mxu0 0.0
    %1552 = vmatpush1.msra.mxu0 0.0
    %1553 = vmatprep.subr.mxu0 0.0
    %1554 = vmatpush1.msra.mxu0 0.0
    %1555 = vmatprep.subr.mxu0 0.0
    %1556 = vmatpush1.msra.mxu0 0.0
    %1557 = vmatprep.subr.mxu0 0.0
    %1558 = vmatpush1.msra.mxu0 0.0
    %1559 = vmatprep.subr.mxu0 0.0
    %1560 = vmatpush1.msra.mxu0 0.0
    %1561 = vmatprep.subr.mxu0 0.0
    %1562 = vmatpush1.msra.mxu0 0.0
    %1563 = vmatprep.subr.mxu0 0.0
    %1564 = vmatpush1.msra.mxu0 0.0
    %1565 = vmatprep.subr.mxu0 0.0
    %1566 = vmatpush1.msra.mxu0 0.0
    %1567 = vmatprep.mubr.f32.mxu0 0.0
    %1568 = vmatmul.mubr.f32.gmra.mrb[0].mxu0 %v1269
    %v1569 = vpop.f32.mrb[0].mxu0
    %v1570 = vadd.f32 %v157, %v1569
    %v1571 = vpop.f32.mrb[0].mxu0
    %v1572 = vadd.f32 %v161, %v1571
    %1573 = vdwg.mxu0
    %1574 = vmatprep.subr.mxu0 0.0
    %1575 = vmatpush1.msra.mxu0 %v107
    %1576 = vmatprep.subr.mxu0 0.0
    %1577 = vmatpush1.msra.mxu0 %v110
    %1578 = vmatprep.subr.mxu0 0.0
    %1579 = vmatpush1.msra.mxu0 %v113
    %1580 = vmatprep.subr.mxu0 0.0
    %1581 = vmatpush1.msra.mxu0 %v116
    %1582 = vmatprep.subr.mxu0 0.0
    %1583 = vmatpush1.msra.mxu0 %v119
    %1584 = vmatprep.subr.mxu0 0.0
    %1585 = vmatpush1.msra.mxu0 %v122
    %1586 = vmatprep.subr.mxu0 0.0
    %1587 = vmatpush1.msra.mxu0 %v125
    %1588 = vmatprep.subr.mxu0 0.0
    %1589 = vmatpush1.msra.mxu0 %v128
    %1590 = vmatprep.subr.mxu0 0.0
    %1591 = vmatpush1.msra.mxu0 %v131
    %1592 = vmatprep.subr.mxu0 0.0
    %1593 = vmatpush1.msra.mxu0 %v134
    %1594 = vmatprep.subr.mxu0 0.0
    %1595 = vmatpush1.msra.mxu0 %v137
    %1596 = vmatprep.subr.mxu0 0.0
    %1597 = vmatpush1.msra.mxu0 %v140
    %1598 = vmatprep.subr.mxu0 0.0
    %1599 = vmatpush1.msra.mxu0 %v143
    %1600 = vmatprep.subr.mxu0 0.0
    %1601 = vmatpush1.msra.mxu0 %v146
    %1602 = vmatprep.subr.mxu0 0.0
    %1603 = vmatpush1.msra.mxu0 %v149
    %1604 = vmatprep.subr.mxu0 0.0
    %1605 = vmatpush1.msra.mxu0 %v152
    %1606 = vmatprep.subr.mxu0 0.0
    %1607 = vmatpush1.msra.mxu0 0.0
    %1608 = vmatprep.subr.mxu0 0.0
    %1609 = vmatpush1.msra.mxu0 0.0
    %1610 = vmatprep.subr.mxu0 0.0
    %1611 = vmatpush1.msra.mxu0 0.0
    %1612 = vmatprep.subr.mxu0 0.0
    %1613 = vmatpush1.msra.mxu0 0.0
    %1614 = vmatprep.subr.mxu0 0.0
    %1615 = vmatpush1.msra.mxu0 0.0
    %1616 = vmatprep.subr.mxu0 0.0
    %1617 = vmatpush1.msra.mxu0 0.0
    %1618 = vmatprep.subr.mxu0 0.0
    %1619 = vmatpush1.msra.mxu0 0.0
    %1620 = vmatprep.subr.mxu0 0.0
    %1621 = vmatpush1.msra.mxu0 0.0
    %1622 = vmatprep.subr.mxu0 0.0
    %1623 = vmatpush1.msra.mxu0 0.0
    %1624 = vmatprep.subr.mxu0 0.0
    %1625 = vmatpush1.msra.mxu0 0.0
    %1626 = vmatprep.subr.mxu0 0.0
    %1627 = vmatpush1.msra.mxu0 0.0
    %1628 = vmatprep.subr.mxu0 0.0
    %1629 = vmatpush1.msra.mxu0 0.0
    %1630 = vmatprep.subr.mxu0 0.0
    %1631 = vmatpush1.msra.mxu0 0.0
    %1632 = vmatprep.subr.mxu0 0.0
    %1633 = vmatpush1.msra.mxu0 0.0
    %1634 = vmatprep.subr.mxu0 0.0
    %1635 = vmatpush1.msra.mxu0 0.0
    %1636 = vmatprep.subr.mxu0 0.0
    %1637 = vmatpush1.msra.mxu0 0.0
    %1638 = vmatprep.mubr.f32.mxu0 0.0
    %1639 = vmatmul.mubr.f32.gmra.mrb[0].mxu0 %v1269
    %v1640 = vpop.f32.mrb[0].mxu0
    %v1641 = vadd.f32 %v165, %v1640
    %v1642 = vpop.f32.mrb[0].mxu0
    %1643 = vdwg.mxu0
    %v1644 = vadd.f32 %v1502, %v1570
    %v1645 = vxor.u32 %v1644, 2147483648
    %v1646 = vmul.f32 %v1645, 1.442695
    %v1647 = vpow.pop %v1646
    %v1648 = vadd.f32 %v1647, 1.0
    %v1649 = vrcp.pop %v1648
    %v1650 = vmul.f32 1.0, %v1649
    %v1652 = vrot.slane %v1502, 2
    %v1654 = vadd.f32 %v1652, %v1572
    %v1655 = vxor.u32 %v1654, 2147483648
    %v1656 = vmul.f32 %v1655, 1.442695
    %v1657 = vpow.pop %v1656
    %v1658 = vadd.f32 %v1657, 1.0
    %v1659 = vrcp.pop %v1658
    %v1660 = vmul.f32 1.0, %v1659
    %v1661 = vmul.f32 %v1650, %v1641
    %v1662 = vrot.slane %v1502, 4
    %v1664 = vadd.f32 %v1662, %v1661
    %v1665 = vtanh.pop %v1664
    %v1666 = vsub.f32 1.0, %v1660
    %v1667 = vmul.f32 %v1666, %v1665
    %v1668 = vmul.f32 %v1660, %v1269
    %v1669 = vadd.f32 %v1667, %v1668
    %1670 = vmatprep.subr.mxu0 %v337
    %1671 = vmatpush1.msra.mxu0 %v336
    %1672 = vmatprep.subr.mxu0 %v340
    %1673 = vmatpush1.msra.mxu0 %v339
    %1674 = vmatprep.subr.mxu0 %v343
    %1675 = vmatpush1.msra.mxu0 %v342
    %1676 = vmatprep.subr.mxu0 %v346
    %1677 = vmatpush1.msra.mxu0 %v345
    %1678 = vmatprep.subr.mxu0 %v349
    %1679 = vmatpush1.msra.mxu0 %v348
    %1680 = vmatprep.subr.mxu0 %v352
    %1681 = vmatpush1.msra.mxu0 %v351
    %1682 = vmatprep.subr.mxu0 %v355
    %1683 = vmatpush1.msra.mxu0 %v354
    %1684 = vmatprep.subr.mxu0 %v358
    %1685 = vmatpush1.msra.mxu0 %v357
    %1686 = vmatprep.subr.mxu0 %v361
    %1687 = vmatpush1.msra.mxu0 %v360
    %1688 = vmatprep.subr.mxu0 %v364
    %1689 = vmatpush1.msra.mxu0 %v363
    %1690 = vmatprep.subr.mxu0 %v367
    %1691 = vmatpush1.msra.mxu0 %v366
    %1692 = vmatprep.subr.mxu0 %v370
    %1693 = vmatpush1.msra.mxu0 %v369
    %1694 = vmatprep.subr.mxu0 %v373
    %1695 = vmatpush1.msra.mxu0 %v372
    %1696 = vmatprep.subr.mxu0 %v376
    %1697 = vmatpush1.msra.mxu0 %v375
    %1698 = vmatprep.subr.mxu0 %v379
    %1699 = vmatpush1.msra.mxu0 %v378
    %1700 = vmatprep.subr.mxu0 %v382
    %1701 = vmatpush1.msra.mxu0 %v381
    %1702 = vmatprep.subr.mxu0 %v385
    %1703 = vmatpush1.msra.mxu0 %v384
    %1704 = vmatprep.subr.mxu0 %v388
    %1705 = vmatpush1.msra.mxu0 %v387
    %1706 = vmatprep.subr.mxu0 %v391
    %1707 = vmatpush1.msra.mxu0 %v390
    %1708 = vmatprep.subr.mxu0 %v394
    %1709 = vmatpush1.msra.mxu0 %v393
    %1710 = vmatprep.subr.mxu0 %v397
    %1711 = vmatpush1.msra.mxu0 %v396
    %1712 = vmatprep.subr.mxu0 %v400
    %1713 = vmatpush1.msra.mxu0 %v399
    %1714 = vmatprep.subr.mxu0 %v403
    %1715 = vmatpush1.msra.mxu0 %v402
    %1716 = vmatprep.subr.mxu0 %v406
    %1717 = vmatpush1.msra.mxu0 %v405
    %1718 = vmatprep.subr.mxu0 %v409
    %1719 = vmatpush1.msra.mxu0 %v408
    %1720 = vmatprep.subr.mxu0 %v412
    %1721 = vmatpush1.msra.mxu0 %v411
    %1722 = vmatprep.subr.mxu0 %v415
    %1723 = vmatpush1.msra.mxu0 %v414
    %1724 = vmatprep.subr.mxu0 %v418
    %1725 = vmatpush1.msra.mxu0 %v417
    %1726 = vmatprep.subr.mxu0 %v421
    %1727 = vmatpush1.msra.mxu0 %v420
    %1728 = vmatprep.subr.mxu0 %v424
    %1729 = vmatpush1.msra.mxu0 %v423
    %1730 = vmatprep.subr.mxu0 %v427
    %1731 = vmatpush1.msra.mxu0 %v426
    %1732 = vmatprep.subr.mxu0 %v430
    %1733 = vmatpush1.msra.mxu0 %v429
    %1734 = vmatprep.mubr.f32.mxu0 %v1500
    %1735 = vmatmul.mubr.f32.gmra.mrb[0].mxu0 %v1669
    %v1736 = vpop.f32.mrb[0].mxu0
    %v1737 = vadd.f32 %v436, %v1736
    %v1738 = vpop.f32.mrb[0].mxu0
    %v1739 = vadd.f32 %v440, %v1738
    %1740 = vdwg.mxu0
    %1741 = vmatprep.subr.mxu0 0.0
    %1742 = vmatpush1.msra.mxu0 %v338
    %1743 = vmatprep.subr.mxu0 0.0
    %1744 = vmatpush1.msra.mxu0 %v341
    %1745 = vmatprep.subr.mxu0 0.0
    %1746 = vmatpush1.msra.mxu0 %v344
    %1747 = vmatprep.subr.mxu0 0.0
    %1748 = vmatpush1.msra.mxu0 %v347
    %1749 = vmatprep.subr.mxu0 0.0
    %1750 = vmatpush1.msra.mxu0 %v350
    %1751 = vmatprep.subr.mxu0 0.0
    %1752 = vmatpush1.msra.mxu0 %v353
    %1753 = vmatprep.subr.mxu0 0.0
    %1754 = vmatpush1.msra.mxu0 %v356
    %1755 = vmatprep.subr.mxu0 0.0
    %1756 = vmatpush1.msra.mxu0 %v359
    %1757 = vmatprep.subr.mxu0 0.0
    %1758 = vmatpush1.msra.mxu0 %v362
    %1759 = vmatprep.subr.mxu0 0.0
    %1760 = vmatpush1.msra.mxu0 %v365
    %1761 = vmatprep.subr.mxu0 0.0
    %1762 = vmatpush1.msra.mxu0 %v368
    %1763 = vmatprep.subr.mxu0 0.0
    %1764 = vmatpush1.msra.mxu0 %v371
    %1765 = vmatprep.subr.mxu0 0.0
    %1766 = vmatpush1.msra.mxu0 %v374
    %1767 = vmatprep.subr.mxu0 0.0
    %1768 = vmatpush1.msra.mxu0 %v377
    %1769 = vmatprep.subr.mxu0 0.0
    %1770 = vmatpush1.msra.mxu0 %v380
    %1771 = vmatprep.subr.mxu0 0.0
    %1772 = vmatpush1.msra.mxu0 %v383
    %1773 = vmatprep.subr.mxu0 0.0
    %1774 = vmatpush1.msra.mxu0 %v386
    %1775 = vmatprep.subr.mxu0 0.0
    %1776 = vmatpush1.msra.mxu0 %v389
    %1777 = vmatprep.subr.mxu0 0.0
    %1778 = vmatpush1.msra.mxu0 %v392
    %1779 = vmatprep.subr.mxu0 0.0
    %1780 = vmatpush1.msra.mxu0 %v395
    %1781 = vmatprep.subr.mxu0 0.0
    %1782 = vmatpush1.msra.mxu0 %v398
    %1783 = vmatprep.subr.mxu0 0.0
    %1784 = vmatpush1.msra.mxu0 %v401
    %1785 = vmatprep.subr.mxu0 0.0
    %1786 = vmatpush1.msra.mxu0 %v404
    %1787 = vmatprep.subr.mxu0 0.0
    %1788 = vmatpush1.msra.mxu0 %v407
    %1789 = vmatprep.subr.mxu0 0.0
    %1790 = vmatpush1.msra.mxu0 %v410
    %1791 = vmatprep.subr.mxu0 0.0
    %1792 = vmatpush1.msra.mxu0 %v413
    %1793 = vmatprep.subr.mxu0 0.0
    %1794 = vmatpush1.msra.mxu0 %v416
    %1795 = vmatprep.subr.mxu0 0.0
    %1796 = vmatpush1.msra.mxu0 %v419
    %1797 = vmatprep.subr.mxu0 0.0
    %1798 = vmatpush1.msra.mxu0 %v422
    %1799 = vmatprep.subr.mxu0 0.0
    %1800 = vmatpush1.msra.mxu0 %v425
    %1801 = vmatprep.subr.mxu0 0.0
    %1802 = vmatpush1.msra.mxu0 %v428
    %1803 = vmatprep.subr.mxu0 0.0
    %1804 = vmatpush1.msra.mxu0 %v431
    %1805 = vmatprep.mubr.f32.mxu0 %v1500
    %1806 = vmatmul.mubr.f32.gmra.mrb[0].mxu0 %v1669
    %v1807 = vpop.f32.mrb[0].mxu0
    %v1808 = vadd.f32 %v444, %v1807
    %v1809 = vpop.f32.mrb[0].mxu0
    %1810 = vdwg.mxu0
    %1811 = vmatprep.subr.mxu0 0.0
    %1812 = vmatpush1.msra.mxu0 %v589
    %1813 = vmatprep.subr.mxu0 0.0
    %1814 = vmatpush1.msra.mxu0 %v590
    %1815 = vmatprep.subr.mxu0 0.0
    %1816 = vmatpush1.msra.mxu0 %v591
    %1817 = vmatprep.subr.mxu0 0.0
    %1818 = vmatpush1.msra.mxu0 %v592
    %1819 = vmatprep.subr.mxu0 0.0
    %1820 = vmatpush1.msra.mxu0 %v593
    %1821 = vmatprep.subr.mxu0 0.0
    %1822 = vmatpush1.msra.mxu0 %v594
    %1823 = vmatprep.subr.mxu0 0.0
    %1824 = vmatpush1.msra.mxu0 %v595
    %1825 = vmatprep.subr.mxu0 0.0
    %1826 = vmatpush1.msra.mxu0 %v596
    %1827 = vmatprep.subr.mxu0 0.0
    %1828 = vmatpush1.msra.mxu0 %v597
    %1829 = vmatprep.subr.mxu0 0.0
    %1830 = vmatpush1.msra.mxu0 %v598
    %1831 = vmatprep.subr.mxu0 0.0
    %1832 = vmatpush1.msra.mxu0 %v599
    %1833 = vmatprep.subr.mxu0 0.0
    %1834 = vmatpush1.msra.mxu0 %v600
    %1835 = vmatprep.subr.mxu0 0.0
    %1836 = vmatpush1.msra.mxu0 %v601
    %1837 = vmatprep.subr.mxu0 0.0
    %1838 = vmatpush1.msra.mxu0 %v602
    %1839 = vmatprep.subr.mxu0 0.0
    %1840 = vmatpush1.msra.mxu0 %v603
    %1841 = vmatprep.subr.mxu0 0.0
    %1842 = vmatpush1.msra.mxu0 %v604
    %1843 = vmatprep.subr.mxu0 0.0
    %1844 = vmatpush1.msra.mxu0 0.0
    %1845 = vmatprep.subr.mxu0 0.0
    %1846 = vmatpush1.msra.mxu0 0.0
    %1847 = vmatprep.subr.mxu0 0.0
    %1848 = vmatpush1.msra.mxu0 0.0
    %1849 = vmatprep.subr.mxu0 0.0
    %1850 = vmatpush1.msra.mxu0 0.0
    %1851 = vmatprep.subr.mxu0 0.0
    %1852 = vmatpush1.msra.mxu0 0.0
    %1853 = vmatprep.subr.mxu0 0.0
    %1854 = vmatpush1.msra.mxu0 0.0
    %1855 = vmatprep.subr.mxu0 0.0
    %1856 = vmatpush1.msra.mxu0 0.0
    %1857 = vmatprep.subr.mxu0 0.0
    %1858 = vmatpush1.msra.mxu0 0.0
    %1859 = vmatprep.subr.mxu0 0.0
    %1860 = vmatpush1.msra.mxu0 0.0
    %1861 = vmatprep.subr.mxu0 0.0
    %1862 = vmatpush1.msra.mxu0 0.0
    %1863 = vmatprep.subr.mxu0 0.0
    %1864 = vmatpush1.msra.mxu0 0.0
    %1865 = vmatprep.subr.mxu0 0.0
    %1866 = vmatpush1.msra.mxu0 0.0
    %1867 = vmatprep.subr.mxu0 0.0
    %1868 = vmatpush1.msra.mxu0 0.0
    %1869 = vmatprep.subr.mxu0 0.0
    %1870 = vmatpush1.msra.mxu0 0.0
    %1871 = vmatprep.subr.mxu0 0.0
    %1872 = vmatpush1.msra.mxu0 0.0
    %1873 = vmatprep.subr.mxu0 0.0
    %1874 = vmatpush1.msra.mxu0 0.0
    %1875 = vmatprep.mubr.f32.mxu0 0.0
    %1876 = vmatmul.mubr.f32.gmra.mrb[0].mxu0 %v1500
    %v1877 = vpop.f32.mrb[0].mxu0
    %v1878 = vadd.f32 %v609, %v1877
    %v1879 = vpop.f32.mrb[0].mxu0
    %1880 = vdwg.mxu0
    %v1881 = vxor.u32 %v1737, 2147483648
    %v1882 = vmul.f32 %v1881, 1.442695
    %v1883 = vpow.pop %v1882
    %v1884 = vadd.f32 %v1883, 1.0
    %v1885 = vrcp.pop %v1884
    %v1886 = vmul.f32 1.0, %v1885
    %v1887 = vxor.u32 %v1739, 2147483648
    %v1888 = vmul.f32 %v1887, 1.442695
    %v1889 = vpow.pop %v1888
    %v1890 = vadd.f32 %v1889, 1.0
    %v1891 = vrcp.pop %v1890
    %v1892 = vmul.f32 1.0, %v1891
    %v1893 = vsub.f32 %v1808, %v1878
    %v1894 = vmul.f32 %v1886, %v1878
    %v1895 = vadd.f32 %v1893, %v1894
    %v1896 = vtanh.pop %v1895
    %v1897 = vsub.f32 1.0, %v1892
    %v1898 = vmul.f32 %v1897, %v1896
    %v1899 = vmul.f32 %v1892, %v1500
    %v1900 = vadd.f32 %v1898, %v1899
    %s1901 = scalar_lea.vmem [#allocation2], 24
    %v1902 = vld [vmem:[%s1901] sm:$0x3f]
    %1903 = vmatprep.subr.mxu0 %v106
    %1904 = vmatpush1.msra.mxu0 %v105
    %1905 = vmatprep.subr.mxu0 %v109
    %1906 = vmatpush1.msra.mxu0 %v108
    %1907 = vmatprep.subr.mxu0 %v112
    %1908 = vmatpush1.msra.mxu0 %v111
    %1909 = vmatprep.subr.mxu0 %v115
    %1910 = vmatpush1.msra.mxu0 %v114
    %1911 = vmatprep.subr.mxu0 %v118
    %1912 = vmatpush1.msra.mxu0 %v117
    %1913 = vmatprep.subr.mxu0 %v121
    %1914 = vmatpush1.msra.mxu0 %v120
    %1915 = vmatprep.subr.mxu0 %v124
    %1916 = vmatpush1.msra.mxu0 %v123
    %1917 = vmatprep.subr.mxu0 %v127
    %1918 = vmatpush1.msra.mxu0 %v126
    %1919 = vmatprep.subr.mxu0 %v130
    %1920 = vmatpush1.msra.mxu0 %v129
    %1921 = vmatprep.subr.mxu0 %v133
    %1922 = vmatpush1.msra.mxu0 %v132
    %1923 = vmatprep.subr.mxu0 %v136
    %1924 = vmatpush1.msra.mxu0 %v135
    %1925 = vmatprep.subr.mxu0 %v139
    %1926 = vmatpush1.msra.mxu0 %v138
    %1927 = vmatprep.subr.mxu0 %v142
    %1928 = vmatpush1.msra.mxu0 %v141
    %1929 = vmatprep.subr.mxu0 %v145
    %1930 = vmatpush1.msra.mxu0 %v144
    %1931 = vmatprep.subr.mxu0 %v148
    %1932 = vmatpush1.msra.mxu0 %v147
    %1933 = vmatprep.subr.mxu0 %v151
    %1934 = vmatpush1.msra.mxu0 %v150
    %1935 = vmatprep.subr.mxu0 0.0
    %1936 = vmatpush1.msra.mxu0 0.0
    %1937 = vmatprep.subr.mxu0 0.0
    %1938 = vmatpush1.msra.mxu0 0.0
    %1939 = vmatprep.subr.mxu0 0.0
    %1940 = vmatpush1.msra.mxu0 0.0
    %1941 = vmatprep.subr.mxu0 0.0
    %1942 = vmatpush1.msra.mxu0 0.0
    %1943 = vmatprep.subr.mxu0 0.0
    %1944 = vmatpush1.msra.mxu0 0.0
    %1945 = vmatprep.subr.mxu0 0.0
    %1946 = vmatpush1.msra.mxu0 0.0
    %1947 = vmatprep.subr.mxu0 0.0
    %1948 = vmatpush1.msra.mxu0 0.0
    %1949 = vmatprep.subr.mxu0 0.0
    %1950 = vmatpush1.msra.mxu0 0.0
    %1951 = vmatprep.subr.mxu0 0.0
    %1952 = vmatpush1.msra.mxu0 0.0
    %1953 = vmatprep.subr.mxu0 0.0
    %1954 = vmatpush1.msra.mxu0 0.0
    %1955 = vmatprep.subr.mxu0 0.0
    %1956 = vmatpush1.msra.mxu0 0.0
    %1957 = vmatprep.subr.mxu0 0.0
    %1958 = vmatpush1.msra.mxu0 0.0
    %1959 = vmatprep.subr.mxu0 0.0
    %1960 = vmatpush1.msra.mxu0 0.0
    %1961 = vmatprep.subr.mxu0 0.0
    %1962 = vmatpush1.msra.mxu0 0.0
    %1963 = vmatprep.subr.mxu0 0.0
    %1964 = vmatpush1.msra.mxu0 0.0
    %1965 = vmatprep.subr.mxu0 0.0
    %1966 = vmatpush1.msra.mxu0 0.0
    %1967 = vmatprep.mubr.f32.mxu0 0.0
    %1968 = vmatmul.mubr.f32.gmra.mrb[0].mxu0 %v1669
    %v1969 = vpop.f32.mrb[0].mxu0
    %v1970 = vadd.f32 %v157, %v1969
    %v1971 = vpop.f32.mrb[0].mxu0
    %v1972 = vadd.f32 %v161, %v1971
    %1973 = vdwg.mxu0
    %1974 = vmatprep.subr.mxu0 0.0
    %1975 = vmatpush1.msra.mxu0 %v107
    %1976 = vmatprep.subr.mxu0 0.0
    %1977 = vmatpush1.msra.mxu0 %v110
    %1978 = vmatprep.subr.mxu0 0.0
    %1979 = vmatpush1.msra.mxu0 %v113
    %1980 = vmatprep.subr.mxu0 0.0
    %1981 = vmatpush1.msra.mxu0 %v116
    %1982 = vmatprep.subr.mxu0 0.0
    %1983 = vmatpush1.msra.mxu0 %v119
    %1984 = vmatprep.subr.mxu0 0.0
    %1985 = vmatpush1.msra.mxu0 %v122
    %1986 = vmatprep.subr.mxu0 0.0
    %1987 = vmatpush1.msra.mxu0 %v125
    %1988 = vmatprep.subr.mxu0 0.0
    %1989 = vmatpush1.msra.mxu0 %v128
    %1990 = vmatprep.subr.mxu0 0.0
    %1991 = vmatpush1.msra.mxu0 %v131
    %1992 = vmatprep.subr.mxu0 0.0
    %1993 = vmatpush1.msra.mxu0 %v134
    %1994 = vmatprep.subr.mxu0 0.0
    %1995 = vmatpush1.msra.mxu0 %v137
    %1996 = vmatprep.subr.mxu0 0.0
    %1997 = vmatpush1.msra.mxu0 %v140
    %1998 = vmatprep.subr.mxu0 0.0
    %1999 = vmatpush1.msra.mxu0 %v143
    %2000 = vmatprep.subr.mxu0 0.0
    %2001 = vmatpush1.msra.mxu0 %v146
    %2002 = vmatprep.subr.mxu0 0.0
    %2003 = vmatpush1.msra.mxu0 %v149
    %2004 = vmatprep.subr.mxu0 0.0
    %2005 = vmatpush1.msra.mxu0 %v152
    %2006 = vmatprep.subr.mxu0 0.0
    %2007 = vmatpush1.msra.mxu0 0.0
    %2008 = vmatprep.subr.mxu0 0.0
    %2009 = vmatpush1.msra.mxu0 0.0
    %2010 = vmatprep.subr.mxu0 0.0
    %2011 = vmatpush1.msra.mxu0 0.0
    %2012 = vmatprep.subr.mxu0 0.0
    %2013 = vmatpush1.msra.mxu0 0.0
    %2014 = vmatprep.subr.mxu0 0.0
    %2015 = vmatpush1.msra.mxu0 0.0
    %2016 = vmatprep.subr.mxu0 0.0
    %2017 = vmatpush1.msra.mxu0 0.0
    %2018 = vmatprep.subr.mxu0 0.0
    %2019 = vmatpush1.msra.mxu0 0.0
    %2020 = vmatprep.subr.mxu0 0.0
    %2021 = vmatpush1.msra.mxu0 0.0
    %2022 = vmatprep.subr.mxu0 0.0
    %2023 = vmatpush1.msra.mxu0 0.0
    %2024 = vmatprep.subr.mxu0 0.0
    %2025 = vmatpush1.msra.mxu0 0.0
    %2026 = vmatprep.subr.mxu0 0.0
    %2027 = vmatpush1.msra.mxu0 0.0
    %2028 = vmatprep.subr.mxu0 0.0
    %2029 = vmatpush1.msra.mxu0 0.0
    %2030 = vmatprep.subr.mxu0 0.0
    %2031 = vmatpush1.msra.mxu0 0.0
    %2032 = vmatprep.subr.mxu0 0.0
    %2033 = vmatpush1.msra.mxu0 0.0
    %2034 = vmatprep.subr.mxu0 0.0
    %2035 = vmatpush1.msra.mxu0 0.0
    %2036 = vmatprep.subr.mxu0 0.0
    %2037 = vmatpush1.msra.mxu0 0.0
    %2038 = vmatprep.mubr.f32.mxu0 0.0
    %2039 = vmatmul.mubr.f32.gmra.mrb[0].mxu0 %v1669
    %v2040 = vpop.f32.mrb[0].mxu0
    %v2041 = vadd.f32 %v165, %v2040
    %v2042 = vpop.f32.mrb[0].mxu0
    %2043 = vdwg.mxu0
    %v2044 = vadd.f32 %v1902, %v1970
    %v2045 = vxor.u32 %v2044, 2147483648
    %v2046 = vmul.f32 %v2045, 1.442695
    %v2047 = vpow.pop %v2046
    %v2048 = vadd.f32 %v2047, 1.0
    %v2049 = vrcp.pop %v2048
    %v2050 = vmul.f32 1.0, %v2049
    %v2052 = vrot.slane %v1902, 2
    %v2054 = vadd.f32 %v2052, %v1972
    %v2055 = vxor.u32 %v2054, 2147483648
    %v2056 = vmul.f32 %v2055, 1.442695
    %v2057 = vpow.pop %v2056
    %v2058 = vadd.f32 %v2057, 1.0
    %v2059 = vrcp.pop %v2058
    %v2060 = vmul.f32 1.0, %v2059
    %v2061 = vmul.f32 %v2050, %v2041
    %v2062 = vrot.slane %v1902, 4
    %v2064 = vadd.f32 %v2062, %v2061
    %v2065 = vtanh.pop %v2064
    %v2066 = vsub.f32 1.0, %v2060
    %v2067 = vmul.f32 %v2066, %v2065
    %v2068 = vmul.f32 %v2060, %v1669
    %v2069 = vadd.f32 %v2067, %v2068
    %2070 = vmatprep.subr.mxu0 %v337
    %2071 = vmatpush1.msra.mxu0 %v336
    %2072 = vmatprep.subr.mxu0 %v340
    %2073 = vmatpush1.msra.mxu0 %v339
    %2074 = vmatprep.subr.mxu0 %v343
    %2075 = vmatpush1.msra.mxu0 %v342
    %2076 = vmatprep.subr.mxu0 %v346
    %2077 = vmatpush1.msra.mxu0 %v345
    %2078 = vmatprep.subr.mxu0 %v349
    %2079 = vmatpush1.msra.mxu0 %v348
    %2080 = vmatprep.subr.mxu0 %v352
    %2081 = vmatpush1.msra.mxu0 %v351
    %2082 = vmatprep.subr.mxu0 %v355
    %2083 = vmatpush1.msra.mxu0 %v354
    %2084 = vmatprep.subr.mxu0 %v358
    %2085 = vmatpush1.msra.mxu0 %v357
    %2086 = vmatprep.subr.mxu0 %v361
    %2087 = vmatpush1.msra.mxu0 %v360
    %2088 = vmatprep.subr.mxu0 %v364
    %2089 = vmatpush1.msra.mxu0 %v363
    %2090 = vmatprep.subr.mxu0 %v367
    %2091 = vmatpush1.msra.mxu0 %v366
    %2092 = vmatprep.subr.mxu0 %v370
    %2093 = vmatpush1.msra.mxu0 %v369
    %2094 = vmatprep.subr.mxu0 %v373
    %2095 = vmatpush1.msra.mxu0 %v372
    %2096 = vmatprep.subr.mxu0 %v376
    %2097 = vmatpush1.msra.mxu0 %v375
    %2098 = vmatprep.subr.mxu0 %v379
    %2099 = vmatpush1.msra.mxu0 %v378
    %2100 = vmatprep.subr.mxu0 %v382
    %2101 = vmatpush1.msra.mxu0 %v381
    %2102 = vmatprep.subr.mxu0 %v385
    %2103 = vmatpush1.msra.mxu0 %v384
    %2104 = vmatprep.subr.mxu0 %v388
    %2105 = vmatpush1.msra.mxu0 %v387
    %2106 = vmatprep.subr.mxu0 %v391
    %2107 = vmatpush1.msra.mxu0 %v390
    %2108 = vmatprep.subr.mxu0 %v394
    %2109 = vmatpush1.msra.mxu0 %v393
    %2110 = vmatprep.subr.mxu0 %v397
    %2111 = vmatpush1.msra.mxu0 %v396
    %2112 = vmatprep.subr.mxu0 %v400
    %2113 = vmatpush1.msra.mxu0 %v399
    %2114 = vmatprep.subr.mxu0 %v403
    %2115 = vmatpush1.msra.mxu0 %v402
    %2116 = vmatprep.subr.mxu0 %v406
    %2117 = vmatpush1.msra.mxu0 %v405
    %2118 = vmatprep.subr.mxu0 %v409
    %2119 = vmatpush1.msra.mxu0 %v408
    %2120 = vmatprep.subr.mxu0 %v412
    %2121 = vmatpush1.msra.mxu0 %v411
    %2122 = vmatprep.subr.mxu0 %v415
    %2123 = vmatpush1.msra.mxu0 %v414
    %2124 = vmatprep.subr.mxu0 %v418
    %2125 = vmatpush1.msra.mxu0 %v417
    %2126 = vmatprep.subr.mxu0 %v421
    %2127 = vmatpush1.msra.mxu0 %v420
    %2128 = vmatprep.subr.mxu0 %v424
    %2129 = vmatpush1.msra.mxu0 %v423
    %2130 = vmatprep.subr.mxu0 %v427
    %2131 = vmatpush1.msra.mxu0 %v426
    %2132 = vmatprep.subr.mxu0 %v430
    %2133 = vmatpush1.msra.mxu0 %v429
    %2134 = vmatprep.mubr.f32.mxu0 %v1900
    %2135 = vmatmul.mubr.f32.gmra.mrb[0].mxu0 %v2069
    %v2136 = vpop.f32.mrb[0].mxu0
    %v2137 = vadd.f32 %v436, %v2136
    %v2138 = vpop.f32.mrb[0].mxu0
    %v2139 = vadd.f32 %v440, %v2138
    %2140 = vdwg.mxu0
    %2141 = vmatprep.subr.mxu0 0.0
    %2142 = vmatpush1.msra.mxu0 %v338
    %2143 = vmatprep.subr.mxu0 0.0
    %2144 = vmatpush1.msra.mxu0 %v341
    %2145 = vmatprep.subr.mxu0 0.0
    %2146 = vmatpush1.msra.mxu0 %v344
    %2147 = vmatprep.subr.mxu0 0.0
    %2148 = vmatpush1.msra.mxu0 %v347
    %2149 = vmatprep.subr.mxu0 0.0
    %2150 = vmatpush1.msra.mxu0 %v350
    %2151 = vmatprep.subr.mxu0 0.0
    %2152 = vmatpush1.msra.mxu0 %v353
    %2153 = vmatprep.subr.mxu0 0.0
    %2154 = vmatpush1.msra.mxu0 %v356
    %2155 = vmatprep.subr.mxu0 0.0
    %2156 = vmatpush1.msra.mxu0 %v359
    %2157 = vmatprep.subr.mxu0 0.0
    %2158 = vmatpush1.msra.mxu0 %v362
    %2159 = vmatprep.subr.mxu0 0.0
    %2160 = vmatpush1.msra.mxu0 %v365
    %2161 = vmatprep.subr.mxu0 0.0
    %2162 = vmatpush1.msra.mxu0 %v368
    %2163 = vmatprep.subr.mxu0 0.0
    %2164 = vmatpush1.msra.mxu0 %v371
    %2165 = vmatprep.subr.mxu0 0.0
    %2166 = vmatpush1.msra.mxu0 %v374
    %2167 = vmatprep.subr.mxu0 0.0
    %2168 = vmatpush1.msra.mxu0 %v377
    %2169 = vmatprep.subr.mxu0 0.0
    %2170 = vmatpush1.msra.mxu0 %v380
    %2171 = vmatprep.subr.mxu0 0.0
    %2172 = vmatpush1.msra.mxu0 %v383
    %2173 = vmatprep.subr.mxu0 0.0
    %2174 = vmatpush1.msra.mxu0 %v386
    %2175 = vmatprep.subr.mxu0 0.0
    %2176 = vmatpush1.msra.mxu0 %v389
    %2177 = vmatprep.subr.mxu0 0.0
    %2178 = vmatpush1.msra.mxu0 %v392
    %2179 = vmatprep.subr.mxu0 0.0
    %2180 = vmatpush1.msra.mxu0 %v395
    %2181 = vmatprep.subr.mxu0 0.0
    %2182 = vmatpush1.msra.mxu0 %v398
    %2183 = vmatprep.subr.mxu0 0.0
    %2184 = vmatpush1.msra.mxu0 %v401
    %2185 = vmatprep.subr.mxu0 0.0
    %2186 = vmatpush1.msra.mxu0 %v404
    %2187 = vmatprep.subr.mxu0 0.0
    %2188 = vmatpush1.msra.mxu0 %v407
    %2189 = vmatprep.subr.mxu0 0.0
    %2190 = vmatpush1.msra.mxu0 %v410
    %2191 = vmatprep.subr.mxu0 0.0
    %2192 = vmatpush1.msra.mxu0 %v413
    %2193 = vmatprep.subr.mxu0 0.0
    %2194 = vmatpush1.msra.mxu0 %v416
    %2195 = vmatprep.subr.mxu0 0.0
    %2196 = vmatpush1.msra.mxu0 %v419
    %2197 = vmatprep.subr.mxu0 0.0
    %2198 = vmatpush1.msra.mxu0 %v422
    %2199 = vmatprep.subr.mxu0 0.0
    %2200 = vmatpush1.msra.mxu0 %v425
    %2201 = vmatprep.subr.mxu0 0.0
    %2202 = vmatpush1.msra.mxu0 %v428
    %2203 = vmatprep.subr.mxu0 0.0
    %2204 = vmatpush1.msra.mxu0 %v431
    %2205 = vmatprep.mubr.f32.mxu0 %v1900
    %2206 = vmatmul.mubr.f32.gmra.mrb[0].mxu0 %v2069
    %v2207 = vpop.f32.mrb[0].mxu0
    %v2208 = vadd.f32 %v444, %v2207
    %v2209 = vpop.f32.mrb[0].mxu0
    %2210 = vdwg.mxu0
    %2211 = vmatprep.subr.mxu0 0.0
    %2212 = vmatpush1.msra.mxu0 %v589
    %2213 = vmatprep.subr.mxu0 0.0
    %2214 = vmatpush1.msra.mxu0 %v590
    %2215 = vmatprep.subr.mxu0 0.0
    %2216 = vmatpush1.msra.mxu0 %v591
    %2217 = vmatprep.subr.mxu0 0.0
    %2218 = vmatpush1.msra.mxu0 %v592
    %2219 = vmatprep.subr.mxu0 0.0
    %2220 = vmatpush1.msra.mxu0 %v593
    %2221 = vmatprep.subr.mxu0 0.0
    %2222 = vmatpush1.msra.mxu0 %v594
    %2223 = vmatprep.subr.mxu0 0.0
    %2224 = vmatpush1.msra.mxu0 %v595
    %2225 = vmatprep.subr.mxu0 0.0
    %2226 = vmatpush1.msra.mxu0 %v596
    %2227 = vmatprep.subr.mxu0 0.0
    %2228 = vmatpush1.msra.mxu0 %v597
    %2229 = vmatprep.subr.mxu0 0.0
    %2230 = vmatpush1.msra.mxu0 %v598
    %2231 = vmatprep.subr.mxu0 0.0
    %2232 = vmatpush1.msra.mxu0 %v599
    %2233 = vmatprep.subr.mxu0 0.0
    %2234 = vmatpush1.msra.mxu0 %v600
    %2235 = vmatprep.subr.mxu0 0.0
    %2236 = vmatpush1.msra.mxu0 %v601
    %2237 = vmatprep.subr.mxu0 0.0
    %2238 = vmatpush1.msra.mxu0 %v602
    %2239 = vmatprep.subr.mxu0 0.0
    %2240 = vmatpush1.msra.mxu0 %v603
    %2241 = vmatprep.subr.mxu0 0.0
    %2242 = vmatpush1.msra.mxu0 %v604
    %2243 = vmatprep.subr.mxu0 0.0
    %2244 = vmatpush1.msra.mxu0 0.0
    %2245 = vmatprep.subr.mxu0 0.0
    %2246 = vmatpush1.msra.mxu0 0.0
    %2247 = vmatprep.subr.mxu0 0.0
    %2248 = vmatpush1.msra.mxu0 0.0
    %2249 = vmatprep.subr.mxu0 0.0
    %2250 = vmatpush1.msra.mxu0 0.0
    %2251 = vmatprep.subr.mxu0 0.0
    %2252 = vmatpush1.msra.mxu0 0.0
    %2253 = vmatprep.subr.mxu0 0.0
    %2254 = vmatpush1.msra.mxu0 0.0
    %2255 = vmatprep.subr.mxu0 0.0
    %2256 = vmatpush1.msra.mxu0 0.0
    %2257 = vmatprep.subr.mxu0 0.0
    %2258 = vmatpush1.msra.mxu0 0.0
    %2259 = vmatprep.subr.mxu0 0.0
    %2260 = vmatpush1.msra.mxu0 0.0
    %2261 = vmatprep.subr.mxu0 0.0
    %2262 = vmatpush1.msra.mxu0 0.0
    %2263 = vmatprep.subr.mxu0 0.0
    %2264 = vmatpush1.msra.mxu0 0.0
    %2265 = vmatprep.subr.mxu0 0.0
    %2266 = vmatpush1.msra.mxu0 0.0
    %2267 = vmatprep.subr.mxu0 0.0
    %2268 = vmatpush1.msra.mxu0 0.0
    %2269 = vmatprep.subr.mxu0 0.0
    %2270 = vmatpush1.msra.mxu0 0.0
    %2271 = vmatprep.subr.mxu0 0.0
    %2272 = vmatpush1.msra.mxu0 0.0
    %2273 = vmatprep.subr.mxu0 0.0
    %2274 = vmatpush1.msra.mxu0 0.0
    %2275 = vmatprep.mubr.f32.mxu0 0.0
    %2276 = vmatmul.mubr.f32.gmra.mrb[0].mxu0 %v1900
    %v2277 = vpop.f32.mrb[0].mxu0
    %v2278 = vadd.f32 %v609, %v2277
    %v2279 = vpop.f32.mrb[0].mxu0
    %2280 = vdwg.mxu0
    %v2281 = vxor.u32 %v2137, 2147483648
    %v2282 = vmul.f32 %v2281, 1.442695
    %v2283 = vpow.pop %v2282
    %v2284 = vadd.f32 %v2283, 1.0
    %v2285 = vrcp.pop %v2284
    %v2286 = vmul.f32 1.0, %v2285
    %v2287 = vxor.u32 %v2139, 2147483648
    %v2288 = vmul.f32 %v2287, 1.442695
    %v2289 = vpow.pop %v2288
    %v2290 = vadd.f32 %v2289, 1.0
    %v2291 = vrcp.pop %v2290
    %v2292 = vmul.f32 1.0, %v2291
    %v2293 = vsub.f32 %v2208, %v2278
    %v2294 = vmul.f32 %v2286, %v2278
    %v2295 = vadd.f32 %v2293, %v2294
    %v2296 = vtanh.pop %v2295
    %v2297 = vsub.f32 1.0, %v2292
    %v2298 = vmul.f32 %v2297, %v2296
    %v2299 = vmul.f32 %v2292, %v1900
    %v2300 = vadd.f32 %v2298, %v2299
    %s2301 = scalar_lea.vmem [#allocation2], 30
    %v2302 = vld [vmem:[%s2301] sm:$0x3f]
    %2303 = vmatprep.subr.mxu0 %v106
    %2304 = vmatpush1.msra.mxu0 %v105
    %2305 = vmatprep.subr.mxu0 %v109
    %2306 = vmatpush1.msra.mxu0 %v108
    %2307 = vmatprep.subr.mxu0 %v112
    %2308 = vmatpush1.msra.mxu0 %v111
    %2309 = vmatprep.subr.mxu0 %v115
    %2310 = vmatpush1.msra.mxu0 %v114
    %2311 = vmatprep.subr.mxu0 %v118
    %2312 = vmatpush1.msra.mxu0 %v117
    %2313 = vmatprep.subr.mxu0 %v121
    %2314 = vmatpush1.msra.mxu0 %v120
    %2315 = vmatprep.subr.mxu0 %v124
    %2316 = vmatpush1.msra.mxu0 %v123
    %2317 = vmatprep.subr.mxu0 %v127
    %2318 = vmatpush1.msra.mxu0 %v126
    %2319 = vmatprep.subr.mxu0 %v130
    %2320 = vmatpush1.msra.mxu0 %v129
    %2321 = vmatprep.subr.mxu0 %v133
    %2322 = vmatpush1.msra.mxu0 %v132
    %2323 = vmatprep.subr.mxu0 %v136
    %2324 = vmatpush1.msra.mxu0 %v135
    %2325 = vmatprep.subr.mxu0 %v139
    %2326 = vmatpush1.msra.mxu0 %v138
    %2327 = vmatprep.subr.mxu0 %v142
    %2328 = vmatpush1.msra.mxu0 %v141
    %2329 = vmatprep.subr.mxu0 %v145
    %2330 = vmatpush1.msra.mxu0 %v144
    %2331 = vmatprep.subr.mxu0 %v148
    %2332 = vmatpush1.msra.mxu0 %v147
    %2333 = vmatprep.subr.mxu0 %v151
    %2334 = vmatpush1.msra.mxu0 %v150
    %2335 = vmatprep.subr.mxu0 0.0
    %2336 = vmatpush1.msra.mxu0 0.0
    %2337 = vmatprep.subr.mxu0 0.0
    %2338 = vmatpush1.msra.mxu0 0.0
    %2339 = vmatprep.subr.mxu0 0.0
    %2340 = vmatpush1.msra.mxu0 0.0
    %2341 = vmatprep.subr.mxu0 0.0
    %2342 = vmatpush1.msra.mxu0 0.0
    %2343 = vmatprep.subr.mxu0 0.0
    %2344 = vmatpush1.msra.mxu0 0.0
    %2345 = vmatprep.subr.mxu0 0.0
    %2346 = vmatpush1.msra.mxu0 0.0
    %2347 = vmatprep.subr.mxu0 0.0
    %2348 = vmatpush1.msra.mxu0 0.0
    %2349 = vmatprep.subr.mxu0 0.0
    %2350 = vmatpush1.msra.mxu0 0.0
    %2351 = vmatprep.subr.mxu0 0.0
    %2352 = vmatpush1.msra.mxu0 0.0
    %2353 = vmatprep.subr.mxu0 0.0
    %2354 = vmatpush1.msra.mxu0 0.0
    %2355 = vmatprep.subr.mxu0 0.0
    %2356 = vmatpush1.msra.mxu0 0.0
    %2357 = vmatprep.subr.mxu0 0.0
    %2358 = vmatpush1.msra.mxu0 0.0
    %2359 = vmatprep.subr.mxu0 0.0
    %2360 = vmatpush1.msra.mxu0 0.0
    %2361 = vmatprep.subr.mxu0 0.0
    %2362 = vmatpush1.msra.mxu0 0.0
    %2363 = vmatprep.subr.mxu0 0.0
    %2364 = vmatpush1.msra.mxu0 0.0
    %2365 = vmatprep.subr.mxu0 0.0
    %2366 = vmatpush1.msra.mxu0 0.0
    %2367 = vmatprep.mubr.f32.mxu0 0.0
    %2368 = vmatmul.mubr.f32.gmra.mrb[0].mxu0 %v2069
    %v2369 = vpop.f32.mrb[0].mxu0
    %v2370 = vadd.f32 %v157, %v2369
    %v2371 = vpop.f32.mrb[0].mxu0
    %v2372 = vadd.f32 %v161, %v2371
    %2373 = vdwg.mxu0
    %2374 = vmatprep.subr.mxu0 0.0
    %2375 = vmatpush1.msra.mxu0 %v107
    %2376 = vmatprep.subr.mxu0 0.0
    %2377 = vmatpush1.msra.mxu0 %v110
    %2378 = vmatprep.subr.mxu0 0.0
    %2379 = vmatpush1.msra.mxu0 %v113
    %2380 = vmatprep.subr.mxu0 0.0
    %2381 = vmatpush1.msra.mxu0 %v116
    %2382 = vmatprep.subr.mxu0 0.0
    %2383 = vmatpush1.msra.mxu0 %v119
    %2384 = vmatprep.subr.mxu0 0.0
    %2385 = vmatpush1.msra.mxu0 %v122
    %2386 = vmatprep.subr.mxu0 0.0
    %2387 = vmatpush1.msra.mxu0 %v125
    %2388 = vmatprep.subr.mxu0 0.0
    %2389 = vmatpush1.msra.mxu0 %v128
    %2390 = vmatprep.subr.mxu0 0.0
    %2391 = vmatpush1.msra.mxu0 %v131
    %2392 = vmatprep.subr.mxu0 0.0
    %2393 = vmatpush1.msra.mxu0 %v134
    %2394 = vmatprep.subr.mxu0 0.0
    %2395 = vmatpush1.msra.mxu0 %v137
    %2396 = vmatprep.subr.mxu0 0.0
    %2397 = vmatpush1.msra.mxu0 %v140
    %2398 = vmatprep.subr.mxu0 0.0
    %2399 = vmatpush1.msra.mxu0 %v143
    %2400 = vmatprep.subr.mxu0 0.0
    %2401 = vmatpush1.msra.mxu0 %v146
    %2402 = vmatprep.subr.mxu0 0.0
    %2403 = vmatpush1.msra.mxu0 %v149
    %2404 = vmatprep.subr.mxu0 0.0
    %2405 = vmatpush1.msra.mxu0 %v152
    %2406 = vmatprep.subr.mxu0 0.0
    %2407 = vmatpush1.msra.mxu0 0.0
    %2408 = vmatprep.subr.mxu0 0.0
    %2409 = vmatpush1.msra.mxu0 0.0
    %2410 = vmatprep.subr.mxu0 0.0
    %2411 = vmatpush1.msra.mxu0 0.0
    %2412 = vmatprep.subr.mxu0 0.0
    %2413 = vmatpush1.msra.mxu0 0.0
    %2414 = vmatprep.subr.mxu0 0.0
    %2415 = vmatpush1.msra.mxu0 0.0
    %2416 = vmatprep.subr.mxu0 0.0
    %2417 = vmatpush1.msra.mxu0 0.0
    %2418 = vmatprep.subr.mxu0 0.0
    %2419 = vmatpush1.msra.mxu0 0.0
    %2420 = vmatprep.subr.mxu0 0.0
    %2421 = vmatpush1.msra.mxu0 0.0
    %2422 = vmatprep.subr.mxu0 0.0
    %2423 = vmatpush1.msra.mxu0 0.0
    %2424 = vmatprep.subr.mxu0 0.0
    %2425 = vmatpush1.msra.mxu0 0.0
    %2426 = vmatprep.subr.mxu0 0.0
    %2427 = vmatpush1.msra.mxu0 0.0
    %2428 = vmatprep.subr.mxu0 0.0
    %2429 = vmatpush1.msra.mxu0 0.0
    %2430 = vmatprep.subr.mxu0 0.0
    %2431 = vmatpush1.msra.mxu0 0.0
    %2432 = vmatprep.subr.mxu0 0.0
    %2433 = vmatpush1.msra.mxu0 0.0
    %2434 = vmatprep.subr.mxu0 0.0
    %2435 = vmatpush1.msra.mxu0 0.0
    %2436 = vmatprep.subr.mxu0 0.0
    %2437 = vmatpush1.msra.mxu0 0.0
    %2438 = vmatprep.mubr.f32.mxu0 0.0
    %2439 = vmatmul.mubr.f32.gmra.mrb[0].mxu0 %v2069
    %v2440 = vpop.f32.mrb[0].mxu0
    %v2441 = vadd.f32 %v165, %v2440
    %v2442 = vpop.f32.mrb[0].mxu0
    %2443 = vdwg.mxu0
    %v2444 = vadd.f32 %v2302, %v2370
    %v2445 = vxor.u32 %v2444, 2147483648
    %v2446 = vmul.f32 %v2445, 1.442695
    %v2447 = vpow.pop %v2446
    %v2448 = vadd.f32 %v2447, 1.0
    %v2449 = vrcp.pop %v2448
    %v2450 = vmul.f32 1.0, %v2449
    %v2452 = vrot.slane %v2302, 2
    %v2454 = vadd.f32 %v2452, %v2372
    %v2455 = vxor.u32 %v2454, 2147483648
    %v2456 = vmul.f32 %v2455, 1.442695
    %v2457 = vpow.pop %v2456
    %v2458 = vadd.f32 %v2457, 1.0
    %v2459 = vrcp.pop %v2458
    %v2460 = vmul.f32 1.0, %v2459
    %v2461 = vmul.f32 %v2450, %v2441
    %v2462 = vrot.slane %v2302, 4
    %v2464 = vadd.f32 %v2462, %v2461
    %v2465 = vtanh.pop %v2464
    %v2466 = vsub.f32 1.0, %v2460
    %v2467 = vmul.f32 %v2466, %v2465
    %v2468 = vmul.f32 %v2460, %v2069
    %v2469 = vadd.f32 %v2467, %v2468
    %2470 = vmatprep.subr.mxu0 %v337
    %2471 = vmatpush1.msra.mxu0 %v336
    %2472 = vmatprep.subr.mxu0 %v340
    %2473 = vmatpush1.msra.mxu0 %v339
    %2474 = vmatprep.subr.mxu0 %v343
    %2475 = vmatpush1.msra.mxu0 %v342
    %2476 = vmatprep.subr.mxu0 %v346
    %2477 = vmatpush1.msra.mxu0 %v345
    %2478 = vmatprep.subr.mxu0 %v349
    %2479 = vmatpush1.msra.mxu0 %v348
    %2480 = vmatprep.subr.mxu0 %v352
    %2481 = vmatpush1.msra.mxu0 %v351
    %2482 = vmatprep.subr.mxu0 %v355
    %2483 = vmatpush1.msra.mxu0 %v354
    %2484 = vmatprep.subr.mxu0 %v358
    %2485 = vmatpush1.msra.mxu0 %v357
    %2486 = vmatprep.subr.mxu0 %v361
    %2487 = vmatpush1.msra.mxu0 %v360
    %2488 = vmatprep.subr.mxu0 %v364
    %2489 = vmatpush1.msra.mxu0 %v363
    %2490 = vmatprep.subr.mxu0 %v367
    %2491 = vmatpush1.msra.mxu0 %v366
    %2492 = vmatprep.subr.mxu0 %v370
    %2493 = vmatpush1.msra.mxu0 %v369
    %2494 = vmatprep.subr.mxu0 %v373
    %2495 = vmatpush1.msra.mxu0 %v372
    %2496 = vmatprep.subr.mxu0 %v376
    %2497 = vmatpush1.msra.mxu0 %v375
    %2498 = vmatprep.subr.mxu0 %v379
    %2499 = vmatpush1.msra.mxu0 %v378
    %2500 = vmatprep.subr.mxu0 %v382
    %2501 = vmatpush1.msra.mxu0 %v381
    %2502 = vmatprep.subr.mxu0 %v385
    %2503 = vmatpush1.msra.mxu0 %v384
    %2504 = vmatprep.subr.mxu0 %v388
    %2505 = vmatpush1.msra.mxu0 %v387
    %2506 = vmatprep.subr.mxu0 %v391
    %2507 = vmatpush1.msra.mxu0 %v390
    %2508 = vmatprep.subr.mxu0 %v394
    %2509 = vmatpush1.msra.mxu0 %v393
    %2510 = vmatprep.subr.mxu0 %v397
    %2511 = vmatpush1.msra.mxu0 %v396
    %2512 = vmatprep.subr.mxu0 %v400
    %2513 = vmatpush1.msra.mxu0 %v399
    %2514 = vmatprep.subr.mxu0 %v403
    %2515 = vmatpush1.msra.mxu0 %v402
    %2516 = vmatprep.subr.mxu0 %v406
    %2517 = vmatpush1.msra.mxu0 %v405
    %2518 = vmatprep.subr.mxu0 %v409
    %2519 = vmatpush1.msra.mxu0 %v408
    %2520 = vmatprep.subr.mxu0 %v412
    %2521 = vmatpush1.msra.mxu0 %v411
    %2522 = vmatprep.subr.mxu0 %v415
    %2523 = vmatpush1.msra.mxu0 %v414
    %2524 = vmatprep.subr.mxu0 %v418
    %2525 = vmatpush1.msra.mxu0 %v417
    %2526 = vmatprep.subr.mxu0 %v421
    %2527 = vmatpush1.msra.mxu0 %v420
    %2528 = vmatprep.subr.mxu0 %v424
    %2529 = vmatpush1.msra.mxu0 %v423
    %2530 = vmatprep.subr.mxu0 %v427
    %2531 = vmatpush1.msra.mxu0 %v426
    %2532 = vmatprep.subr.mxu0 %v430
    %2533 = vmatpush1.msra.mxu0 %v429
    %2534 = vmatprep.mubr.f32.mxu0 %v2300
    %2535 = vmatmul.mubr.f32.gmra.mrb[0].mxu0 %v2469
    %v2536 = vpop.f32.mrb[0].mxu0
    %v2537 = vadd.f32 %v436, %v2536
    %v2538 = vpop.f32.mrb[0].mxu0
    %v2539 = vadd.f32 %v440, %v2538
    %2540 = vdwg.mxu0
    %2541 = vmatprep.subr.mxu0 0.0
    %2542 = vmatpush1.msra.mxu0 %v338
    %2543 = vmatprep.subr.mxu0 0.0
    %2544 = vmatpush1.msra.mxu0 %v341
    %2545 = vmatprep.subr.mxu0 0.0
    %2546 = vmatpush1.msra.mxu0 %v344
    %2547 = vmatprep.subr.mxu0 0.0
    %2548 = vmatpush1.msra.mxu0 %v347
    %2549 = vmatprep.subr.mxu0 0.0
    %2550 = vmatpush1.msra.mxu0 %v350
    %2551 = vmatprep.subr.mxu0 0.0
    %2552 = vmatpush1.msra.mxu0 %v353
    %2553 = vmatprep.subr.mxu0 0.0
    %2554 = vmatpush1.msra.mxu0 %v356
    %2555 = vmatprep.subr.mxu0 0.0
    %2556 = vmatpush1.msra.mxu0 %v359
    %2557 = vmatprep.subr.mxu0 0.0
    %2558 = vmatpush1.msra.mxu0 %v362
    %2559 = vmatprep.subr.mxu0 0.0
    %2560 = vmatpush1.msra.mxu0 %v365
    %2561 = vmatprep.subr.mxu0 0.0
    %2562 = vmatpush1.msra.mxu0 %v368
    %2563 = vmatprep.subr.mxu0 0.0
    %2564 = vmatpush1.msra.mxu0 %v371
    %2565 = vmatprep.subr.mxu0 0.0
    %2566 = vmatpush1.msra.mxu0 %v374
    %2567 = vmatprep.subr.mxu0 0.0
    %2568 = vmatpush1.msra.mxu0 %v377
    %2569 = vmatprep.subr.mxu0 0.0
    %2570 = vmatpush1.msra.mxu0 %v380
    %2571 = vmatprep.subr.mxu0 0.0
    %2572 = vmatpush1.msra.mxu0 %v383
    %2573 = vmatprep.subr.mxu0 0.0
    %2574 = vmatpush1.msra.mxu0 %v386
    %2575 = vmatprep.subr.mxu0 0.0
    %2576 = vmatpush1.msra.mxu0 %v389
    %2577 = vmatprep.subr.mxu0 0.0
    %2578 = vmatpush1.msra.mxu0 %v392
    %2579 = vmatprep.subr.mxu0 0.0
    %2580 = vmatpush1.msra.mxu0 %v395
    %2581 = vmatprep.subr.mxu0 0.0
    %2582 = vmatpush1.msra.mxu0 %v398
    %2583 = vmatprep.subr.mxu0 0.0
    %2584 = vmatpush1.msra.mxu0 %v401
    %2585 = vmatprep.subr.mxu0 0.0
    %2586 = vmatpush1.msra.mxu0 %v404
    %2587 = vmatprep.subr.mxu0 0.0
    %2588 = vmatpush1.msra.mxu0 %v407
    %2589 = vmatprep.subr.mxu0 0.0
    %2590 = vmatpush1.msra.mxu0 %v410
    %2591 = vmatprep.subr.mxu0 0.0
    %2592 = vmatpush1.msra.mxu0 %v413
    %2593 = vmatprep.subr.mxu0 0.0
    %2594 = vmatpush1.msra.mxu0 %v416
    %2595 = vmatprep.subr.mxu0 0.0
    %2596 = vmatpush1.msra.mxu0 %v419
    %2597 = vmatprep.subr.mxu0 0.0
    %2598 = vmatpush1.msra.mxu0 %v422
    %2599 = vmatprep.subr.mxu0 0.0
    %2600 = vmatpush1.msra.mxu0 %v425
    %2601 = vmatprep.subr.mxu0 0.0
    %2602 = vmatpush1.msra.mxu0 %v428
    %2603 = vmatprep.subr.mxu0 0.0
    %2604 = vmatpush1.msra.mxu0 %v431
    %2605 = vmatprep.mubr.f32.mxu0 %v2300
    %2606 = vmatmul.mubr.f32.gmra.mrb[0].mxu0 %v2469
    %v2607 = vpop.f32.mrb[0].mxu0
    %v2608 = vadd.f32 %v444, %v2607
    %v2609 = vpop.f32.mrb[0].mxu0
    %2610 = vdwg.mxu0
    %2611 = vmatprep.subr.mxu0 0.0
    %2612 = vmatpush1.msra.mxu0 %v589
    %2613 = vmatprep.subr.mxu0 0.0
    %2614 = vmatpush1.msra.mxu0 %v590
    %2615 = vmatprep.subr.mxu0 0.0
    %2616 = vmatpush1.msra.mxu0 %v591
    %2617 = vmatprep.subr.mxu0 0.0
    %2618 = vmatpush1.msra.mxu0 %v592
    %2619 = vmatprep.subr.mxu0 0.0
    %2620 = vmatpush1.msra.mxu0 %v593
    %2621 = vmatprep.subr.mxu0 0.0
    %2622 = vmatpush1.msra.mxu0 %v594
    %2623 = vmatprep.subr.mxu0 0.0
    %2624 = vmatpush1.msra.mxu0 %v595
    %2625 = vmatprep.subr.mxu0 0.0
    %2626 = vmatpush1.msra.mxu0 %v596
    %2627 = vmatprep.subr.mxu0 0.0
    %2628 = vmatpush1.msra.mxu0 %v597
    %2629 = vmatprep.subr.mxu0 0.0
    %2630 = vmatpush1.msra.mxu0 %v598
    %2631 = vmatprep.subr.mxu0 0.0
    %2632 = vmatpush1.msra.mxu0 %v599
    %2633 = vmatprep.subr.mxu0 0.0
    %2634 = vmatpush1.msra.mxu0 %v600
    %2635 = vmatprep.subr.mxu0 0.0
    %2636 = vmatpush1.msra.mxu0 %v601
    %2637 = vmatprep.subr.mxu0 0.0
    %2638 = vmatpush1.msra.mxu0 %v602
    %2639 = vmatprep.subr.mxu0 0.0
    %2640 = vmatpush1.msra.mxu0 %v603
    %2641 = vmatprep.subr.mxu0 0.0
    %2642 = vmatpush1.msra.mxu0 %v604
    %2643 = vmatprep.subr.mxu0 0.0
    %2644 = vmatpush1.msra.mxu0 0.0
    %2645 = vmatprep.subr.mxu0 0.0
    %2646 = vmatpush1.msra.mxu0 0.0
    %2647 = vmatprep.subr.mxu0 0.0
    %2648 = vmatpush1.msra.mxu0 0.0
    %2649 = vmatprep.subr.mxu0 0.0
    %2650 = vmatpush1.msra.mxu0 0.0
    %2651 = vmatprep.subr.mxu0 0.0
    %2652 = vmatpush1.msra.mxu0 0.0
    %2653 = vmatprep.subr.mxu0 0.0
    %2654 = vmatpush1.msra.mxu0 0.0
    %2655 = vmatprep.subr.mxu0 0.0
    %2656 = vmatpush1.msra.mxu0 0.0
    %2657 = vmatprep.subr.mxu0 0.0
    %2658 = vmatpush1.msra.mxu0 0.0
    %2659 = vmatprep.subr.mxu0 0.0
    %2660 = vmatpush1.msra.mxu0 0.0
    %2661 = vmatprep.subr.mxu0 0.0
    %2662 = vmatpush1.msra.mxu0 0.0
    %2663 = vmatprep.subr.mxu0 0.0
    %2664 = vmatpush1.msra.mxu0 0.0
    %2665 = vmatprep.subr.mxu0 0.0
    %2666 = vmatpush1.msra.mxu0 0.0
    %2667 = vmatprep.subr.mxu0 0.0
    %2668 = vmatpush1.msra.mxu0 0.0
    %2669 = vmatprep.subr.mxu0 0.0
    %2670 = vmatpush1.msra.mxu0 0.0
    %2671 = vmatprep.subr.mxu0 0.0
    %2672 = vmatpush1.msra.mxu0 0.0
    %2673 = vmatprep.subr.mxu0 0.0
    %2674 = vmatpush1.msra.mxu0 0.0
    %2675 = vmatprep.mubr.f32.mxu0 0.0
    %2676 = vmatmul.mubr.f32.gmra.mrb[0].mxu0 %v2300
    %v2677 = vpop.f32.mrb[0].mxu0
    %v2678 = vadd.f32 %v609, %v2677
    %v2679 = vpop.f32.mrb[0].mxu0
    %2680 = vdwg.mxu0
    %v2681 = vxor.u32 %v2537, 2147483648
    %v2682 = vmul.f32 %v2681, 1.442695
    %v2683 = vpow.pop %v2682
    %v2684 = vadd.f32 %v2683, 1.0
    %v2685 = vrcp.pop %v2684
    %v2686 = vmul.f32 1.0, %v2685
    %v2687 = vxor.u32 %v2539, 2147483648
    %v2688 = vmul.f32 %v2687, 1.442695
    %v2689 = vpow.pop %v2688
    %v2690 = vadd.f32 %v2689, 1.0
    %v2691 = vrcp.pop %v2690
    %v2692 = vmul.f32 1.0, %v2691
    %v2693 = vsub.f32 %v2608, %v2678
    %v2694 = vmul.f32 %v2686, %v2678
    %v2695 = vadd.f32 %v2693, %v2694
    %v2696 = vtanh.pop %v2695
    %v2697 = vsub.f32 1.0, %v2692
    %v2698 = vmul.f32 %v2697, %v2696
    %v2699 = vmul.f32 %v2692, %v2300
    %v2700 = vadd.f32 %v2698, %v2699
    %s2701 = scalar_lea.vmem [#allocation2], 36
    %v2702 = vld [vmem:[%s2701] sm:$0x3f]
    %2703 = vmatprep.subr.mxu0 %v106
    %2704 = vmatpush1.msra.mxu0 %v105
    %2705 = vmatprep.subr.mxu0 %v109
    %2706 = vmatpush1.msra.mxu0 %v108
    %2707 = vmatprep.subr.mxu0 %v112
    %2708 = vmatpush1.msra.mxu0 %v111
    %2709 = vmatprep.subr.mxu0 %v115
    %2710 = vmatpush1.msra.mxu0 %v114
    %2711 = vmatprep.subr.mxu0 %v118
    %2712 = vmatpush1.msra.mxu0 %v117
    %2713 = vmatprep.subr.mxu0 %v121
    %2714 = vmatpush1.msra.mxu0 %v120
    %2715 = vmatprep.subr.mxu0 %v124
    %2716 = vmatpush1.msra.mxu0 %v123
    %2717 = vmatprep.subr.mxu0 %v127
    %2718 = vmatpush1.msra.mxu0 %v126
    %2719 = vmatprep.subr.mxu0 %v130
    %2720 = vmatpush1.msra.mxu0 %v129
    %2721 = vmatprep.subr.mxu0 %v133
    %2722 = vmatpush1.msra.mxu0 %v132
    %2723 = vmatprep.subr.mxu0 %v136
    %2724 = vmatpush1.msra.mxu0 %v135
    %2725 = vmatprep.subr.mxu0 %v139
    %2726 = vmatpush1.msra.mxu0 %v138
    %2727 = vmatprep.subr.mxu0 %v142
    %2728 = vmatpush1.msra.mxu0 %v141
    %2729 = vmatprep.subr.mxu0 %v145
    %2730 = vmatpush1.msra.mxu0 %v144
    %2731 = vmatprep.subr.mxu0 %v148
    %2732 = vmatpush1.msra.mxu0 %v147
    %2733 = vmatprep.subr.mxu0 %v151
    %2734 = vmatpush1.msra.mxu0 %v150
    %2735 = vmatprep.subr.mxu0 0.0
    %2736 = vmatpush1.msra.mxu0 0.0
    %2737 = vmatprep.subr.mxu0 0.0
    %2738 = vmatpush1.msra.mxu0 0.0
    %2739 = vmatprep.subr.mxu0 0.0
    %2740 = vmatpush1.msra.mxu0 0.0
    %2741 = vmatprep.subr.mxu0 0.0
    %2742 = vmatpush1.msra.mxu0 0.0
    %2743 = vmatprep.subr.mxu0 0.0
    %2744 = vmatpush1.msra.mxu0 0.0
    %2745 = vmatprep.subr.mxu0 0.0
    %2746 = vmatpush1.msra.mxu0 0.0
    %2747 = vmatprep.subr.mxu0 0.0
    %2748 = vmatpush1.msra.mxu0 0.0
    %2749 = vmatprep.subr.mxu0 0.0
    %2750 = vmatpush1.msra.mxu0 0.0
    %2751 = vmatprep.subr.mxu0 0.0
    %2752 = vmatpush1.msra.mxu0 0.0
    %2753 = vmatprep.subr.mxu0 0.0
    %2754 = vmatpush1.msra.mxu0 0.0
    %2755 = vmatprep.subr.mxu0 0.0
    %2756 = vmatpush1.msra.mxu0 0.0
    %2757 = vmatprep.subr.mxu0 0.0
    %2758 = vmatpush1.msra.mxu0 0.0
    %2759 = vmatprep.subr.mxu0 0.0
    %2760 = vmatpush1.msra.mxu0 0.0
    %2761 = vmatprep.subr.mxu0 0.0
    %2762 = vmatpush1.msra.mxu0 0.0
    %2763 = vmatprep.subr.mxu0 0.0
    %2764 = vmatpush1.msra.mxu0 0.0
    %2765 = vmatprep.subr.mxu0 0.0
    %2766 = vmatpush1.msra.mxu0 0.0
    %2767 = vmatprep.mubr.f32.mxu0 0.0
    %2768 = vmatmul.mubr.f32.gmra.mrb[0].mxu0 %v2469
    %v2769 = vpop.f32.mrb[0].mxu0
    %v2770 = vadd.f32 %v157, %v2769
    %v2771 = vpop.f32.mrb[0].mxu0
    %v2772 = vadd.f32 %v161, %v2771
    %2773 = vdwg.mxu0
    %2774 = vmatprep.subr.mxu0 0.0
    %2775 = vmatpush1.msra.mxu0 %v107
    %2776 = vmatprep.subr.mxu0 0.0
    %2777 = vmatpush1.msra.mxu0 %v110
    %2778 = vmatprep.subr.mxu0 0.0
    %2779 = vmatpush1.msra.mxu0 %v113
    %2780 = vmatprep.subr.mxu0 0.0
    %2781 = vmatpush1.msra.mxu0 %v116
    %2782 = vmatprep.subr.mxu0 0.0
    %2783 = vmatpush1.msra.mxu0 %v119
    %2784 = vmatprep.subr.mxu0 0.0
    %2785 = vmatpush1.msra.mxu0 %v122
    %2786 = vmatprep.subr.mxu0 0.0
    %2787 = vmatpush1.msra.mxu0 %v125
    %2788 = vmatprep.subr.mxu0 0.0
    %2789 = vmatpush1.msra.mxu0 %v128
    %2790 = vmatprep.subr.mxu0 0.0
    %2791 = vmatpush1.msra.mxu0 %v131
    %2792 = vmatprep.subr.mxu0 0.0
    %2793 = vmatpush1.msra.mxu0 %v134
    %2794 = vmatprep.subr.mxu0 0.0
    %2795 = vmatpush1.msra.mxu0 %v137
    %2796 = vmatprep.subr.mxu0 0.0
    %2797 = vmatpush1.msra.mxu0 %v140
    %2798 = vmatprep.subr.mxu0 0.0
    %2799 = vmatpush1.msra.mxu0 %v143
    %2800 = vmatprep.subr.mxu0 0.0
    %2801 = vmatpush1.msra.mxu0 %v146
    %2802 = vmatprep.subr.mxu0 0.0
    %2803 = vmatpush1.msra.mxu0 %v149
    %2804 = vmatprep.subr.mxu0 0.0
    %2805 = vmatpush1.msra.mxu0 %v152
    %2806 = vmatprep.subr.mxu0 0.0
    %2807 = vmatpush1.msra.mxu0 0.0
    %2808 = vmatprep.subr.mxu0 0.0
    %2809 = vmatpush1.msra.mxu0 0.0
    %2810 = vmatprep.subr.mxu0 0.0
    %2811 = vmatpush1.msra.mxu0 0.0
    %2812 = vmatprep.subr.mxu0 0.0
    %2813 = vmatpush1.msra.mxu0 0.0
    %2814 = vmatprep.subr.mxu0 0.0
    %2815 = vmatpush1.msra.mxu0 0.0
    %2816 = vmatprep.subr.mxu0 0.0
    %2817 = vmatpush1.msra.mxu0 0.0
    %2818 = vmatprep.subr.mxu0 0.0
    %2819 = vmatpush1.msra.mxu0 0.0
    %2820 = vmatprep.subr.mxu0 0.0
    %2821 = vmatpush1.msra.mxu0 0.0
    %2822 = vmatprep.subr.mxu0 0.0
    %2823 = vmatpush1.msra.mxu0 0.0
    %2824 = vmatprep.subr.mxu0 0.0
    %2825 = vmatpush1.msra.mxu0 0.0
    %2826 = vmatprep.subr.mxu0 0.0
    %2827 = vmatpush1.msra.mxu0 0.0
    %2828 = vmatprep.subr.mxu0 0.0
    %2829 = vmatpush1.msra.mxu0 0.0
    %2830 = vmatprep.subr.mxu0 0.0
    %2831 = vmatpush1.msra.mxu0 0.0
    %2832 = vmatprep.subr.mxu0 0.0
    %2833 = vmatpush1.msra.mxu0 0.0
    %2834 = vmatprep.subr.mxu0 0.0
    %2835 = vmatpush1.msra.mxu0 0.0
    %2836 = vmatprep.subr.mxu0 0.0
    %2837 = vmatpush1.msra.mxu0 0.0
    %2838 = vmatprep.mubr.f32.mxu0 0.0
    %2839 = vmatmul.mubr.f32.gmra.mrb[0].mxu0 %v2469
    %v2840 = vpop.f32.mrb[0].mxu0
    %v2841 = vadd.f32 %v165, %v2840
    %v2842 = vpop.f32.mrb[0].mxu0
    %2843 = vdwg.mxu0
    %v2844 = vadd.f32 %v2702, %v2770
    %v2845 = vxor.u32 %v2844, 2147483648
    %v2846 = vmul.f32 %v2845, 1.442695
    %v2847 = vpow.pop %v2846
    %v2848 = vadd.f32 %v2847, 1.0
    %v2849 = vrcp.pop %v2848
    %v2850 = vmul.f32 1.0, %v2849
    %v2852 = vrot.slane %v2702, 2
    %v2854 = vadd.f32 %v2852, %v2772
    %v2855 = vxor.u32 %v2854, 2147483648
    %v2856 = vmul.f32 %v2855, 1.442695
    %v2857 = vpow.pop %v2856
    %v2858 = vadd.f32 %v2857, 1.0
    %v2859 = vrcp.pop %v2858
    %v2860 = vmul.f32 1.0, %v2859
    %v2861 = vmul.f32 %v2850, %v2841
    %v2862 = vrot.slane %v2702, 4
    %v2864 = vadd.f32 %v2862, %v2861
    %v2865 = vtanh.pop %v2864
    %v2866 = vsub.f32 1.0, %v2860
    %v2867 = vmul.f32 %v2866, %v2865
    %v2868 = vmul.f32 %v2860, %v2469
    %v2869 = vadd.f32 %v2867, %v2868
    %2870 = vmatprep.subr.mxu0 %v337
    %2871 = vmatpush1.msra.mxu0 %v336
    %2872 = vmatprep.subr.mxu0 %v340
    %2873 = vmatpush1.msra.mxu0 %v339
    %2874 = vmatprep.subr.mxu0 %v343
    %2875 = vmatpush1.msra.mxu0 %v342
    %2876 = vmatprep.subr.mxu0 %v346
    %2877 = vmatpush1.msra.mxu0 %v345
    %2878 = vmatprep.subr.mxu0 %v349
    %2879 = vmatpush1.msra.mxu0 %v348
    %2880 = vmatprep.subr.mxu0 %v352
    %2881 = vmatpush1.msra.mxu0 %v351
    %2882 = vmatprep.subr.mxu0 %v355
    %2883 = vmatpush1.msra.mxu0 %v354
    %2884 = vmatprep.subr.mxu0 %v358
    %2885 = vmatpush1.msra.mxu0 %v357
    %2886 = vmatprep.subr.mxu0 %v361
    %2887 = vmatpush1.msra.mxu0 %v360
    %2888 = vmatprep.subr.mxu0 %v364
    %2889 = vmatpush1.msra.mxu0 %v363
    %2890 = vmatprep.subr.mxu0 %v367
    %2891 = vmatpush1.msra.mxu0 %v366
    %2892 = vmatprep.subr.mxu0 %v370
    %2893 = vmatpush1.msra.mxu0 %v369
    %2894 = vmatprep.subr.mxu0 %v373
    %2895 = vmatpush1.msra.mxu0 %v372
    %2896 = vmatprep.subr.mxu0 %v376
    %2897 = vmatpush1.msra.mxu0 %v375
    %2898 = vmatprep.subr.mxu0 %v379
    %2899 = vmatpush1.msra.mxu0 %v378
    %2900 = vmatprep.subr.mxu0 %v382
    %2901 = vmatpush1.msra.mxu0 %v381
    %2902 = vmatprep.subr.mxu0 %v385
    %2903 = vmatpush1.msra.mxu0 %v384
    %2904 = vmatprep.subr.mxu0 %v388
    %2905 = vmatpush1.msra.mxu0 %v387
    %2906 = vmatprep.subr.mxu0 %v391
    %2907 = vmatpush1.msra.mxu0 %v390
    %2908 = vmatprep.subr.mxu0 %v394
    %2909 = vmatpush1.msra.mxu0 %v393
    %2910 = vmatprep.subr.mxu0 %v397
    %2911 = vmatpush1.msra.mxu0 %v396
    %2912 = vmatprep.subr.mxu0 %v400
    %2913 = vmatpush1.msra.mxu0 %v399
    %2914 = vmatprep.subr.mxu0 %v403
    %2915 = vmatpush1.msra.mxu0 %v402
    %2916 = vmatprep.subr.mxu0 %v406
    %2917 = vmatpush1.msra.mxu0 %v405
    %2918 = vmatprep.subr.mxu0 %v409
    %2919 = vmatpush1.msra.mxu0 %v408
    %2920 = vmatprep.subr.mxu0 %v412
    %2921 = vmatpush1.msra.mxu0 %v411
    %2922 = vmatprep.subr.mxu0 %v415
    %2923 = vmatpush1.msra.mxu0 %v414
    %2924 = vmatprep.subr.mxu0 %v418
    %2925 = vmatpush1.msra.mxu0 %v417
    %2926 = vmatprep.subr.mxu0 %v421
    %2927 = vmatpush1.msra.mxu0 %v420
    %2928 = vmatprep.subr.mxu0 %v424
    %2929 = vmatpush1.msra.mxu0 %v423
    %2930 = vmatprep.subr.mxu0 %v427
    %2931 = vmatpush1.msra.mxu0 %v426
    %2932 = vmatprep.subr.mxu0 %v430
    %2933 = vmatpush1.msra.mxu0 %v429
    %2934 = vmatprep.mubr.f32.mxu0 %v2700
    %2935 = vmatmul.mubr.f32.gmra.mrb[0].mxu0 %v2869
    %v2936 = vpop.f32.mrb[0].mxu0
    %v2937 = vadd.f32 %v436, %v2936
    %v2938 = vpop.f32.mrb[0].mxu0
    %v2939 = vadd.f32 %v440, %v2938
    %2940 = vdwg.mxu0
    %2941 = vmatprep.subr.mxu0 0.0
    %2942 = vmatpush1.msra.mxu0 %v338
    %2943 = vmatprep.subr.mxu0 0.0
    %2944 = vmatpush1.msra.mxu0 %v341
    %2945 = vmatprep.subr.mxu0 0.0
    %2946 = vmatpush1.msra.mxu0 %v344
    %2947 = vmatprep.subr.mxu0 0.0
    %2948 = vmatpush1.msra.mxu0 %v347
    %2949 = vmatprep.subr.mxu0 0.0
    %2950 = vmatpush1.msra.mxu0 %v350
    %2951 = vmatprep.subr.mxu0 0.0
    %2952 = vmatpush1.msra.mxu0 %v353
    %2953 = vmatprep.subr.mxu0 0.0
    %2954 = vmatpush1.msra.mxu0 %v356
    %2955 = vmatprep.subr.mxu0 0.0
    %2956 = vmatpush1.msra.mxu0 %v359
    %2957 = vmatprep.subr.mxu0 0.0
    %2958 = vmatpush1.msra.mxu0 %v362
    %2959 = vmatprep.subr.mxu0 0.0
    %2960 = vmatpush1.msra.mxu0 %v365
    %2961 = vmatprep.subr.mxu0 0.0
    %2962 = vmatpush1.msra.mxu0 %v368
    %2963 = vmatprep.subr.mxu0 0.0
    %2964 = vmatpush1.msra.mxu0 %v371
    %2965 = vmatprep.subr.mxu0 0.0
    %2966 = vmatpush1.msra.mxu0 %v374
    %2967 = vmatprep.subr.mxu0 0.0
    %2968 = vmatpush1.msra.mxu0 %v377
    %2969 = vmatprep.subr.mxu0 0.0
    %2970 = vmatpush1.msra.mxu0 %v380
    %2971 = vmatprep.subr.mxu0 0.0
    %2972 = vmatpush1.msra.mxu0 %v383
    %2973 = vmatprep.subr.mxu0 0.0
    %2974 = vmatpush1.msra.mxu0 %v386
    %2975 = vmatprep.subr.mxu0 0.0
    %2976 = vmatpush1.msra.mxu0 %v389
    %2977 = vmatprep.subr.mxu0 0.0
    %2978 = vmatpush1.msra.mxu0 %v392
    %2979 = vmatprep.subr.mxu0 0.0
    %2980 = vmatpush1.msra.mxu0 %v395
    %2981 = vmatprep.subr.mxu0 0.0
    %2982 = vmatpush1.msra.mxu0 %v398
    %2983 = vmatprep.subr.mxu0 0.0
    %2984 = vmatpush1.msra.mxu0 %v401
    %2985 = vmatprep.subr.mxu0 0.0
    %2986 = vmatpush1.msra.mxu0 %v404
    %2987 = vmatprep.subr.mxu0 0.0
    %2988 = vmatpush1.msra.mxu0 %v407
    %2989 = vmatprep.subr.mxu0 0.0
    %2990 = vmatpush1.msra.mxu0 %v410
    %2991 = vmatprep.subr.mxu0 0.0
    %2992 = vmatpush1.msra.mxu0 %v413
    %2993 = vmatprep.subr.mxu0 0.0
    %2994 = vmatpush1.msra.mxu0 %v416
    %2995 = vmatprep.subr.mxu0 0.0
    %2996 = vmatpush1.msra.mxu0 %v419
    %2997 = vmatprep.subr.mxu0 0.0
    %2998 = vmatpush1.msra.mxu0 %v422
    %2999 = vmatprep.subr.mxu0 0.0
    %3000 = vmatpush1.msra.mxu0 %v425
    %3001 = vmatprep.subr.mxu0 0.0
    %3002 = vmatpush1.msra.mxu0 %v428
    %3003 = vmatprep.subr.mxu0 0.0
    %3004 = vmatpush1.msra.mxu0 %v431
    %3005 = vmatprep.mubr.f32.mxu0 %v2700
    %3006 = vmatmul.mubr.f32.gmra.mrb[0].mxu0 %v2869
    %v3007 = vpop.f32.mrb[0].mxu0
    %v3008 = vadd.f32 %v444, %v3007
    %v3009 = vpop.f32.mrb[0].mxu0
    %3010 = vdwg.mxu0
    %3011 = vmatprep.subr.mxu0 0.0
    %3012 = vmatpush1.msra.mxu0 %v589
    %3013 = vmatprep.subr.mxu0 0.0
    %3014 = vmatpush1.msra.mxu0 %v590
    %3015 = vmatprep.subr.mxu0 0.0
    %3016 = vmatpush1.msra.mxu0 %v591
    %3017 = vmatprep.subr.mxu0 0.0
    %3018 = vmatpush1.msra.mxu0 %v592
    %3019 = vmatprep.subr.mxu0 0.0
    %3020 = vmatpush1.msra.mxu0 %v593
    %3021 = vmatprep.subr.mxu0 0.0
    %3022 = vmatpush1.msra.mxu0 %v594
    %3023 = vmatprep.subr.mxu0 0.0
    %3024 = vmatpush1.msra.mxu0 %v595
    %3025 = vmatprep.subr.mxu0 0.0
    %3026 = vmatpush1.msra.mxu0 %v596
    %3027 = vmatprep.subr.mxu0 0.0
    %3028 = vmatpush1.msra.mxu0 %v597
    %3029 = vmatprep.subr.mxu0 0.0
    %3030 = vmatpush1.msra.mxu0 %v598
    %3031 = vmatprep.subr.mxu0 0.0
    %3032 = vmatpush1.msra.mxu0 %v599
    %3033 = vmatprep.subr.mxu0 0.0
    %3034 = vmatpush1.msra.mxu0 %v600
    %3035 = vmatprep.subr.mxu0 0.0
    %3036 = vmatpush1.msra.mxu0 %v601
    %3037 = vmatprep.subr.mxu0 0.0
    %3038 = vmatpush1.msra.mxu0 %v602
    %3039 = vmatprep.subr.mxu0 0.0
    %3040 = vmatpush1.msra.mxu0 %v603
    %3041 = vmatprep.subr.mxu0 0.0
    %3042 = vmatpush1.msra.mxu0 %v604
    %3043 = vmatprep.subr.mxu0 0.0
    %3044 = vmatpush1.msra.mxu0 0.0
    %3045 = vmatprep.subr.mxu0 0.0
    %3046 = vmatpush1.msra.mxu0 0.0
    %3047 = vmatprep.subr.mxu0 0.0
    %3048 = vmatpush1.msra.mxu0 0.0
    %3049 = vmatprep.subr.mxu0 0.0
    %3050 = vmatpush1.msra.mxu0 0.0
    %3051 = vmatprep.subr.mxu0 0.0
    %3052 = vmatpush1.msra.mxu0 0.0
    %3053 = vmatprep.subr.mxu0 0.0
    %3054 = vmatpush1.msra.mxu0 0.0
    %3055 = vmatprep.subr.mxu0 0.0
    %3056 = vmatpush1.msra.mxu0 0.0
    %3057 = vmatprep.subr.mxu0 0.0
    %3058 = vmatpush1.msra.mxu0 0.0
    %3059 = vmatprep.subr.mxu0 0.0
    %3060 = vmatpush1.msra.mxu0 0.0
    %3061 = vmatprep.subr.mxu0 0.0
    %3062 = vmatpush1.msra.mxu0 0.0
    %3063 = vmatprep.subr.mxu0 0.0
    %3064 = vmatpush1.msra.mxu0 0.0
    %3065 = vmatprep.subr.mxu0 0.0
    %3066 = vmatpush1.msra.mxu0 0.0
    %3067 = vmatprep.subr.mxu0 0.0
    %3068 = vmatpush1.msra.mxu0 0.0
    %3069 = vmatprep.subr.mxu0 0.0
    %3070 = vmatpush1.msra.mxu0 0.0
    %3071 = vmatprep.subr.mxu0 0.0
    %3072 = vmatpush1.msra.mxu0 0.0
    %3073 = vmatprep.subr.mxu0 0.0
    %3074 = vmatpush1.msra.mxu0 0.0
    %3075 = vmatprep.mubr.f32.mxu0 0.0
    %3076 = vmatmul.mubr.f32.gmra.mrb[0].mxu0 %v2700
    %v3077 = vpop.f32.mrb[0].mxu0
    %v3078 = vadd.f32 %v609, %v3077
    %v3079 = vpop.f32.mrb[0].mxu0
    %3080 = vdwg.mxu0
    %v3081 = vxor.u32 %v2937, 2147483648
    %v3082 = vmul.f32 %v3081, 1.442695
    %v3083 = vpow.pop %v3082
    %v3084 = vadd.f32 %v3083, 1.0
    %v3085 = vrcp.pop %v3084
    %v3086 = vmul.f32 1.0, %v3085
    %v3087 = vxor.u32 %v2939, 2147483648
    %v3088 = vmul.f32 %v3087, 1.442695
    %v3089 = vpow.pop %v3088
    %v3090 = vadd.f32 %v3089, 1.0
    %v3091 = vrcp.pop %v3090
    %v3092 = vmul.f32 1.0, %v3091
    %v3093 = vsub.f32 %v3008, %v3078
    %v3094 = vmul.f32 %v3086, %v3078
    %v3095 = vadd.f32 %v3093, %v3094
    %v3096 = vtanh.pop %v3095
    %v3097 = vsub.f32 1.0, %v3092
    %v3098 = vmul.f32 %v3097, %v3096
    %v3099 = vmul.f32 %v3092, %v2700
    %v3100 = vadd.f32 %v3098, %v3099
    %s3101 = scalar_lea.vmem [#allocation2], 42
    %v3102 = vld [vmem:[%s3101] sm:$0x3f]
    %3103 = vmatprep.subr.mxu0 %v106
    %3104 = vmatpush1.msra.mxu0 %v105
    %3105 = vmatprep.subr.mxu0 %v109
    %3106 = vmatpush1.msra.mxu0 %v108
    %3107 = vmatprep.subr.mxu0 %v112
    %3108 = vmatpush1.msra.mxu0 %v111
    %3109 = vmatprep.subr.mxu0 %v115
    %3110 = vmatpush1.msra.mxu0 %v114
    %3111 = vmatprep.subr.mxu0 %v118
    %3112 = vmatpush1.msra.mxu0 %v117
    %3113 = vmatprep.subr.mxu0 %v121
    %3114 = vmatpush1.msra.mxu0 %v120
    %3115 = vmatprep.subr.mxu0 %v124
    %3116 = vmatpush1.msra.mxu0 %v123
    %3117 = vmatprep.subr.mxu0 %v127
    %3118 = vmatpush1.msra.mxu0 %v126
    %3119 = vmatprep.subr.mxu0 %v130
    %3120 = vmatpush1.msra.mxu0 %v129
    %3121 = vmatprep.subr.mxu0 %v133
    %3122 = vmatpush1.msra.mxu0 %v132
    %3123 = vmatprep.subr.mxu0 %v136
    %3124 = vmatpush1.msra.mxu0 %v135
    %3125 = vmatprep.subr.mxu0 %v139
    %3126 = vmatpush1.msra.mxu0 %v138
    %3127 = vmatprep.subr.mxu0 %v142
    %3128 = vmatpush1.msra.mxu0 %v141
    %3129 = vmatprep.subr.mxu0 %v145
    %3130 = vmatpush1.msra.mxu0 %v144
    %3131 = vmatprep.subr.mxu0 %v148
    %3132 = vmatpush1.msra.mxu0 %v147
    %3133 = vmatprep.subr.mxu0 %v151
    %3134 = vmatpush1.msra.mxu0 %v150
    %3135 = vmatprep.subr.mxu0 0.0
    %3136 = vmatpush1.msra.mxu0 0.0
    %3137 = vmatprep.subr.mxu0 0.0
    %3138 = vmatpush1.msra.mxu0 0.0
    %3139 = vmatprep.subr.mxu0 0.0
    %3140 = vmatpush1.msra.mxu0 0.0
    %3141 = vmatprep.subr.mxu0 0.0
    %3142 = vmatpush1.msra.mxu0 0.0
    %3143 = vmatprep.subr.mxu0 0.0
    %3144 = vmatpush1.msra.mxu0 0.0
    %3145 = vmatprep.subr.mxu0 0.0
    %3146 = vmatpush1.msra.mxu0 0.0
    %3147 = vmatprep.subr.mxu0 0.0
    %3148 = vmatpush1.msra.mxu0 0.0
    %3149 = vmatprep.subr.mxu0 0.0
    %3150 = vmatpush1.msra.mxu0 0.0
    %3151 = vmatprep.subr.mxu0 0.0
    %3152 = vmatpush1.msra.mxu0 0.0
    %3153 = vmatprep.subr.mxu0 0.0
    %3154 = vmatpush1.msra.mxu0 0.0
    %3155 = vmatprep.subr.mxu0 0.0
    %3156 = vmatpush1.msra.mxu0 0.0
    %3157 = vmatprep.subr.mxu0 0.0
    %3158 = vmatpush1.msra.mxu0 0.0
    %3159 = vmatprep.subr.mxu0 0.0
    %3160 = vmatpush1.msra.mxu0 0.0
    %3161 = vmatprep.subr.mxu0 0.0
    %3162 = vmatpush1.msra.mxu0 0.0
    %3163 = vmatprep.subr.mxu0 0.0
    %3164 = vmatpush1.msra.mxu0 0.0
    %3165 = vmatprep.subr.mxu0 0.0
    %3166 = vmatpush1.msra.mxu0 0.0
    %3167 = vmatprep.mubr.f32.mxu0 0.0
    %3168 = vmatmul.mubr.f32.gmra.mrb[0].mxu0 %v2869
    %v3169 = vpop.f32.mrb[0].mxu0
    %v3170 = vadd.f32 %v157, %v3169
    %v3171 = vpop.f32.mrb[0].mxu0
    %v3172 = vadd.f32 %v161, %v3171
    %3173 = vdwg.mxu0
    %3174 = vmatprep.subr.mxu0 0.0
    %3175 = vmatpush1.msra.mxu0 %v107
    %3176 = vmatprep.subr.mxu0 0.0
    %3177 = vmatpush1.msra.mxu0 %v110
    %3178 = vmatprep.subr.mxu0 0.0
    %3179 = vmatpush1.msra.mxu0 %v113
    %3180 = vmatprep.subr.mxu0 0.0
    %3181 = vmatpush1.msra.mxu0 %v116
    %3182 = vmatprep.subr.mxu0 0.0
    %3183 = vmatpush1.msra.mxu0 %v119
    %3184 = vmatprep.subr.mxu0 0.0
    %3185 = vmatpush1.msra.mxu0 %v122
    %3186 = vmatprep.subr.mxu0 0.0
    %3187 = vmatpush1.msra.mxu0 %v125
    %3188 = vmatprep.subr.mxu0 0.0
    %3189 = vmatpush1.msra.mxu0 %v128
    %3190 = vmatprep.subr.mxu0 0.0
    %3191 = vmatpush1.msra.mxu0 %v131
    %3192 = vmatprep.subr.mxu0 0.0
    %3193 = vmatpush1.msra.mxu0 %v134
    %3194 = vmatprep.subr.mxu0 0.0
    %3195 = vmatpush1.msra.mxu0 %v137
    %3196 = vmatprep.subr.mxu0 0.0
    %3197 = vmatpush1.msra.mxu0 %v140
    %3198 = vmatprep.subr.mxu0 0.0
    %3199 = vmatpush1.msra.mxu0 %v143
    %3200 = vmatprep.subr.mxu0 0.0
    %3201 = vmatpush1.msra.mxu0 %v146
    %3202 = vmatprep.subr.mxu0 0.0
    %3203 = vmatpush1.msra.mxu0 %v149
    %3204 = vmatprep.subr.mxu0 0.0
    %3205 = vmatpush1.msra.mxu0 %v152
    %3206 = vmatprep.subr.mxu0 0.0
    %3207 = vmatpush1.msra.mxu0 0.0
    %3208 = vmatprep.subr.mxu0 0.0
    %3209 = vmatpush1.msra.mxu0 0.0
    %3210 = vmatprep.subr.mxu0 0.0
    %3211 = vmatpush1.msra.mxu0 0.0
    %3212 = vmatprep.subr.mxu0 0.0
    %3213 = vmatpush1.msra.mxu0 0.0
    %3214 = vmatprep.subr.mxu0 0.0
    %3215 = vmatpush1.msra.mxu0 0.0
    %3216 = vmatprep.subr.mxu0 0.0
    %3217 = vmatpush1.msra.mxu0 0.0
    %3218 = vmatprep.subr.mxu0 0.0
    %3219 = vmatpush1.msra.mxu0 0.0
    %3220 = vmatprep.subr.mxu0 0.0
    %3221 = vmatpush1.msra.mxu0 0.0
    %3222 = vmatprep.subr.mxu0 0.0
    %3223 = vmatpush1.msra.mxu0 0.0
    %3224 = vmatprep.subr.mxu0 0.0
    %3225 = vmatpush1.msra.mxu0 0.0
    %3226 = vmatprep.subr.mxu0 0.0
    %3227 = vmatpush1.msra.mxu0 0.0
    %3228 = vmatprep.subr.mxu0 0.0
    %3229 = vmatpush1.msra.mxu0 0.0
    %3230 = vmatprep.subr.mxu0 0.0
    %3231 = vmatpush1.msra.mxu0 0.0
    %3232 = vmatprep.subr.mxu0 0.0
    %3233 = vmatpush1.msra.mxu0 0.0
    %3234 = vmatprep.subr.mxu0 0.0
    %3235 = vmatpush1.msra.mxu0 0.0
    %3236 = vmatprep.subr.mxu0 0.0
    %3237 = vmatpush1.msra.mxu0 0.0
    %3238 = vmatprep.mubr.f32.mxu0 0.0
    %3239 = vmatmul.mubr.f32.gmra.mrb[0].mxu0 %v2869
    %v3240 = vpop.f32.mrb[0].mxu0
    %v3241 = vadd.f32 %v165, %v3240
    %v3242 = vpop.f32.mrb[0].mxu0
    %3243 = vdwg.mxu0
    %v3244 = vadd.f32 %v3102, %v3170
    %v3245 = vxor.u32 %v3244, 2147483648
    %v3246 = vmul.f32 %v3245, 1.442695
    %v3247 = vpow.pop %v3246
    %v3248 = vadd.f32 %v3247, 1.0
    %v3249 = vrcp.pop %v3248
    %v3250 = vmul.f32 1.0, %v3249
    %v3252 = vrot.slane %v3102, 2
    %v3254 = vadd.f32 %v3252, %v3172
    %v3255 = vxor.u32 %v3254, 2147483648
    %v3256 = vmul.f32 %v3255, 1.442695
    %v3257 = vpow.pop %v3256
    %v3258 = vadd.f32 %v3257, 1.0
    %v3259 = vrcp.pop %v3258
    %v3260 = vmul.f32 1.0, %v3259
    %v3261 = vmul.f32 %v3250, %v3241
    %v3262 = vrot.slane %v3102, 4
    %v3264 = vadd.f32 %v3262, %v3261
    %v3265 = vtanh.pop %v3264
    %v3266 = vsub.f32 1.0, %v3260
    %v3267 = vmul.f32 %v3266, %v3265
    %v3268 = vmul.f32 %v3260, %v2869
    %v3269 = vadd.f32 %v3267, %v3268
    %3270 = vmatprep.subr.mxu0 %v337
    %3271 = vmatpush1.msra.mxu0 %v336
    %3272 = vmatprep.subr.mxu0 %v340
    %3273 = vmatpush1.msra.mxu0 %v339
    %3274 = vmatprep.subr.mxu0 %v343
    %3275 = vmatpush1.msra.mxu0 %v342
    %3276 = vmatprep.subr.mxu0 %v346
    %3277 = vmatpush1.msra.mxu0 %v345
    %3278 = vmatprep.subr.mxu0 %v349
    %3279 = vmatpush1.msra.mxu0 %v348
    %3280 = vmatprep.subr.mxu0 %v352
    %3281 = vmatpush1.msra.mxu0 %v351
    %3282 = vmatprep.subr.mxu0 %v355
    %3283 = vmatpush1.msra.mxu0 %v354
    %3284 = vmatprep.subr.mxu0 %v358
    %3285 = vmatpush1.msra.mxu0 %v357
    %3286 = vmatprep.subr.mxu0 %v361
    %3287 = vmatpush1.msra.mxu0 %v360
    %3288 = vmatprep.subr.mxu0 %v364
    %3289 = vmatpush1.msra.mxu0 %v363
    %3290 = vmatprep.subr.mxu0 %v367
    %3291 = vmatpush1.msra.mxu0 %v366
    %3292 = vmatprep.subr.mxu0 %v370
    %3293 = vmatpush1.msra.mxu0 %v369
    %3294 = vmatprep.subr.mxu0 %v373
    %3295 = vmatpush1.msra.mxu0 %v372
    %3296 = vmatprep.subr.mxu0 %v376
    %3297 = vmatpush1.msra.mxu0 %v375
    %3298 = vmatprep.subr.mxu0 %v379
    %3299 = vmatpush1.msra.mxu0 %v378
    %3300 = vmatprep.subr.mxu0 %v382
    %3301 = vmatpush1.msra.mxu0 %v381
    %3302 = vmatprep.subr.mxu0 %v385
    %3303 = vmatpush1.msra.mxu0 %v384
    %3304 = vmatprep.subr.mxu0 %v388
    %3305 = vmatpush1.msra.mxu0 %v387
    %3306 = vmatprep.subr.mxu0 %v391
    %3307 = vmatpush1.msra.mxu0 %v390
    %3308 = vmatprep.subr.mxu0 %v394
    %3309 = vmatpush1.msra.mxu0 %v393
    %3310 = vmatprep.subr.mxu0 %v397
    %3311 = vmatpush1.msra.mxu0 %v396
    %3312 = vmatprep.subr.mxu0 %v400
    %3313 = vmatpush1.msra.mxu0 %v399
    %3314 = vmatprep.subr.mxu0 %v403
    %3315 = vmatpush1.msra.mxu0 %v402
    %3316 = vmatprep.subr.mxu0 %v406
    %3317 = vmatpush1.msra.mxu0 %v405
    %3318 = vmatprep.subr.mxu0 %v409
    %3319 = vmatpush1.msra.mxu0 %v408
    %3320 = vmatprep.subr.mxu0 %v412
    %3321 = vmatpush1.msra.mxu0 %v411
    %3322 = vmatprep.subr.mxu0 %v415
    %3323 = vmatpush1.msra.mxu0 %v414
    %3324 = vmatprep.subr.mxu0 %v418
    %3325 = vmatpush1.msra.mxu0 %v417
    %3326 = vmatprep.subr.mxu0 %v421
    %3327 = vmatpush1.msra.mxu0 %v420
    %3328 = vmatprep.subr.mxu0 %v424
    %3329 = vmatpush1.msra.mxu0 %v423
    %3330 = vmatprep.subr.mxu0 %v427
    %3331 = vmatpush1.msra.mxu0 %v426
    %3332 = vmatprep.subr.mxu0 %v430
    %3333 = vmatpush1.msra.mxu0 %v429
    %3334 = vmatprep.mubr.f32.mxu0 %v3100
    %3335 = vmatmul.mubr.f32.gmra.mrb[0].mxu0 %v3269
    %v3336 = vpop.f32.mrb[0].mxu0
    %v3337 = vadd.f32 %v436, %v3336
    %v3338 = vpop.f32.mrb[0].mxu0
    %v3339 = vadd.f32 %v440, %v3338
    %3340 = vdwg.mxu0
    %3341 = vmatprep.subr.mxu0 0.0
    %3342 = vmatpush1.msra.mxu0 %v338
    %3343 = vmatprep.subr.mxu0 0.0
    %3344 = vmatpush1.msra.mxu0 %v341
    %3345 = vmatprep.subr.mxu0 0.0
    %3346 = vmatpush1.msra.mxu0 %v344
    %3347 = vmatprep.subr.mxu0 0.0
    %3348 = vmatpush1.msra.mxu0 %v347
    %3349 = vmatprep.subr.mxu0 0.0
    %3350 = vmatpush1.msra.mxu0 %v350
    %3351 = vmatprep.subr.mxu0 0.0
    %3352 = vmatpush1.msra.mxu0 %v353
    %3353 = vmatprep.subr.mxu0 0.0
    %3354 = vmatpush1.msra.mxu0 %v356
    %3355 = vmatprep.subr.mxu0 0.0
    %3356 = vmatpush1.msra.mxu0 %v359
    %3357 = vmatprep.subr.mxu0 0.0
    %3358 = vmatpush1.msra.mxu0 %v362
    %3359 = vmatprep.subr.mxu0 0.0
    %3360 = vmatpush1.msra.mxu0 %v365
    %3361 = vmatprep.subr.mxu0 0.0
    %3362 = vmatpush1.msra.mxu0 %v368
    %3363 = vmatprep.subr.mxu0 0.0
    %3364 = vmatpush1.msra.mxu0 %v371
    %3365 = vmatprep.subr.mxu0 0.0
    %3366 = vmatpush1.msra.mxu0 %v374
    %3367 = vmatprep.subr.mxu0 0.0
    %3368 = vmatpush1.msra.mxu0 %v377
    %3369 = vmatprep.subr.mxu0 0.0
    %3370 = vmatpush1.msra.mxu0 %v380
    %3371 = vmatprep.subr.mxu0 0.0
    %3372 = vmatpush1.msra.mxu0 %v383
    %3373 = vmatprep.subr.mxu0 0.0
    %3374 = vmatpush1.msra.mxu0 %v386
    %3375 = vmatprep.subr.mxu0 0.0
    %3376 = vmatpush1.msra.mxu0 %v389
    %3377 = vmatprep.subr.mxu0 0.0
    %3378 = vmatpush1.msra.mxu0 %v392
    %3379 = vmatprep.subr.mxu0 0.0
    %3380 = vmatpush1.msra.mxu0 %v395
    %3381 = vmatprep.subr.mxu0 0.0
    %3382 = vmatpush1.msra.mxu0 %v398
    %3383 = vmatprep.subr.mxu0 0.0
    %3384 = vmatpush1.msra.mxu0 %v401
    %3385 = vmatprep.subr.mxu0 0.0
    %3386 = vmatpush1.msra.mxu0 %v404
    %3387 = vmatprep.subr.mxu0 0.0
    %3388 = vmatpush1.msra.mxu0 %v407
    %3389 = vmatprep.subr.mxu0 0.0
    %3390 = vmatpush1.msra.mxu0 %v410
    %3391 = vmatprep.subr.mxu0 0.0
    %3392 = vmatpush1.msra.mxu0 %v413
    %3393 = vmatprep.subr.mxu0 0.0
    %3394 = vmatpush1.msra.mxu0 %v416
    %3395 = vmatprep.subr.mxu0 0.0
    %3396 = vmatpush1.msra.mxu0 %v419
    %3397 = vmatprep.subr.mxu0 0.0
    %3398 = vmatpush1.msra.mxu0 %v422
    %3399 = vmatprep.subr.mxu0 0.0
    %3400 = vmatpush1.msra.mxu0 %v425
    %3401 = vmatprep.subr.mxu0 0.0
    %3402 = vmatpush1.msra.mxu0 %v428
    %3403 = vmatprep.subr.mxu0 0.0
    %3404 = vmatpush1.msra.mxu0 %v431
    %3405 = vmatprep.mubr.f32.mxu0 %v3100
    %3406 = vmatmul.mubr.f32.gmra.mrb[0].mxu0 %v3269
    %v3407 = vpop.f32.mrb[0].mxu0
    %v3408 = vadd.f32 %v444, %v3407
    %v3409 = vpop.f32.mrb[0].mxu0
    %3410 = vdwg.mxu0
    %3411 = vmatprep.subr.mxu0 0.0
    %3412 = vmatpush1.msra.mxu0 %v589
    %3413 = vmatprep.subr.mxu0 0.0
    %3414 = vmatpush1.msra.mxu0 %v590
    %3415 = vmatprep.subr.mxu0 0.0
    %3416 = vmatpush1.msra.mxu0 %v591
    %3417 = vmatprep.subr.mxu0 0.0
    %3418 = vmatpush1.msra.mxu0 %v592
    %3419 = vmatprep.subr.mxu0 0.0
    %3420 = vmatpush1.msra.mxu0 %v593
    %3421 = vmatprep.subr.mxu0 0.0
    %3422 = vmatpush1.msra.mxu0 %v594
    %3423 = vmatprep.subr.mxu0 0.0
    %3424 = vmatpush1.msra.mxu0 %v595
    %3425 = vmatprep.subr.mxu0 0.0
    %3426 = vmatpush1.msra.mxu0 %v596
    %3427 = vmatprep.subr.mxu0 0.0
    %3428 = vmatpush1.msra.mxu0 %v597
    %3429 = vmatprep.subr.mxu0 0.0
    %3430 = vmatpush1.msra.mxu0 %v598
    %3431 = vmatprep.subr.mxu0 0.0
    %3432 = vmatpush1.msra.mxu0 %v599
    %3433 = vmatprep.subr.mxu0 0.0
    %3434 = vmatpush1.msra.mxu0 %v600
    %3435 = vmatprep.subr.mxu0 0.0
    %3436 = vmatpush1.msra.mxu0 %v601
    %3437 = vmatprep.subr.mxu0 0.0
    %3438 = vmatpush1.msra.mxu0 %v602
    %3439 = vmatprep.subr.mxu0 0.0
    %3440 = vmatpush1.msra.mxu0 %v603
    %3441 = vmatprep.subr.mxu0 0.0
    %3442 = vmatpush1.msra.mxu0 %v604
    %3443 = vmatprep.subr.mxu0 0.0
    %3444 = vmatpush1.msra.mxu0 0.0
    %3445 = vmatprep.subr.mxu0 0.0
    %3446 = vmatpush1.msra.mxu0 0.0
    %3447 = vmatprep.subr.mxu0 0.0
    %3448 = vmatpush1.msra.mxu0 0.0
    %3449 = vmatprep.subr.mxu0 0.0
    %3450 = vmatpush1.msra.mxu0 0.0
    %3451 = vmatprep.subr.mxu0 0.0
    %3452 = vmatpush1.msra.mxu0 0.0
    %3453 = vmatprep.subr.mxu0 0.0
    %3454 = vmatpush1.msra.mxu0 0.0
    %3455 = vmatprep.subr.mxu0 0.0
    %3456 = vmatpush1.msra.mxu0 0.0
    %3457 = vmatprep.subr.mxu0 0.0
    %3458 = vmatpush1.msra.mxu0 0.0
    %3459 = vmatprep.subr.mxu0 0.0
    %3460 = vmatpush1.msra.mxu0 0.0
    %3461 = vmatprep.subr.mxu0 0.0
    %3462 = vmatpush1.msra.mxu0 0.0
    %3463 = vmatprep.subr.mxu0 0.0
    %3464 = vmatpush1.msra.mxu0 0.0
    %3465 = vmatprep.subr.mxu0 0.0
    %3466 = vmatpush1.msra.mxu0 0.0
    %3467 = vmatprep.subr.mxu0 0.0
    %3468 = vmatpush1.msra.mxu0 0.0
    %3469 = vmatprep.subr.mxu0 0.0
    %3470 = vmatpush1.msra.mxu0 0.0
    %3471 = vmatprep.subr.mxu0 0.0
    %3472 = vmatpush1.msra.mxu0 0.0
    %3473 = vmatprep.subr.mxu0 0.0
    %3474 = vmatpush1.msra.mxu0 0.0
    %3475 = vmatprep.mubr.f32.mxu0 0.0
    %3476 = vmatmul.mubr.f32.gmra.mrb[0].mxu0 %v3100
    %v3477 = vpop.f32.mrb[0].mxu0
    %v3478 = vadd.f32 %v609, %v3477
    %v3479 = vpop.f32.mrb[0].mxu0
    %3480 = vdwg.mxu0
    %v3481 = vxor.u32 %v3337, 2147483648
    %v3482 = vmul.f32 %v3481, 1.442695
    %v3483 = vpow.pop %v3482
    %v3484 = vadd.f32 %v3483, 1.0
    %v3485 = vrcp.pop %v3484
    %v3486 = vmul.f32 1.0, %v3485
    %v3487 = vxor.u32 %v3339, 2147483648
    %v3488 = vmul.f32 %v3487, 1.442695
    %v3489 = vpow.pop %v3488
    %v3490 = vadd.f32 %v3489, 1.0
    %v3491 = vrcp.pop %v3490
    %v3492 = vmul.f32 1.0, %v3491
    %v3493 = vsub.f32 %v3408, %v3478
    %v3494 = vmul.f32 %v3486, %v3478
    %v3495 = vadd.f32 %v3493, %v3494
    %v3496 = vtanh.pop %v3495
    %v3497 = vsub.f32 1.0, %v3492
    %v3498 = vmul.f32 %v3497, %v3496
    %v3499 = vmul.f32 %v3492, %v3100
    %v3500 = vadd.f32 %v3498, %v3499
    %v3501 = vld [vmem:[#allocation10] sm:$0xff]
    %v3502 = vld [vmem:[#allocation10 + $0x8] sm:$0xff]
    %v3503 = vld [vmem:[#allocation10 + $0x10] sm:$0xff]
    %v3504 = vld [vmem:[#allocation10 + $0x18] sm:$0xff]
    %v3505 = vld [vmem:[#allocation10 + $0x20] sm:$0xff]
    %v3506 = vld [vmem:[#allocation10 + $0x28] sm:$0xff]
    %v3507 = vld [vmem:[#allocation10 + $0x30] sm:$0xff]
    %v3508 = vld [vmem:[#allocation10 + $0x38] sm:$0xff]
    %v3509 = vld [vmem:[#allocation10 + $0x40] sm:$0xff]
    %v3510 = vld [vmem:[#allocation10 + $0x48] sm:$0xff]
    %v3511 = vld [vmem:[#allocation10 + $0x50] sm:$0xff]
    %v3512 = vld [vmem:[#allocation10 + $0x58] sm:$0xff]
    %v3513 = vld [vmem:[#allocation10 + $0x60] sm:$0xff]
    %v3514 = vld [vmem:[#allocation10 + $0x68] sm:$0xff]
    %v3515 = vld [vmem:[#allocation10 + $0x70] sm:$0xff]
    %v3516 = vld [vmem:[#allocation10 + $0x78] sm:$0xff]
    %v3517 = vld [vmem:[%s8] sm:$0x1]
    %v3519 = vlaneseq
    %v3520 = vshrl.u32 %v3519, 7
    %v3521 = vsub.s32 0, %v3520
    %v3522 = vrot.slane %v3517, %v3521
    %3524 = vmatprep.subr.mxu0 0.0
    %3525 = vmatpush1.msra.mxu0 %v3501
    %3526 = vmatprep.subr.mxu0 0.0
    %3527 = vmatpush1.msra.mxu0 %v3502
    %3528 = vmatprep.subr.mxu0 0.0
    %3529 = vmatpush1.msra.mxu0 %v3503
    %3530 = vmatprep.subr.mxu0 0.0
    %3531 = vmatpush1.msra.mxu0 %v3504
    %3532 = vmatprep.subr.mxu0 0.0
    %3533 = vmatpush1.msra.mxu0 %v3505
    %3534 = vmatprep.subr.mxu0 0.0
    %3535 = vmatpush1.msra.mxu0 %v3506
    %3536 = vmatprep.subr.mxu0 0.0
    %3537 = vmatpush1.msra.mxu0 %v3507
    %3538 = vmatprep.subr.mxu0 0.0
    %3539 = vmatpush1.msra.mxu0 %v3508
    %3540 = vmatprep.subr.mxu0 0.0
    %3541 = vmatpush1.msra.mxu0 %v3509
    %3542 = vmatprep.subr.mxu0 0.0
    %3543 = vmatpush1.msra.mxu0 %v3510
    %3544 = vmatprep.subr.mxu0 0.0
    %3545 = vmatpush1.msra.mxu0 %v3511
    %3546 = vmatprep.subr.mxu0 0.0
    %3547 = vmatpush1.msra.mxu0 %v3512
    %3548 = vmatprep.subr.mxu0 0.0
    %3549 = vmatpush1.msra.mxu0 %v3513
    %3550 = vmatprep.subr.mxu0 0.0
    %3551 = vmatpush1.msra.mxu0 %v3514
    %3552 = vmatprep.subr.mxu0 0.0
    %3553 = vmatpush1.msra.mxu0 %v3515
    %3554 = vmatprep.subr.mxu0 0.0
    %3555 = vmatpush1.msra.mxu0 %v3516
    %3556 = vmatprep.subr.mxu0 0.0
    %3557 = vmatpush1.msra.mxu0 0.0
    %3558 = vmatprep.subr.mxu0 0.0
    %3559 = vmatpush1.msra.mxu0 0.0
    %3560 = vmatprep.subr.mxu0 0.0
    %3561 = vmatpush1.msra.mxu0 0.0
    %3562 = vmatprep.subr.mxu0 0.0
    %3563 = vmatpush1.msra.mxu0 0.0
    %3564 = vmatprep.subr.mxu0 0.0
    %3565 = vmatpush1.msra.mxu0 0.0
    %3566 = vmatprep.subr.mxu0 0.0
    %3567 = vmatpush1.msra.mxu0 0.0
    %3568 = vmatprep.subr.mxu0 0.0
    %3569 = vmatpush1.msra.mxu0 0.0
    %3570 = vmatprep.subr.mxu0 0.0
    %3571 = vmatpush1.msra.mxu0 0.0
    %3572 = vmatprep.subr.mxu0 0.0
    %3573 = vmatpush1.msra.mxu0 0.0
    %3574 = vmatprep.subr.mxu0 0.0
    %3575 = vmatpush1.msra.mxu0 0.0
    %3576 = vmatprep.subr.mxu0 0.0
    %3577 = vmatpush1.msra.mxu0 0.0
    %3578 = vmatprep.subr.mxu0 0.0
    %3579 = vmatpush1.msra.mxu0 0.0
    %3580 = vmatprep.subr.mxu0 0.0
    %3581 = vmatpush1.msra.mxu0 0.0
    %3582 = vmatprep.subr.mxu0 0.0
    %3583 = vmatpush1.msra.mxu0 0.0
    %3584 = vmatprep.subr.mxu0 0.0
    %3585 = vmatpush1.msra.mxu0 0.0
    %3586 = vmatprep.subr.mxu0 0.0
    %3587 = vmatpush1.msra.mxu0 0.0
    %3588 = vmatprep.mubr.f32.mxu0 0.0
    %3589 = vmatmul.mubr.f32.gmra.mrb[0].mxu0 %v3500
    %v3590 = vpop.f32.mrb[0].mxu0
    %v3591 = vadd.f32 %v3522, %v3590
    %v3592 = vpop.f32.mrb[0].mxu0
    %3593 = vdwg.mxu0
    %3594 = vst [vmem:[#allocation11] sm:$0x3] %v3591
    // Predicated region
    $region58: #{tpu_custom_call.1} parent=1 // pred_check
      _
    $region59: #{tpu_custom_call.1} parent=1 // pred_check_branch
      %3596 = sbr.rel (0) target = $region61
    $region60: #{tpu_custom_call.1} parent=1 // pred_region
      %s3598 = ssub.s32 32, 32
      %3599 = vsyncadd [#allocation4], %s3598
      %s3601 = sshll.u32 [#allocation11], 4
      %s3602 = int_to_ptr.vmem [resolvable:$true] %s3601
      %3604 = dma.vmem_to_hbm [thread:$0]  %s3602, 32, %s9, [#allocation4]
    $region61: #{tpu_custom_call.1} parent=1 // pred_fallthru
      _
    // Predicated region
    $region62: #{tpu_custom_call.1} parent=1 // pred_check
      _
    $region63: #{tpu_custom_call.1} parent=1 // pred_check_branch
      %3606 = sbr.rel (0) target = $region65
    $region64: #{tpu_custom_call.1} parent=1 // pred_region
      %3607 = dma.done [#allocation4], 32
    $region65: #{tpu_custom_call.1} parent=1 // pred_fallthru
      _
    %3608 = vsyncpa [#allocation3], 1
    %3609 = vsyncpa [#allocation6], 1
    %3610 = vsyncpa [#allocation9], 1
    %3611 = vsyncpa [#allocation4], 1

</llo_original>
